<compile_context>
chip_gen: v7x
topology: tpu7x:2x2x1
jax: 0.10.0
libtpu: 0.0.40
codegen_flags: <defaults>
</compile_context>

<pallas_src>
import jax
import jax.numpy as jnp
from jax import lax
from jax.experimental import pallas as pl
from jax.experimental.pallas import tpu as pltpu

# ---------------- synthetic model config (small) ----------------
PAD = 0
VOCAB = 20
MAX_SEQ_LEN = 16
N_POSITION = MAX_SEQ_LEN + 1
D_MODEL = 32            # encoder_dim
N_LAYERS = 2            # encoder_n_layer
N_HEAD = 2              # encoder_head
D_K = D_MODEL // N_HEAD
D_V = D_MODEL // N_HEAD
D_INNER = 64            # encoder_conv1d_filter_size
LN_EPS = 1e-5

B = 2                   # batch
S = 8                   # sequence length (power of two; kernel uses & (S-1))
BS = B * S

# ---- packed per-layer parameter-slab row offsets (all 8-row aligned) ----
R_WQKV = 0                       # rows  0: 32, lanes 0: 96  -> [Wq | Wk | Wv]
R_WFC = R_WQKV + D_MODEL         # rows 32: 64, lanes 0: 32  -> Wfc (head-major rows)
R_BIAS = R_WFC + N_HEAD * D_V    # rows 64: 72, lanes 0:128  -> biases / LN params
R_W1 = R_BIAS + 8                # 3 taps x (32, 64) at rows 72,104,136
R_W2 = R_W1 + 3 * D_MODEL        # 3 taps x (64, 32) at rows 168,232,296
P_ROWS = R_W2 + 3 * D_INNER      # 360
P_LANES = 128

EMB_POS_OFF = 24                 # pos-emb row offset inside emb slab (8-aligned)
EMB_ROWS = 48


# ---------------- in-kernel helpers ----------------
def _layernorm(y, gamma, beta):
    # Decoupled reductions: mean and mean(y*y) are independent -> both XLU
    # reductions can issue back-to-back instead of chaining.
    mean = jnp.mean(y, axis=-1, keepdims=True)
    msq = jnp.mean(y * y, axis=-1, keepdims=True)
    var = msq - mean * mean
    return (y - mean) * lax.rsqrt(var + LN_EPS) * gamma + beta


# ---------------- fused encoder kernel (embeddings + both layers, whole batch) --------
def encoder_kernel(tok_ref, abias_ref, emb_ref, p_ref, out_ref):
    # ---- layer-invariant prep (hoisted once) ----
    seq = tok_ref[:, 0:1]                                   # (BS,1) int32 token ids
    pos = tok_ref[:, 1:2]                                   # (BS,1) int32 position ids
    abias = abias_ref[...]                                  # (BS,BS) additive attn mask
    npm = (seq != PAD).astype(jnp.float32)                  # (BS,1) non-pad mask

    # Embedding lookup as one-hot MXU matmuls (replaces two XLA gathers).
    w_onehot = (lax.broadcasted_iota(jnp.int32, (BS, VOCAB), 1) == seq).astype(jnp.float32)
    p_onehot = (lax.broadcasted_iota(jnp.int32, (BS, N_POSITION), 1) == pos).astype(jnp.float32)
    x = (jnp.dot(w_onehot, emb_ref[0:VOCAB, :], preferred_element_type=jnp.float32)
         + jnp.dot(p_onehot, emb_ref[EMB_POS_OFF:EMB_POS_OFF + N_POSITION, :],
                   preferred_element_type=jnp.float32))     # (BS, D_MODEL)

    # Conv edge masks: zero the row that wrapped across a sequence / batch boundary.
    t_in_seq = lax.broadcasted_iota(jnp.int32, (BS, 1), 0) & (S - 1)
    first_keep = (t_in_seq != 0).astype(jnp.float32)        # kills y[t-1] at t == 0
    last_keep = (t_in_seq != (S - 1)).astype(jnp.float32)   # kills y[t+1] at t == S-1

    inv_temp = 1.0 / float(D_K) ** 0.5

    for l in range(N_LAYERS):                               # layers are sequential (static unroll)
        biasblk = p_ref[l, R_BIAS:R_BIAS + 8, :]            # (8,128) packed biases / LN params
        bqkv = biasblk[0:1, 0:3 * D_MODEL]
        bfc = biasblk[1:2, 0:D_MODEL]
        b1 = biasblk[2:3, 0:D_INNER]
        b2 = biasblk[3:4, 0:D_MODEL]
        ln1g = biasblk[4:5, 0:D_MODEL]
        ln1b = biasblk[5:6, 0:D_MODEL]
        ln2g = biasblk[6:7, 0:D_MODEL]
        ln2b = biasblk[7:8, 0:D_MODEL]

        # ---- multi-head self-attention, flat over BS ----
        wqkv = p_ref[l, R_WQKV:R_WQKV + D_MODEL, 0:3 * D_MODEL]              # (32,96)
        qkv = jnp.dot(x, wqkv, preferred_element_type=jnp.float32) + bqkv    # (16,96)

        proj = None
        for h in range(N_HEAD):                             # tiny static loop (2 iterations)
            qh = qkv[:, h * D_K:(h + 1) * D_K]                              # (16,16)
            kh = qkv[:, D_MODEL + h * D_K:D_MODEL + (h + 1) * D_K]
            vh = qkv[:, 2 * D_MODEL + h * D_V:2 * D_MODEL + (h + 1) * D_V]
            logits = lax.dot_general(qh, kh, (((1,), (1,)), ((), ())),
                                     preferred_element_type=jnp.float32) * inv_temp + abias
            m = jnp.max(logits, axis=-1, keepdims=True)
            e = jnp.exp(logits - m)                          # masked keys -> exactly 0
            # fused softmax + masked renormalisation: one reduction, one reciprocal
            attn = e * pl.reciprocal(jnp.sum(e, axis=-1, keepdims=True) + 1e-8,
                                     approx=True)
            hout = jnp.dot(attn, vh, preferred_element_type=jnp.float32)     # (16,16)
            # fold head output into the fc projection (no lane concat of heads)
            wfc_h = p_ref[l, R_WFC + h * D_V:R_WFC + (h + 1) * D_V, 0:D_MODEL]
            c = jnp.dot(hout, wfc_h, preferred_element_type=jnp.float32)
            proj = c if proj is None else proj + c
        proj = proj + bfc
        y = _layernorm(proj + x, ln1g, ln1b) * npm          # residual + LN + non_pad_mask

        # ---- position-wise FF: conv1d(3, pad=1) -> relu -> conv1d(3, pad=1) ----
        # Shift via pltpu.roll (XLU slot) + boundary masks; 3 accumulating
        # per-tap matmuls against the packed tap weights (MXU has huge slack).
        y_prev = pltpu.roll(y, shift=1, axis=0) * first_keep          # row t gets y[t-1]
        y_next = pltpu.roll(y, shift=BS - 1, axis=0) * last_keep      # row t gets y[t+1]
        h1 = (jnp.dot(y_prev, p_ref[l, R_W1:R_W1 + D_MODEL, 0:D_INNER],
                      preferred_element_type=jnp.float32)
              + jnp.dot(y, p_ref[l, R_W1 + D_MODEL:R_W1 + 2 * D_MODEL, 0:D_INNER],
                        preferred_element_type=jnp.float32)
              + jnp.dot(y_next, p_ref[l, R_W1 + 2 * D_MODEL:R_W1 + 3 * D_MODEL, 0:D_INNER],
                        preferred_element_type=jnp.float32)
              + b1)
        h1 = jnp.maximum(h1, 0.0)                                     # (16, 64)
        h_prev = pltpu.roll(h1, shift=1, axis=0) * first_keep
        h_next = pltpu.roll(h1, shift=BS - 1, axis=0) * last_keep
        ff = (jnp.dot(h_prev, p_ref[l, R_W2:R_W2 + D_INNER, 0:D_MODEL],
                      preferred_element_type=jnp.float32)
              + jnp.dot(h1, p_ref[l, R_W2 + D_INNER:R_W2 + 2 * D_INNER, 0:D_MODEL],
                        preferred_element_type=jnp.float32)
              + jnp.dot(h_next, p_ref[l, R_W2 + 2 * D_INNER:R_W2 + 3 * D_INNER, 0:D_MODEL],
                        preferred_element_type=jnp.float32)
              + b2)
        x = _layernorm(ff + y, ln2g, ln2b) * npm            # residual + LN + non_pad_mask
        # TODO(synk): dropout layers are identity (eval-mode); training-mode dropout not implemented.

    out_ref[...] = x                                        # flat (BS, D_MODEL) store


# ---------------- wrapper: ONE pallas_call for the whole encoder ----------------
def encoder_pallas(tok, abias, emb, pslab):
    # Grid-less call: every operand mapped whole into VMEM (footprint < 0.5 MiB,
    # far below any generation's scoped-VMEM default, incl. v7x's 64 MiB total).
    return pl.pallas_call(
        encoder_kernel,
        out_shape=jax.ShapeDtypeStruct((BS, D_MODEL), jnp.float32),
    )(tok, abias, emb, pslab)


@jax.jit
def encoder_forward(src_seq, src_pos, emb, pslab):
    seq_flat = src_seq.reshape(BS)
    # Additive attention mask: 0 where (same batch element AND key != PAD), else -1e9.
    qb = jnp.arange(BS, dtype=jnp.int32) // S
    keep = (qb[:, None] == qb[None, :]) & (seq_flat != PAD)[None, :]
    abias = jnp.where(keep, 0.0, -1e9).astype(jnp.float32)                 # (BS, BS)
    tok = jnp.stack([seq_flat, src_pos.reshape(BS)], axis=1).astype(jnp.int32)  # (BS, 2)

    enc = encoder_pallas(tok, abias, emb, pslab).reshape(B, S, D_MODEL)
    non_pad_mask = (src_seq != PAD).astype(jnp.float32)[:, :, None]
    return enc, non_pad_mask


# ---------------- parameter init (deterministic, synthetic, packed slabs) ----------------
def init_params(key):
    keys = iter(jax.random.split(key, 64))

    def nrm(shape, scale=0.05):
        return scale * jax.random.normal(next(keys), shape, jnp.float32)

    word_emb = nrm((VOCAB, D_MODEL), 0.1).at[PAD].set(0.0)       # padding_idx=PAD
    pos_emb = nrm((N_POSITION, D_MODEL), 0.1).at[PAD].set(0.0)   # padding_idx=PAD
    emb = jnp.zeros((EMB_ROWS, D_MODEL), jnp.float32)
    emb = emb.at[0:VOCAB].set(word_emb)
    emb = emb.at[EMB_POS_OFF:EMB_POS_OFF + N_POSITION].set(pos_emb)

    slabs = []
    for _ in range(N_LAYERS):
        # Linear weights stored pre-transposed: [in, out]
        wq = nrm((D_MODEL, N_HEAD * D_K))
        wk = nrm((D_MODEL, N_HEAD * D_K))
        wv = nrm((D_MODEL, N_HEAD * D_V))
        wfc = nrm((N_HEAD * D_V, D_MODEL))
        bq = nrm((N_HEAD * D_K,))
        bk = nrm((N_HEAD * D_K,))
        bv = nrm((N_HEAD * D_V,))
        bfc = nrm((D_MODEL,))
        # Conv1d weights stored as [kernel_tap, in_ch, out_ch]; tap 0 hits y[t-1],
        # tap 1 hits y[t], tap 2 hits y[t+1]  (== Conv1d(kernel=3, padding=1)).
        w1 = nrm((3, D_MODEL, D_INNER))
        b1 = nrm((D_INNER,))
        w2 = nrm((3, D_INNER, D_MODEL))
        b2 = nrm((D_MODEL,))
        ln1g = jnp.ones((D_MODEL,), jnp.float32)
        ln1b = jnp.zeros((D_MODEL,), jnp.float32)
        ln2g = jnp.ones((D_MODEL,), jnp.float32)
        ln2b = jnp.zeros((D_MODEL,), jnp.float32)

        s = jnp.zeros((P_ROWS, P_LANES), jnp.float32)
        s = s.at[R_WQKV:R_WQKV + D_MODEL, 0:3 * D_MODEL].set(
            jnp.concatenate([wq, wk, wv], axis=1))
        s = s.at[R_WFC:R_WFC + N_HEAD * D_V, 0:D_MODEL].set(wfc)
        s = s.at[R_BIAS + 0, 0:3 * D_MODEL].set(jnp.concatenate([bq, bk, bv]))
        s = s.at[R_BIAS + 1, 0:D_MODEL].set(bfc)
        s = s.at[R_BIAS + 2, 0:D_INNER].set(b1)
        s = s.at[R_BIAS + 3, 0:D_MODEL].set(b2)
        s = s.at[R_BIAS + 4, 0:D_MODEL].set(ln1g)
        s = s.at[R_BIAS + 5, 0:D_MODEL].set(ln1b)
        s = s.at[R_BIAS + 6, 0:D_MODEL].set(ln2g)
        s = s.at[R_BIAS + 7, 0:D_MODEL].set(ln2b)
        for t in range(3):
            s = s.at[R_W1 + t * D_MODEL:R_W1 + (t + 1) * D_MODEL, 0:D_INNER].set(w1[t])
            s = s.at[R_W2 + t * D_INNER:R_W2 + (t + 1) * D_INNER, 0:D_MODEL].set(w2[t])
        slabs.append(s)

    return emb, jnp.stack(slabs)    # (48, 32), (L, 360, 128)


if __name__ == "__main__":
    key = jax.random.PRNGKey(0)
    emb, pslab = init_params(key)

    src_seq = jnp.array([[5, 3, 7, 2, 9, 0, 0, 0],
                         [4, 8, 1, 6, 0, 0, 0, 0]], jnp.int32)
    src_pos = jnp.array([[1, 2, 3, 4, 5, 0, 0, 0],
                         [1, 2, 3, 4, 0, 0, 0, 0]], jnp.int32)

    enc_out, non_pad_mask = encoder_forward(src_seq, src_pos, emb, pslab)
    jax.block_until_ready((enc_out, non_pad_mask))
    assert enc_out.shape == (B, S, D_MODEL) and non_pad_mask.shape == (B, S, 1)
    assert bool(jnp.all(jnp.isfinite(enc_out)))
    print("KERNEL_OK")
</pallas_src>

<mosaic_0001>
module attributes {stable_mosaic.version = 11 : i64} {
  func.func @encoder_kernel(%arg0: memref<16x2xi32, #tpu.memory_space<vmem>>, %arg1: memref<16x16xf32, #tpu.memory_space<vmem>>, %arg2: memref<48x32xf32, #tpu.memory_space<vmem>>, %arg3: memref<2x360x128xf32, #tpu.memory_space<vmem>>, %arg4: memref<16x32xf32, #tpu.memory_space<vmem>>) attributes {dimension_semantics = [], scalar_prefetch = 0 : i64, scratch_operands = 0 : i64, tpu.core_type = #tpu.core_type<tc>} {
    %c0 = arith.constant 0 : index
    %c0_0 = arith.constant 0 : index
    %0 = vector.load %arg0[%c0, %c0_0] : memref<16x2xi32, #tpu.memory_space<vmem>>, vector<16x1xi32>
    %c0_1 = arith.constant 0 : index
    %c1 = arith.constant 1 : index
    %1 = vector.load %arg0[%c0_1, %c1] : memref<16x2xi32, #tpu.memory_space<vmem>>, vector<16x1xi32>
    %c0_2 = arith.constant 0 : index
    %c0_3 = arith.constant 0 : index
    %2 = vector.load %arg1[%c0_2, %c0_3] : memref<16x16xf32, #tpu.memory_space<vmem>>, vector<16x16xf32>
    %c0_i32 = arith.constant 0 : i32
    %3 = vector.broadcast %c0_i32 : i32 to vector<16x1xi32>
    %4 = arith.cmpi ne, %0, %3 : vector<16x1xi32>
    %5 = arith.extui %4 : vector<16x1xi1> to vector<16x1xi32>
    %6 = arith.sitofp %5 : vector<16x1xi32> to vector<16x1xf32>
    %7 = tpu.iota {dimensions = array<i32: 1>} : vector<16x20xi32>
    %8 = vector.broadcast %0 : vector<16x1xi32> to vector<16x20xi32>
    %9 = arith.cmpi eq, %7, %8 : vector<16x20xi32>
    %10 = arith.extui %9 : vector<16x20xi1> to vector<16x20xi32>
    %11 = arith.sitofp %10 : vector<16x20xi32> to vector<16x20xf32>
    %12 = tpu.iota {dimensions = array<i32: 1>} : vector<16x17xi32>
    %13 = vector.broadcast %1 : vector<16x1xi32> to vector<16x17xi32>
    %14 = arith.cmpi eq, %12, %13 : vector<16x17xi32>
    %15 = arith.extui %14 : vector<16x17xi1> to vector<16x17xi32>
    %16 = arith.sitofp %15 : vector<16x17xi32> to vector<16x17xf32>
    %c0_4 = arith.constant 0 : index
    %c0_5 = arith.constant 0 : index
    %17 = vector.load %arg2[%c0_4, %c0_5] : memref<48x32xf32, #tpu.memory_space<vmem>>, vector<20x32xf32>
    %cst = arith.constant dense<0.000000e+00> : vector<16x32xf32>
    %18 = tpu.matmul %11, %17, %cst {dimension_numbers = #tpu.dot_dimension_numbers<[1], [0], [0], [1], [0, 0, 1, 1], [], []>} : vector<16x20xf32>, vector<20x32xf32>, vector<16x32xf32> -> vector<16x32xf32>
    %c24 = arith.constant 24 : index
    %c0_6 = arith.constant 0 : index
    %19 = vector.load %arg2[%c24, %c0_6] : memref<48x32xf32, #tpu.memory_space<vmem>>, vector<17x32xf32>
    %cst_7 = arith.constant dense<0.000000e+00> : vector<16x32xf32>
    %20 = tpu.matmul %16, %19, %cst_7 {dimension_numbers = #tpu.dot_dimension_numbers<[1], [0], [0], [1], [0, 0, 1, 1], [], []>} : vector<16x17xf32>, vector<17x32xf32>, vector<16x32xf32> -> vector<16x32xf32>
    %21 = arith.addf %18, %20 : vector<16x32xf32>
    %22 = tpu.iota {dimensions = array<i32: 0>} : vector<16x1xi32>
    %c7_i32 = arith.constant 7 : i32
    %23 = vector.broadcast %c7_i32 : i32 to vector<16x1xi32>
    %24 = arith.andi %22, %23 : vector<16x1xi32>
    %c0_i32_8 = arith.constant 0 : i32
    %25 = vector.broadcast %c0_i32_8 : i32 to vector<16x1xi32>
    %26 = arith.cmpi ne, %24, %25 : vector<16x1xi32>
    %27 = arith.extui %26 : vector<16x1xi1> to vector<16x1xi32>
    %28 = arith.sitofp %27 : vector<16x1xi32> to vector<16x1xf32>
    %c7_i32_9 = arith.constant 7 : i32
    %29 = vector.broadcast %c7_i32_9 : i32 to vector<16x1xi32>
    %30 = arith.cmpi ne, %24, %29 : vector<16x1xi32>
    %31 = arith.extui %30 : vector<16x1xi1> to vector<16x1xi32>
    %32 = arith.sitofp %31 : vector<16x1xi32> to vector<16x1xf32>
    %c0_10 = arith.constant 0 : index
    %c64 = arith.constant 64 : index
    %c0_11 = arith.constant 0 : index
    %33 = vector.load %arg3[%c0_10, %c64, %c0_11] : memref<2x360x128xf32, #tpu.memory_space<vmem>>, vector<1x8x128xf32>
    %34 = vector.shape_cast %33 : vector<1x8x128xf32> to vector<8x128xf32>
    %35 = vector.extract_strided_slice %34 {offsets = [0, 0], sizes = [1, 96], strides = [1, 1]} : vector<8x128xf32> to vector<1x96xf32>
    %36 = vector.extract_strided_slice %34 {offsets = [1, 0], sizes = [1, 32], strides = [1, 1]} : vector<8x128xf32> to vector<1x32xf32>
    %37 = vector.extract_strided_slice %34 {offsets = [2, 0], sizes = [1, 64], strides = [1, 1]} : vector<8x128xf32> to vector<1x64xf32>
    %38 = vector.extract_strided_slice %34 {offsets = [3, 0], sizes = [1, 32], strides = [1, 1]} : vector<8x128xf32> to vector<1x32xf32>
    %39 = vector.extract_strided_slice %34 {offsets = [4, 0], sizes = [1, 32], strides = [1, 1]} : vector<8x128xf32> to vector<1x32xf32>
    %40 = vector.extract_strided_slice %34 {offsets = [5, 0], sizes = [1, 32], strides = [1, 1]} : vector<8x128xf32> to vector<1x32xf32>
    %41 = vector.extract_strided_slice %34 {offsets = [6, 0], sizes = [1, 32], strides = [1, 1]} : vector<8x128xf32> to vector<1x32xf32>
    %42 = vector.extract_strided_slice %34 {offsets = [7, 0], sizes = [1, 32], strides = [1, 1]} : vector<8x128xf32> to vector<1x32xf32>
    %c0_12 = arith.constant 0 : index
    %c0_13 = arith.constant 0 : index
    %c0_14 = arith.constant 0 : index
    %43 = vector.load %arg3[%c0_12, %c0_13, %c0_14] : memref<2x360x128xf32, #tpu.memory_space<vmem>>, vector<1x32x96xf32>
    %44 = vector.shape_cast %43 : vector<1x32x96xf32> to vector<32x96xf32>
    %cst_15 = arith.constant dense<0.000000e+00> : vector<16x96xf32>
    %45 = tpu.matmul %21, %44, %cst_15 {dimension_numbers = #tpu.dot_dimension_numbers<[1], [0], [0], [1], [0, 0, 1, 1], [], []>} : vector<16x32xf32>, vector<32x96xf32>, vector<16x96xf32> -> vector<16x96xf32>
    %46 = vector.broadcast %35 : vector<1x96xf32> to vector<16x96xf32>
    %47 = arith.addf %45, %46 : vector<16x96xf32>
    %48 = vector.extract_strided_slice %47 {offsets = [0, 0], sizes = [16, 16], strides = [1, 1]} : vector<16x96xf32> to vector<16x16xf32>
    %49 = vector.extract_strided_slice %47 {offsets = [0, 32], sizes = [16, 16], strides = [1, 1]} : vector<16x96xf32> to vector<16x16xf32>
    %50 = vector.extract_strided_slice %47 {offsets = [0, 64], sizes = [16, 16], strides = [1, 1]} : vector<16x96xf32> to vector<16x16xf32>
    %cst_16 = arith.constant dense<0.000000e+00> : vector<16x16xf32>
    %51 = tpu.matmul %48, %49, %cst_16 {dimension_numbers = #tpu.dot_dimension_numbers<[1], [1], [0], [0], [0, 0, 1, 0], [], []>} : vector<16x16xf32>, vector<16x16xf32>, vector<16x16xf32> -> vector<16x16xf32>
    %cst_17 = arith.constant 2.500000e-01 : f32
    %52 = vector.broadcast %cst_17 : f32 to vector<16x16xf32>
    %53 = arith.mulf %51, %52 : vector<16x16xf32>
    %54 = arith.addf %53, %2 : vector<16x16xf32>
    %cst_18 = arith.constant dense<0xFF800000> : vector<16xf32>
    %55 = vector.multi_reduction <maximumf>, %54, %cst_18 [1] : vector<16x16xf32> to vector<16xf32>
    %56 = vector.shape_cast %55 : vector<16xf32> to vector<16x1xf32>
    %57 = vector.broadcast %56 : vector<16x1xf32> to vector<16x16xf32>
    %58 = arith.subf %54, %57 : vector<16x16xf32>
    %59 = math.exp %58 : vector<16x16xf32>
    %cst_19 = arith.constant dense<0.000000e+00> : vector<16xf32>
    %60 = vector.multi_reduction <add>, %59, %cst_19 [1] : vector<16x16xf32> to vector<16xf32>
    %61 = vector.shape_cast %60 : vector<16xf32> to vector<16x1xf32>
    %cst_20 = arith.constant 9.99999993E-9 : f32
    %62 = vector.broadcast %cst_20 : f32 to vector<16x1xf32>
    %63 = arith.addf %61, %62 : vector<16x1xf32>
    %64 = tpu.reciprocal %63 {approx = true} : vector<16x1xf32> -> vector<16x1xf32>
    %65 = vector.broadcast %64 : vector<16x1xf32> to vector<16x16xf32>
    %66 = arith.mulf %59, %65 : vector<16x16xf32>
    %cst_21 = arith.constant dense<0.000000e+00> : vector<16x16xf32>
    %67 = tpu.matmul %66, %50, %cst_21 {dimension_numbers = #tpu.dot_dimension_numbers<[1], [0], [0], [1], [0, 0, 1, 1], [], []>} : vector<16x16xf32>, vector<16x16xf32>, vector<16x16xf32> -> vector<16x16xf32>
    %c0_22 = arith.constant 0 : index
    %c32 = arith.constant 32 : index
    %c0_23 = arith.constant 0 : index
    %68 = vector.load %arg3[%c0_22, %c32, %c0_23] : memref<2x360x128xf32, #tpu.memory_space<vmem>>, vector<1x16x32xf32>
    %69 = vector.shape_cast %68 : vector<1x16x32xf32> to vector<16x32xf32>
    %cst_24 = arith.constant dense<0.000000e+00> : vector<16x32xf32>
    %70 = tpu.matmul %67, %69, %cst_24 {dimension_numbers = #tpu.dot_dimension_numbers<[1], [0], [0], [1], [0, 0, 1, 1], [], []>} : vector<16x16xf32>, vector<16x32xf32>, vector<16x32xf32> -> vector<16x32xf32>
    %71 = vector.extract_strided_slice %47 {offsets = [0, 16], sizes = [16, 16], strides = [1, 1]} : vector<16x96xf32> to vector<16x16xf32>
    %72 = vector.extract_strided_slice %47 {offsets = [0, 48], sizes = [16, 16], strides = [1, 1]} : vector<16x96xf32> to vector<16x16xf32>
    %73 = vector.extract_strided_slice %47 {offsets = [0, 80], sizes = [16, 16], strides = [1, 1]} : vector<16x96xf32> to vector<16x16xf32>
    %cst_25 = arith.constant dense<0.000000e+00> : vector<16x16xf32>
    %74 = tpu.matmul %71, %72, %cst_25 {dimension_numbers = #tpu.dot_dimension_numbers<[1], [1], [0], [0], [0, 0, 1, 0], [], []>} : vector<16x16xf32>, vector<16x16xf32>, vector<16x16xf32> -> vector<16x16xf32>
    %cst_26 = arith.constant 2.500000e-01 : f32
    %75 = vector.broadcast %cst_26 : f32 to vector<16x16xf32>
    %76 = arith.mulf %74, %75 : vector<16x16xf32>
    %77 = arith.addf %76, %2 : vector<16x16xf32>
    %cst_27 = arith.constant dense<0xFF800000> : vector<16xf32>
    %78 = vector.multi_reduction <maximumf>, %77, %cst_27 [1] : vector<16x16xf32> to vector<16xf32>
    %79 = vector.shape_cast %78 : vector<16xf32> to vector<16x1xf32>
    %80 = vector.broadcast %79 : vector<16x1xf32> to vector<16x16xf32>
    %81 = arith.subf %77, %80 : vector<16x16xf32>
    %82 = math.exp %81 : vector<16x16xf32>
    %cst_28 = arith.constant dense<0.000000e+00> : vector<16xf32>
    %83 = vector.multi_reduction <add>, %82, %cst_28 [1] : vector<16x16xf32> to vector<16xf32>
    %84 = vector.shape_cast %83 : vector<16xf32> to vector<16x1xf32>
    %cst_29 = arith.constant 9.99999993E-9 : f32
    %85 = vector.broadcast %cst_29 : f32 to vector<16x1xf32>
    %86 = arith.addf %84, %85 : vector<16x1xf32>
    %87 = tpu.reciprocal %86 {approx = true} : vector<16x1xf32> -> vector<16x1xf32>
    %88 = vector.broadcast %87 : vector<16x1xf32> to vector<16x16xf32>
    %89 = arith.mulf %82, %88 : vector<16x16xf32>
    %cst_30 = arith.constant dense<0.000000e+00> : vector<16x16xf32>
    %90 = tpu.matmul %89, %73, %cst_30 {dimension_numbers = #tpu.dot_dimension_numbers<[1], [0], [0], [1], [0, 0, 1, 1], [], []>} : vector<16x16xf32>, vector<16x16xf32>, vector<16x16xf32> -> vector<16x16xf32>
    %c0_31 = arith.constant 0 : index
    %c48 = arith.constant 48 : index
    %c0_32 = arith.constant 0 : index
    %91 = vector.load %arg3[%c0_31, %c48, %c0_32] : memref<2x360x128xf32, #tpu.memory_space<vmem>>, vector<1x16x32xf32>
    %92 = vector.shape_cast %91 : vector<1x16x32xf32> to vector<16x32xf32>
    %cst_33 = arith.constant dense<0.000000e+00> : vector<16x32xf32>
    %93 = tpu.matmul %90, %92, %cst_33 {dimension_numbers = #tpu.dot_dimension_numbers<[1], [0], [0], [1], [0, 0, 1, 1], [], []>} : vector<16x16xf32>, vector<16x32xf32>, vector<16x32xf32> -> vector<16x32xf32>
    %94 = arith.addf %70, %93 : vector<16x32xf32>
    %95 = vector.broadcast %36 : vector<1x32xf32> to vector<16x32xf32>
    %96 = arith.addf %94, %95 : vector<16x32xf32>
    %97 = arith.addf %96, %21 : vector<16x32xf32>
    %cst_34 = arith.constant dense<0.000000e+00> : vector<16xf32>
    %98 = vector.multi_reduction <add>, %97, %cst_34 [1] : vector<16x32xf32> to vector<16xf32>
    %99 = vector.shape_cast %98 : vector<16xf32> to vector<16x1xf32>
    %cst_35 = arith.constant 3.200000e+01 : f32
    %100 = vector.broadcast %cst_35 : f32 to vector<16x1xf32>
    %101 = arith.divf %99, %100 : vector<16x1xf32>
    %102 = arith.mulf %97, %97 : vector<16x32xf32>
    %cst_36 = arith.constant dense<0.000000e+00> : vector<16xf32>
    %103 = vector.multi_reduction <add>, %102, %cst_36 [1] : vector<16x32xf32> to vector<16xf32>
    %104 = vector.shape_cast %103 : vector<16xf32> to vector<16x1xf32>
    %cst_37 = arith.constant 3.200000e+01 : f32
    %105 = vector.broadcast %cst_37 : f32 to vector<16x1xf32>
    %106 = arith.divf %104, %105 : vector<16x1xf32>
    %107 = arith.mulf %101, %101 : vector<16x1xf32>
    %108 = arith.subf %106, %107 : vector<16x1xf32>
    %109 = vector.broadcast %101 : vector<16x1xf32> to vector<16x32xf32>
    %110 = arith.subf %97, %109 : vector<16x32xf32>
    %cst_38 = arith.constant 9.99999974E-6 : f32
    %111 = vector.broadcast %cst_38 : f32 to vector<16x1xf32>
    %112 = arith.addf %108, %111 : vector<16x1xf32>
    %113 = math.rsqrt %112 : vector<16x1xf32>
    %114 = vector.broadcast %113 : vector<16x1xf32> to vector<16x32xf32>
    %115 = arith.mulf %110, %114 : vector<16x32xf32>
    %116 = vector.broadcast %39 : vector<1x32xf32> to vector<16x32xf32>
    %117 = arith.mulf %115, %116 : vector<16x32xf32>
    %118 = vector.broadcast %40 : vector<1x32xf32> to vector<16x32xf32>
    %119 = arith.addf %117, %118 : vector<16x32xf32>
    %120 = vector.broadcast %6 : vector<16x1xf32> to vector<16x32xf32>
    %121 = arith.mulf %119, %120 : vector<16x32xf32>
    %c1_i32 = arith.constant 1 : i32
    %122 = tpu.dynamic_rotate %121 by %c1_i32 dim 0 : vector<16x32xf32>, i32 -> vector<16x32xf32>
    %123 = vector.broadcast %28 : vector<16x1xf32> to vector<16x32xf32>
    %124 = arith.mulf %122, %123 : vector<16x32xf32>
    %c15_i32 = arith.constant 15 : i32
    %125 = tpu.dynamic_rotate %121 by %c15_i32 dim 0 : vector<16x32xf32>, i32 -> vector<16x32xf32>
    %126 = vector.broadcast %32 : vector<16x1xf32> to vector<16x32xf32>
    %127 = arith.mulf %125, %126 : vector<16x32xf32>
    %c0_39 = arith.constant 0 : index
    %c72 = arith.constant 72 : index
    %c0_40 = arith.constant 0 : index
    %128 = vector.load %arg3[%c0_39, %c72, %c0_40] : memref<2x360x128xf32, #tpu.memory_space<vmem>>, vector<1x32x64xf32>
    %129 = vector.shape_cast %128 : vector<1x32x64xf32> to vector<32x64xf32>
    %cst_41 = arith.constant dense<0.000000e+00> : vector<16x64xf32>
    %130 = tpu.matmul %124, %129, %cst_41 {dimension_numbers = #tpu.dot_dimension_numbers<[1], [0], [0], [1], [0, 0, 1, 1], [], []>} : vector<16x32xf32>, vector<32x64xf32>, vector<16x64xf32> -> vector<16x64xf32>
    %c0_42 = arith.constant 0 : index
    %c104 = arith.constant 104 : index
    %c0_43 = arith.constant 0 : index
    %131 = vector.load %arg3[%c0_42, %c104, %c0_43] : memref<2x360x128xf32, #tpu.memory_space<vmem>>, vector<1x32x64xf32>
    %132 = vector.shape_cast %131 : vector<1x32x64xf32> to vector<32x64xf32>
    %cst_44 = arith.constant dense<0.000000e+00> : vector<16x64xf32>
    %133 = tpu.matmul %121, %132, %cst_44 {dimension_numbers = #tpu.dot_dimension_numbers<[1], [0], [0], [1], [0, 0, 1, 1], [], []>} : vector<16x32xf32>, vector<32x64xf32>, vector<16x64xf32> -> vector<16x64xf32>
    %134 = arith.addf %130, %133 : vector<16x64xf32>
    %c0_45 = arith.constant 0 : index
    %c136 = arith.constant 136 : index
    %c0_46 = arith.constant 0 : index
    %135 = vector.load %arg3[%c0_45, %c136, %c0_46] : memref<2x360x128xf32, #tpu.memory_space<vmem>>, vector<1x32x64xf32>
    %136 = vector.shape_cast %135 : vector<1x32x64xf32> to vector<32x64xf32>
    %cst_47 = arith.constant dense<0.000000e+00> : vector<16x64xf32>
    %137 = tpu.matmul %127, %136, %cst_47 {dimension_numbers = #tpu.dot_dimension_numbers<[1], [0], [0], [1], [0, 0, 1, 1], [], []>} : vector<16x32xf32>, vector<32x64xf32>, vector<16x64xf32> -> vector<16x64xf32>
    %138 = arith.addf %134, %137 : vector<16x64xf32>
    %139 = vector.broadcast %37 : vector<1x64xf32> to vector<16x64xf32>
    %140 = arith.addf %138, %139 : vector<16x64xf32>
    %cst_48 = arith.constant 0.000000e+00 : f32
    %141 = vector.broadcast %cst_48 : f32 to vector<16x64xf32>
    %142 = arith.maximumf %140, %141 : vector<16x64xf32>
    %c1_i32_49 = arith.constant 1 : i32
    %143 = tpu.dynamic_rotate %142 by %c1_i32_49 dim 0 : vector<16x64xf32>, i32 -> vector<16x64xf32>
    %144 = vector.broadcast %28 : vector<16x1xf32> to vector<16x64xf32>
    %145 = arith.mulf %143, %144 : vector<16x64xf32>
    %c15_i32_50 = arith.constant 15 : i32
    %146 = tpu.dynamic_rotate %142 by %c15_i32_50 dim 0 : vector<16x64xf32>, i32 -> vector<16x64xf32>
    %147 = vector.broadcast %32 : vector<16x1xf32> to vector<16x64xf32>
    %148 = arith.mulf %146, %147 : vector<16x64xf32>
    %c0_51 = arith.constant 0 : index
    %c168 = arith.constant 168 : index
    %c0_52 = arith.constant 0 : index
    %149 = vector.load %arg3[%c0_51, %c168, %c0_52] : memref<2x360x128xf32, #tpu.memory_space<vmem>>, vector<1x64x32xf32>
    %150 = vector.shape_cast %149 : vector<1x64x32xf32> to vector<64x32xf32>
    %cst_53 = arith.constant dense<0.000000e+00> : vector<16x32xf32>
    %151 = tpu.matmul %145, %150, %cst_53 {dimension_numbers = #tpu.dot_dimension_numbers<[1], [0], [0], [1], [0, 0, 1, 1], [], []>} : vector<16x64xf32>, vector<64x32xf32>, vector<16x32xf32> -> vector<16x32xf32>
    %c0_54 = arith.constant 0 : index
    %c232 = arith.constant 232 : index
    %c0_55 = arith.constant 0 : index
    %152 = vector.load %arg3[%c0_54, %c232, %c0_55] : memref<2x360x128xf32, #tpu.memory_space<vmem>>, vector<1x64x32xf32>
    %153 = vector.shape_cast %152 : vector<1x64x32xf32> to vector<64x32xf32>
    %cst_56 = arith.constant dense<0.000000e+00> : vector<16x32xf32>
    %154 = tpu.matmul %142, %153, %cst_56 {dimension_numbers = #tpu.dot_dimension_numbers<[1], [0], [0], [1], [0, 0, 1, 1], [], []>} : vector<16x64xf32>, vector<64x32xf32>, vector<16x32xf32> -> vector<16x32xf32>
    %155 = arith.addf %151, %154 : vector<16x32xf32>
    %c0_57 = arith.constant 0 : index
    %c296 = arith.constant 296 : index
    %c0_58 = arith.constant 0 : index
    %156 = vector.load %arg3[%c0_57, %c296, %c0_58] : memref<2x360x128xf32, #tpu.memory_space<vmem>>, vector<1x64x32xf32>
    %157 = vector.shape_cast %156 : vector<1x64x32xf32> to vector<64x32xf32>
    %cst_59 = arith.constant dense<0.000000e+00> : vector<16x32xf32>
    %158 = tpu.matmul %148, %157, %cst_59 {dimension_numbers = #tpu.dot_dimension_numbers<[1], [0], [0], [1], [0, 0, 1, 1], [], []>} : vector<16x64xf32>, vector<64x32xf32>, vector<16x32xf32> -> vector<16x32xf32>
    %159 = arith.addf %155, %158 : vector<16x32xf32>
    %160 = vector.broadcast %38 : vector<1x32xf32> to vector<16x32xf32>
    %161 = arith.addf %159, %160 : vector<16x32xf32>
    %162 = arith.addf %161, %121 : vector<16x32xf32>
    %cst_60 = arith.constant dense<0.000000e+00> : vector<16xf32>
    %163 = vector.multi_reduction <add>, %162, %cst_60 [1] : vector<16x32xf32> to vector<16xf32>
    %164 = vector.shape_cast %163 : vector<16xf32> to vector<16x1xf32>
    %cst_61 = arith.constant 3.200000e+01 : f32
    %165 = vector.broadcast %cst_61 : f32 to vector<16x1xf32>
    %166 = arith.divf %164, %165 : vector<16x1xf32>
    %167 = arith.mulf %162, %162 : vector<16x32xf32>
    %cst_62 = arith.constant dense<0.000000e+00> : vector<16xf32>
    %168 = vector.multi_reduction <add>, %167, %cst_62 [1] : vector<16x32xf32> to vector<16xf32>
    %169 = vector.shape_cast %168 : vector<16xf32> to vector<16x1xf32>
    %cst_63 = arith.constant 3.200000e+01 : f32
    %170 = vector.broadcast %cst_63 : f32 to vector<16x1xf32>
    %171 = arith.divf %169, %170 : vector<16x1xf32>
    %172 = arith.mulf %166, %166 : vector<16x1xf32>
    %173 = arith.subf %171, %172 : vector<16x1xf32>
    %174 = vector.broadcast %166 : vector<16x1xf32> to vector<16x32xf32>
    %175 = arith.subf %162, %174 : vector<16x32xf32>
    %cst_64 = arith.constant 9.99999974E-6 : f32
    %176 = vector.broadcast %cst_64 : f32 to vector<16x1xf32>
    %177 = arith.addf %173, %176 : vector<16x1xf32>
    %178 = math.rsqrt %177 : vector<16x1xf32>
    %179 = vector.broadcast %178 : vector<16x1xf32> to vector<16x32xf32>
    %180 = arith.mulf %175, %179 : vector<16x32xf32>
    %181 = vector.broadcast %41 : vector<1x32xf32> to vector<16x32xf32>
    %182 = arith.mulf %180, %181 : vector<16x32xf32>
    %183 = vector.broadcast %42 : vector<1x32xf32> to vector<16x32xf32>
    %184 = arith.addf %182, %183 : vector<16x32xf32>
    %185 = vector.broadcast %6 : vector<16x1xf32> to vector<16x32xf32>
    %186 = arith.mulf %184, %185 : vector<16x32xf32>
    %c1_65 = arith.constant 1 : index
    %c64_66 = arith.constant 64 : index
    %c0_67 = arith.constant 0 : index
    %187 = vector.load %arg3[%c1_65, %c64_66, %c0_67] : memref<2x360x128xf32, #tpu.memory_space<vmem>>, vector<1x8x128xf32>
    %188 = vector.shape_cast %187 : vector<1x8x128xf32> to vector<8x128xf32>
    %189 = vector.extract_strided_slice %188 {offsets = [0, 0], sizes = [1, 96], strides = [1, 1]} : vector<8x128xf32> to vector<1x96xf32>
    %190 = vector.extract_strided_slice %188 {offsets = [1, 0], sizes = [1, 32], strides = [1, 1]} : vector<8x128xf32> to vector<1x32xf32>
    %191 = vector.extract_strided_slice %188 {offsets = [2, 0], sizes = [1, 64], strides = [1, 1]} : vector<8x128xf32> to vector<1x64xf32>
    %192 = vector.extract_strided_slice %188 {offsets = [3, 0], sizes = [1, 32], strides = [1, 1]} : vector<8x128xf32> to vector<1x32xf32>
    %193 = vector.extract_strided_slice %188 {offsets = [4, 0], sizes = [1, 32], strides = [1, 1]} : vector<8x128xf32> to vector<1x32xf32>
    %194 = vector.extract_strided_slice %188 {offsets = [5, 0], sizes = [1, 32], strides = [1, 1]} : vector<8x128xf32> to vector<1x32xf32>
    %195 = vector.extract_strided_slice %188 {offsets = [6, 0], sizes = [1, 32], strides = [1, 1]} : vector<8x128xf32> to vector<1x32xf32>
    %196 = vector.extract_strided_slice %188 {offsets = [7, 0], sizes = [1, 32], strides = [1, 1]} : vector<8x128xf32> to vector<1x32xf32>
    %c1_68 = arith.constant 1 : index
    %c0_69 = arith.constant 0 : index
    %c0_70 = arith.constant 0 : index
    %197 = vector.load %arg3[%c1_68, %c0_69, %c0_70] : memref<2x360x128xf32, #tpu.memory_space<vmem>>, vector<1x32x96xf32>
    %198 = vector.shape_cast %197 : vector<1x32x96xf32> to vector<32x96xf32>
    %cst_71 = arith.constant dense<0.000000e+00> : vector<16x96xf32>
    %199 = tpu.matmul %186, %198, %cst_71 {dimension_numbers = #tpu.dot_dimension_numbers<[1], [0], [0], [1], [0, 0, 1, 1], [], []>} : vector<16x32xf32>, vector<32x96xf32>, vector<16x96xf32> -> vector<16x96xf32>
    %200 = vector.broadcast %189 : vector<1x96xf32> to vector<16x96xf32>
    %201 = arith.addf %199, %200 : vector<16x96xf32>
    %202 = vector.extract_strided_slice %201 {offsets = [0, 0], sizes = [16, 16], strides = [1, 1]} : vector<16x96xf32> to vector<16x16xf32>
    %203 = vector.extract_strided_slice %201 {offsets = [0, 32], sizes = [16, 16], strides = [1, 1]} : vector<16x96xf32> to vector<16x16xf32>
    %204 = vector.extract_strided_slice %201 {offsets = [0, 64], sizes = [16, 16], strides = [1, 1]} : vector<16x96xf32> to vector<16x16xf32>
    %cst_72 = arith.constant dense<0.000000e+00> : vector<16x16xf32>
    %205 = tpu.matmul %202, %203, %cst_72 {dimension_numbers = #tpu.dot_dimension_numbers<[1], [1], [0], [0], [0, 0, 1, 0], [], []>} : vector<16x16xf32>, vector<16x16xf32>, vector<16x16xf32> -> vector<16x16xf32>
    %cst_73 = arith.constant 2.500000e-01 : f32
    %206 = vector.broadcast %cst_73 : f32 to vector<16x16xf32>
    %207 = arith.mulf %205, %206 : vector<16x16xf32>
    %208 = arith.addf %207, %2 : vector<16x16xf32>
    %cst_74 = arith.constant dense<0xFF800000> : vector<16xf32>
    %209 = vector.multi_reduction <maximumf>, %208, %cst_74 [1] : vector<16x16xf32> to vector<16xf32>
    %210 = vector.shape_cast %209 : vector<16xf32> to vector<16x1xf32>
    %211 = vector.broadcast %210 : vector<16x1xf32> to vector<16x16xf32>
    %212 = arith.subf %208, %211 : vector<16x16xf32>
    %213 = math.exp %212 : vector<16x16xf32>
    %cst_75 = arith.constant dense<0.000000e+00> : vector<16xf32>
    %214 = vector.multi_reduction <add>, %213, %cst_75 [1] : vector<16x16xf32> to vector<16xf32>
    %215 = vector.shape_cast %214 : vector<16xf32> to vector<16x1xf32>
    %cst_76 = arith.constant 9.99999993E-9 : f32
    %216 = vector.broadcast %cst_76 : f32 to vector<16x1xf32>
    %217 = arith.addf %215, %216 : vector<16x1xf32>
    %218 = tpu.reciprocal %217 {approx = true} : vector<16x1xf32> -> vector<16x1xf32>
    %219 = vector.broadcast %218 : vector<16x1xf32> to vector<16x16xf32>
    %220 = arith.mulf %213, %219 : vector<16x16xf32>
    %cst_77 = arith.constant dense<0.000000e+00> : vector<16x16xf32>
    %221 = tpu.matmul %220, %204, %cst_77 {dimension_numbers = #tpu.dot_dimension_numbers<[1], [0], [0], [1], [0, 0, 1, 1], [], []>} : vector<16x16xf32>, vector<16x16xf32>, vector<16x16xf32> -> vector<16x16xf32>
    %c1_78 = arith.constant 1 : index
    %c32_79 = arith.constant 32 : index
    %c0_80 = arith.constant 0 : index
    %222 = vector.load %arg3[%c1_78, %c32_79, %c0_80] : memref<2x360x128xf32, #tpu.memory_space<vmem>>, vector<1x16x32xf32>
    %223 = vector.shape_cast %222 : vector<1x16x32xf32> to vector<16x32xf32>
    %cst_81 = arith.constant dense<0.000000e+00> : vector<16x32xf32>
    %224 = tpu.matmul %221, %223, %cst_81 {dimension_numbers = #tpu.dot_dimension_numbers<[1], [0], [0], [1], [0, 0, 1, 1], [], []>} : vector<16x16xf32>, vector<16x32xf32>, vector<16x32xf32> -> vector<16x32xf32>
    %225 = vector.extract_strided_slice %201 {offsets = [0, 16], sizes = [16, 16], strides = [1, 1]} : vector<16x96xf32> to vector<16x16xf32>
    %226 = vector.extract_strided_slice %201 {offsets = [0, 48], sizes = [16, 16], strides = [1, 1]} : vector<16x96xf32> to vector<16x16xf32>
    %227 = vector.extract_strided_slice %201 {offsets = [0, 80], sizes = [16, 16], strides = [1, 1]} : vector<16x96xf32> to vector<16x16xf32>
    %cst_82 = arith.constant dense<0.000000e+00> : vector<16x16xf32>
    %228 = tpu.matmul %225, %226, %cst_82 {dimension_numbers = #tpu.dot_dimension_numbers<[1], [1], [0], [0], [0, 0, 1, 0], [], []>} : vector<16x16xf32>, vector<16x16xf32>, vector<16x16xf32> -> vector<16x16xf32>
    %cst_83 = arith.constant 2.500000e-01 : f32
    %229 = vector.broadcast %cst_83 : f32 to vector<16x16xf32>
    %230 = arith.mulf %228, %229 : vector<16x16xf32>
    %231 = arith.addf %230, %2 : vector<16x16xf32>
    %cst_84 = arith.constant dense<0xFF800000> : vector<16xf32>
    %232 = vector.multi_reduction <maximumf>, %231, %cst_84 [1] : vector<16x16xf32> to vector<16xf32>
    %233 = vector.shape_cast %232 : vector<16xf32> to vector<16x1xf32>
    %234 = vector.broadcast %233 : vector<16x1xf32> to vector<16x16xf32>
    %235 = arith.subf %231, %234 : vector<16x16xf32>
    %236 = math.exp %235 : vector<16x16xf32>
    %cst_85 = arith.constant dense<0.000000e+00> : vector<16xf32>
    %237 = vector.multi_reduction <add>, %236, %cst_85 [1] : vector<16x16xf32> to vector<16xf32>
    %238 = vector.shape_cast %237 : vector<16xf32> to vector<16x1xf32>
    %cst_86 = arith.constant 9.99999993E-9 : f32
    %239 = vector.broadcast %cst_86 : f32 to vector<16x1xf32>
    %240 = arith.addf %238, %239 : vector<16x1xf32>
    %241 = tpu.reciprocal %240 {approx = true} : vector<16x1xf32> -> vector<16x1xf32>
    %242 = vector.broadcast %241 : vector<16x1xf32> to vector<16x16xf32>
    %243 = arith.mulf %236, %242 : vector<16x16xf32>
    %cst_87 = arith.constant dense<0.000000e+00> : vector<16x16xf32>
    %244 = tpu.matmul %243, %227, %cst_87 {dimension_numbers = #tpu.dot_dimension_numbers<[1], [0], [0], [1], [0, 0, 1, 1], [], []>} : vector<16x16xf32>, vector<16x16xf32>, vector<16x16xf32> -> vector<16x16xf32>
    %c1_88 = arith.constant 1 : index
    %c48_89 = arith.constant 48 : index
    %c0_90 = arith.constant 0 : index
    %245 = vector.load %arg3[%c1_88, %c48_89, %c0_90] : memref<2x360x128xf32, #tpu.memory_space<vmem>>, vector<1x16x32xf32>
    %246 = vector.shape_cast %245 : vector<1x16x32xf32> to vector<16x32xf32>
    %cst_91 = arith.constant dense<0.000000e+00> : vector<16x32xf32>
    %247 = tpu.matmul %244, %246, %cst_91 {dimension_numbers = #tpu.dot_dimension_numbers<[1], [0], [0], [1], [0, 0, 1, 1], [], []>} : vector<16x16xf32>, vector<16x32xf32>, vector<16x32xf32> -> vector<16x32xf32>
    %248 = arith.addf %224, %247 : vector<16x32xf32>
    %249 = vector.broadcast %190 : vector<1x32xf32> to vector<16x32xf32>
    %250 = arith.addf %248, %249 : vector<16x32xf32>
    %251 = arith.addf %250, %186 : vector<16x32xf32>
    %cst_92 = arith.constant dense<0.000000e+00> : vector<16xf32>
    %252 = vector.multi_reduction <add>, %251, %cst_92 [1] : vector<16x32xf32> to vector<16xf32>
    %253 = vector.shape_cast %252 : vector<16xf32> to vector<16x1xf32>
    %cst_93 = arith.constant 3.200000e+01 : f32
    %254 = vector.broadcast %cst_93 : f32 to vector<16x1xf32>
    %255 = arith.divf %253, %254 : vector<16x1xf32>
    %256 = arith.mulf %251, %251 : vector<16x32xf32>
    %cst_94 = arith.constant dense<0.000000e+00> : vector<16xf32>
    %257 = vector.multi_reduction <add>, %256, %cst_94 [1] : vector<16x32xf32> to vector<16xf32>
    %258 = vector.shape_cast %257 : vector<16xf32> to vector<16x1xf32>
    %cst_95 = arith.constant 3.200000e+01 : f32
    %259 = vector.broadcast %cst_95 : f32 to vector<16x1xf32>
    %260 = arith.divf %258, %259 : vector<16x1xf32>
    %261 = arith.mulf %255, %255 : vector<16x1xf32>
    %262 = arith.subf %260, %261 : vector<16x1xf32>
    %263 = vector.broadcast %255 : vector<16x1xf32> to vector<16x32xf32>
    %264 = arith.subf %251, %263 : vector<16x32xf32>
    %cst_96 = arith.constant 9.99999974E-6 : f32
    %265 = vector.broadcast %cst_96 : f32 to vector<16x1xf32>
    %266 = arith.addf %262, %265 : vector<16x1xf32>
    %267 = math.rsqrt %266 : vector<16x1xf32>
    %268 = vector.broadcast %267 : vector<16x1xf32> to vector<16x32xf32>
    %269 = arith.mulf %264, %268 : vector<16x32xf32>
    %270 = vector.broadcast %193 : vector<1x32xf32> to vector<16x32xf32>
    %271 = arith.mulf %269, %270 : vector<16x32xf32>
    %272 = vector.broadcast %194 : vector<1x32xf32> to vector<16x32xf32>
    %273 = arith.addf %271, %272 : vector<16x32xf32>
    %274 = vector.broadcast %6 : vector<16x1xf32> to vector<16x32xf32>
    %275 = arith.mulf %273, %274 : vector<16x32xf32>
    %c1_i32_97 = arith.constant 1 : i32
    %276 = tpu.dynamic_rotate %275 by %c1_i32_97 dim 0 : vector<16x32xf32>, i32 -> vector<16x32xf32>
    %277 = vector.broadcast %28 : vector<16x1xf32> to vector<16x32xf32>
    %278 = arith.mulf %276, %277 : vector<16x32xf32>
    %c15_i32_98 = arith.constant 15 : i32
    %279 = tpu.dynamic_rotate %275 by %c15_i32_98 dim 0 : vector<16x32xf32>, i32 -> vector<16x32xf32>
    %280 = vector.broadcast %32 : vector<16x1xf32> to vector<16x32xf32>
    %281 = arith.mulf %279, %280 : vector<16x32xf32>
    %c1_99 = arith.constant 1 : index
    %c72_100 = arith.constant 72 : index
    %c0_101 = arith.constant 0 : index
    %282 = vector.load %arg3[%c1_99, %c72_100, %c0_101] : memref<2x360x128xf32, #tpu.memory_space<vmem>>, vector<1x32x64xf32>
    %283 = vector.shape_cast %282 : vector<1x32x64xf32> to vector<32x64xf32>
    %cst_102 = arith.constant dense<0.000000e+00> : vector<16x64xf32>
    %284 = tpu.matmul %278, %283, %cst_102 {dimension_numbers = #tpu.dot_dimension_numbers<[1], [0], [0], [1], [0, 0, 1, 1], [], []>} : vector<16x32xf32>, vector<32x64xf32>, vector<16x64xf32> -> vector<16x64xf32>
    %c1_103 = arith.constant 1 : index
    %c104_104 = arith.constant 104 : index
    %c0_105 = arith.constant 0 : index
    %285 = vector.load %arg3[%c1_103, %c104_104, %c0_105] : memref<2x360x128xf32, #tpu.memory_space<vmem>>, vector<1x32x64xf32>
    %286 = vector.shape_cast %285 : vector<1x32x64xf32> to vector<32x64xf32>
    %cst_106 = arith.constant dense<0.000000e+00> : vector<16x64xf32>
    %287 = tpu.matmul %275, %286, %cst_106 {dimension_numbers = #tpu.dot_dimension_numbers<[1], [0], [0], [1], [0, 0, 1, 1], [], []>} : vector<16x32xf32>, vector<32x64xf32>, vector<16x64xf32> -> vector<16x64xf32>
    %288 = arith.addf %284, %287 : vector<16x64xf32>
    %c1_107 = arith.constant 1 : index
    %c136_108 = arith.constant 136 : index
    %c0_109 = arith.constant 0 : index
    %289 = vector.load %arg3[%c1_107, %c136_108, %c0_109] : memref<2x360x128xf32, #tpu.memory_space<vmem>>, vector<1x32x64xf32>
    %290 = vector.shape_cast %289 : vector<1x32x64xf32> to vector<32x64xf32>
    %cst_110 = arith.constant dense<0.000000e+00> : vector<16x64xf32>
    %291 = tpu.matmul %281, %290, %cst_110 {dimension_numbers = #tpu.dot_dimension_numbers<[1], [0], [0], [1], [0, 0, 1, 1], [], []>} : vector<16x32xf32>, vector<32x64xf32>, vector<16x64xf32> -> vector<16x64xf32>
    %292 = arith.addf %288, %291 : vector<16x64xf32>
    %293 = vector.broadcast %191 : vector<1x64xf32> to vector<16x64xf32>
    %294 = arith.addf %292, %293 : vector<16x64xf32>
    %cst_111 = arith.constant 0.000000e+00 : f32
    %295 = vector.broadcast %cst_111 : f32 to vector<16x64xf32>
    %296 = arith.maximumf %294, %295 : vector<16x64xf32>
    %c1_i32_112 = arith.constant 1 : i32
    %297 = tpu.dynamic_rotate %296 by %c1_i32_112 dim 0 : vector<16x64xf32>, i32 -> vector<16x64xf32>
    %298 = vector.broadcast %28 : vector<16x1xf32> to vector<16x64xf32>
    %299 = arith.mulf %297, %298 : vector<16x64xf32>
    %c15_i32_113 = arith.constant 15 : i32
    %300 = tpu.dynamic_rotate %296 by %c15_i32_113 dim 0 : vector<16x64xf32>, i32 -> vector<16x64xf32>
    %301 = vector.broadcast %32 : vector<16x1xf32> to vector<16x64xf32>
    %302 = arith.mulf %300, %301 : vector<16x64xf32>
    %c1_114 = arith.constant 1 : index
    %c168_115 = arith.constant 168 : index
    %c0_116 = arith.constant 0 : index
    %303 = vector.load %arg3[%c1_114, %c168_115, %c0_116] : memref<2x360x128xf32, #tpu.memory_space<vmem>>, vector<1x64x32xf32>
    %304 = vector.shape_cast %303 : vector<1x64x32xf32> to vector<64x32xf32>
    %cst_117 = arith.constant dense<0.000000e+00> : vector<16x32xf32>
    %305 = tpu.matmul %299, %304, %cst_117 {dimension_numbers = #tpu.dot_dimension_numbers<[1], [0], [0], [1], [0, 0, 1, 1], [], []>} : vector<16x64xf32>, vector<64x32xf32>, vector<16x32xf32> -> vector<16x32xf32>
    %c1_118 = arith.constant 1 : index
    %c232_119 = arith.constant 232 : index
    %c0_120 = arith.constant 0 : index
    %306 = vector.load %arg3[%c1_118, %c232_119, %c0_120] : memref<2x360x128xf32, #tpu.memory_space<vmem>>, vector<1x64x32xf32>
    %307 = vector.shape_cast %306 : vector<1x64x32xf32> to vector<64x32xf32>
    %cst_121 = arith.constant dense<0.000000e+00> : vector<16x32xf32>
    %308 = tpu.matmul %296, %307, %cst_121 {dimension_numbers = #tpu.dot_dimension_numbers<[1], [0], [0], [1], [0, 0, 1, 1], [], []>} : vector<16x64xf32>, vector<64x32xf32>, vector<16x32xf32> -> vector<16x32xf32>
    %309 = arith.addf %305, %308 : vector<16x32xf32>
    %c1_122 = arith.constant 1 : index
    %c296_123 = arith.constant 296 : index
    %c0_124 = arith.constant 0 : index
    %310 = vector.load %arg3[%c1_122, %c296_123, %c0_124] : memref<2x360x128xf32, #tpu.memory_space<vmem>>, vector<1x64x32xf32>
    %311 = vector.shape_cast %310 : vector<1x64x32xf32> to vector<64x32xf32>
    %cst_125 = arith.constant dense<0.000000e+00> : vector<16x32xf32>
    %312 = tpu.matmul %302, %311, %cst_125 {dimension_numbers = #tpu.dot_dimension_numbers<[1], [0], [0], [1], [0, 0, 1, 1], [], []>} : vector<16x64xf32>, vector<64x32xf32>, vector<16x32xf32> -> vector<16x32xf32>
    %313 = arith.addf %309, %312 : vector<16x32xf32>
    %314 = vector.broadcast %192 : vector<1x32xf32> to vector<16x32xf32>
    %315 = arith.addf %313, %314 : vector<16x32xf32>
    %316 = arith.addf %315, %275 : vector<16x32xf32>
    %cst_126 = arith.constant dense<0.000000e+00> : vector<16xf32>
    %317 = vector.multi_reduction <add>, %316, %cst_126 [1] : vector<16x32xf32> to vector<16xf32>
    %318 = vector.shape_cast %317 : vector<16xf32> to vector<16x1xf32>
    %cst_127 = arith.constant 3.200000e+01 : f32
    %319 = vector.broadcast %cst_127 : f32 to vector<16x1xf32>
    %320 = arith.divf %318, %319 : vector<16x1xf32>
    %321 = arith.mulf %316, %316 : vector<16x32xf32>
    %cst_128 = arith.constant dense<0.000000e+00> : vector<16xf32>
    %322 = vector.multi_reduction <add>, %321, %cst_128 [1] : vector<16x32xf32> to vector<16xf32>
    %323 = vector.shape_cast %322 : vector<16xf32> to vector<16x1xf32>
    %cst_129 = arith.constant 3.200000e+01 : f32
    %324 = vector.broadcast %cst_129 : f32 to vector<16x1xf32>
    %325 = arith.divf %323, %324 : vector<16x1xf32>
    %326 = arith.mulf %320, %320 : vector<16x1xf32>
    %327 = arith.subf %325, %326 : vector<16x1xf32>
    %328 = vector.broadcast %320 : vector<16x1xf32> to vector<16x32xf32>
    %329 = arith.subf %316, %328 : vector<16x32xf32>
    %cst_130 = arith.constant 9.99999974E-6 : f32
    %330 = vector.broadcast %cst_130 : f32 to vector<16x1xf32>
    %331 = arith.addf %327, %330 : vector<16x1xf32>
    %332 = math.rsqrt %331 : vector<16x1xf32>
    %333 = vector.broadcast %332 : vector<16x1xf32> to vector<16x32xf32>
    %334 = arith.mulf %329, %333 : vector<16x32xf32>
    %335 = vector.broadcast %195 : vector<1x32xf32> to vector<16x32xf32>
    %336 = arith.mulf %334, %335 : vector<16x32xf32>
    %337 = vector.broadcast %196 : vector<1x32xf32> to vector<16x32xf32>
    %338 = arith.addf %336, %337 : vector<16x32xf32>
    %339 = vector.broadcast %6 : vector<16x1xf32> to vector<16x32xf32>
    %340 = arith.mulf %338, %339 : vector<16x32xf32>
    %c0_131 = arith.constant 0 : index
    %c0_132 = arith.constant 0 : index
    %341 = vector.load %arg4[%c0_131, %c0_132] : memref<16x32xf32, #tpu.memory_space<vmem>>, vector<16x32xf32>
    tpu.vector_store %arg4[%c0_131, %c0_132], %340 {strides = array<i32>} : memref<16x32xf32, #tpu.memory_space<vmem>>, vector<16x32xf32>,
    return
  }
}

</mosaic_0001>

<llo_original>
// kernel: encoder_forward.1
$region0: #{encoder_forward.1}
  #allocation0 [shape = 'u32[]', space=smem, size = 0x4, offset = 0x4, fixed_abs, tag = 'smem constant byte address 0x4 - core index']
  #allocation1 [shape = 'u32[144,128]{1,0:T(1,128)}', space=vmem, size = 0x12000, scoped, tag = 'internal scratch']
  %s0 = inlined_call_operand.vmem [shape: s32[16,2], index: 0, kind: input, shape index: {}]
  %s1 = inlined_call_operand.vmem [shape: f32[16,16], index: 1, kind: input, shape index: {}]
  %s2 = inlined_call_operand.vmem [shape: f32[48,32], index: 2, kind: input, shape index: {}]
  %s3 = inlined_call_operand.hbm [shape: f32[2,360,128], index: 3, kind: input, shape index: {}]
  %s4 = inlined_call_operand.hbm [shape: f32[16,32], index: 4, kind: output, shape index: {}]
  %s5 = sld [smem:[#allocation0]]
  $region30: #{encoder_forward.1} parent=0
    _
  %s7 = ssub.s32 1, %s5
  %s8 = scalar_select 0, %s7, %s5
  $region1: #{encoder_forward.1} parent=0
    #allocation2 [shape = 'u8[368640]{0}', space=vmem, size = 0x5a000, scoped, tag = 'input window, operand 3, single buffered']
    #allocation3 [shape = 's32[1]{0}', space=sflag, size = 0x4, scoped, tag = 'scoped memory for encoder_forward.1']
    #allocation4 [shape = 's32[1]{0}', space=sflag, size = 0x4, scoped, tag = 'scoped memory for encoder_forward.1']
    #allocation5 [shape = 'u8[8192]{0}', space=vmem, size = 0x2000, scoped, tag = 'output window, operand 0, single buffered']
    %9 = vsyncpa [#allocation3], 0
    %10 = vsyncpa [#allocation4], 0
    // Predicated region
    $region2: #{encoder_forward.1} parent=1 // pred_check
      _
    $region3: #{encoder_forward.1} parent=1 // pred_check_branch
      %12 = sbr.rel (0) target = $region5
    $region4: #{encoder_forward.1} parent=1 // pred_region
      _
    $region5: #{encoder_forward.1} parent=1 // pred_fallthru
      _
    // Predicated region
    $region6: #{encoder_forward.1} parent=1 // pred_check
      _
    $region7: #{encoder_forward.1} parent=1 // pred_check_branch
      %14 = sbr.rel (0) target = $region9
    $region8: #{encoder_forward.1} parent=1 // pred_region
      _
    $region9: #{encoder_forward.1} parent=1 // pred_fallthru
      _
    // Predicated region
    $region10: #{encoder_forward.1} parent=1 // pred_check
      _
    $region11: #{encoder_forward.1} parent=1 // pred_check_branch
      %16 = sbr.rel (0) target = $region13
    $region12: #{encoder_forward.1} parent=1 // pred_region
      _
    $region13: #{encoder_forward.1} parent=1 // pred_fallthru
      _
    // Predicated region
    $region14: #{encoder_forward.1} parent=1 // pred_check
      _
    $region15: #{encoder_forward.1} parent=1 // pred_check_branch
      %18 = sbr.rel (0) target = $region17
    $region16: #{encoder_forward.1} parent=1 // pred_region
      %s20 = ssub.s32 11520, 11520
      %21 = vsyncadd [#allocation3], %s20
      %s22 = sshll.u32 [#allocation2], 4
      %s23 = int_to_ptr.vmem [resolvable:$true] %s22
      %28 = dma.hbm_to_vmem [thread:$0]  %s3, 11520, %s23, [#allocation3], 128, 128, 8
    $region17: #{encoder_forward.1} parent=1 // pred_fallthru
      _
    // Predicated region
    $region18: #{encoder_forward.1} parent=1 // pred_check
      _
    $region19: #{encoder_forward.1} parent=1 // pred_check_branch
      %30 = sbr.rel (0) target = $region21
    $region20: #{encoder_forward.1} parent=1 // pred_region
      %31 = dma.done [#allocation3], 11520
    $region21: #{encoder_forward.1} parent=1 // pred_fallthru
      _
    %v32 = vld [vmem:[%s0] sm:$0xff]
    %v33 = vld [vmem:[%s0 + $0x8] sm:$0xff]
    %v34 = vld [vmem:[%s1] sm:$0xff]
    %v35 = vld [vmem:[%s1 + $0x8] sm:$0xff]
    %vm36 = vcmp.ne.s32.totalorder %v32, 0
    %vm37 = vcmp.ne.s32.totalorder %v33, 0
    %v38 = vsel %vm36, 1, 0
    %v39 = vsel %vm37, 1, 0
    %v40 = vcvt.s32.f32 %v38
    %v41 = vcvt.s32.f32 %v39
    %v42 = vlaneseq
    %v43 = vand.u32 %v42, 127
    %44 = vset.pattern.permute.xlu0 0
    %45 = vperm.xlu0 %44, %v32
    %v46 = vpop.permute.xlu0 %45
    %47 = vset.pattern.permute.xlu0 0
    %48 = vperm.xlu0 %47, %v33
    %v49 = vpop.permute.xlu0 %48
    %vm50 = vcmp.eq.s32.totalorder %v43, %v46
    %vm51 = vcmp.eq.s32.totalorder %v43, %v49
    %v52 = vsel %vm50, 1, 0
    %v53 = vsel %vm51, 1, 0
    %v54 = vcvt.s32.f32 %v52
    %v55 = vcvt.s32.f32 %v53
    %56 = vset.pattern.permute.xlu0 1
    %57 = vperm.xlu0 %56, %v32
    %v58 = vpop.permute.xlu0 %57
    %59 = vset.pattern.permute.xlu0 1
    %60 = vperm.xlu0 %59, %v33
    %v61 = vpop.permute.xlu0 %60
    %vm62 = vcmp.eq.s32.totalorder %v43, %v58
    %vm63 = vcmp.eq.s32.totalorder %v43, %v61
    %v64 = vsel %vm62, 1, 0
    %v65 = vsel %vm63, 1, 0
    %v66 = vcvt.s32.f32 %v64
    %v67 = vcvt.s32.f32 %v65
    %v68 = vld [vmem:[%s2] sm:$0xff]
    %v69 = vld [vmem:[%s2 + $0x8] sm:$0xff]
    %v70 = vld [vmem:[%s2 + $0x10] sm:$0xf]
    %v71 = vld [vmem:[%s2 + $0x18] sm:$0xff]
    %v72 = vld [vmem:[%s2 + $0x20] sm:$0xff]
    %v73 = vld [vmem:[%s2 + $0x28] sm:$0x1]
    %vm74 = vcmask 138240
    %v76 = vsel %vm74, %v66, 0
    %v79 = vsel %vm74, %v67, 0
    %vm81 = vcmask 1040384
    %v83 = vsel %vm81, %v73, 0
    %85 = vmatprep.subr.mxu0 0.0
    %86 = vmatpush1.msra.mxu0 %v71
    %87 = vmatprep.subr.mxu0 0.0
    %88 = vmatpush1.msra.mxu0 %v72
    %89 = vmatprep.subr.mxu0 0.0
    %90 = vmatpush1.msra.mxu0 %v83
    %91 = vmatprep.subr.mxu0 0.0
    %92 = vmatpush1.msra.mxu0 0.0
    %93 = vmatprep.subr.mxu0 0.0
    %94 = vmatpush1.msra.mxu0 0.0
    %95 = vmatprep.subr.mxu0 0.0
    %96 = vmatpush1.msra.mxu0 0.0
    %97 = vmatprep.subr.mxu0 0.0
    %98 = vmatpush1.msra.mxu0 0.0
    %99 = vmatprep.subr.mxu0 0.0
    %100 = vmatpush1.msra.mxu0 0.0
    %101 = vmatprep.subr.mxu0 0.0
    %102 = vmatpush1.msra.mxu0 0.0
    %103 = vmatprep.subr.mxu0 0.0
    %104 = vmatpush1.msra.mxu0 0.0
    %105 = vmatprep.subr.mxu0 0.0
    %106 = vmatpush1.msra.mxu0 0.0
    %107 = vmatprep.subr.mxu0 0.0
    %108 = vmatpush1.msra.mxu0 0.0
    %109 = vmatprep.subr.mxu0 0.0
    %110 = vmatpush1.msra.mxu0 0.0
    %111 = vmatprep.subr.mxu0 0.0
    %112 = vmatpush1.msra.mxu0 0.0
    %113 = vmatprep.subr.mxu0 0.0
    %114 = vmatpush1.msra.mxu0 0.0
    %115 = vmatprep.subr.mxu0 0.0
    %116 = vmatpush1.msra.mxu0 0.0
    %117 = vmatprep.subr.mxu0 0.0
    %118 = vmatpush1.msra.mxu0 0.0
    %119 = vmatprep.subr.mxu0 0.0
    %120 = vmatpush1.msra.mxu0 0.0
    %121 = vmatprep.subr.mxu0 0.0
    %122 = vmatpush1.msra.mxu0 0.0
    %123 = vmatprep.subr.mxu0 0.0
    %124 = vmatpush1.msra.mxu0 0.0
    %125 = vmatprep.subr.mxu0 0.0
    %126 = vmatpush1.msra.mxu0 0.0
    %127 = vmatprep.subr.mxu0 0.0
    %128 = vmatpush1.msra.mxu0 0.0
    %129 = vmatprep.subr.mxu0 0.0
    %130 = vmatpush1.msra.mxu0 0.0
    %131 = vmatprep.subr.mxu0 0.0
    %132 = vmatpush1.msra.mxu0 0.0
    %133 = vmatprep.subr.mxu0 0.0
    %134 = vmatpush1.msra.mxu0 0.0
    %135 = vmatprep.subr.mxu0 0.0
    %136 = vmatpush1.msra.mxu0 0.0
    %137 = vmatprep.subr.mxu0 0.0
    %138 = vmatpush1.msra.mxu0 0.0
    %139 = vmatprep.subr.mxu0 0.0
    %140 = vmatpush1.msra.mxu0 0.0
    %141 = vmatprep.subr.mxu0 0.0
    %142 = vmatpush1.msra.mxu0 0.0
    %143 = vmatprep.subr.mxu0 0.0
    %144 = vmatpush1.msra.mxu0 0.0
    %145 = vmatprep.subr.mxu0 0.0
    %146 = vmatpush1.msra.mxu0 0.0
    %147 = vmatprep.subr.mxu0 0.0
    %148 = vmatpush1.msra.mxu0 0.0
    %149 = vmatprep.mubr.f32.mxu0 0.0
    %150 = vmatmul.mubr.f32.gmra.mrb[0].mxu0 %v76
    %v151 = vpop.f32.mrb[0].mxu0
    %v152 = vadd.f32 0.0, %v151
    %v153 = vpop.f32.mrb[0].mxu0
    %154 = vmatprep.mubr.f32.mxu0 0.0
    %155 = vmatmul.mubr.f32.gmra.mrb[0].mxu0 %v79
    %v156 = vpop.f32.mrb[0].mxu0
    %v157 = vadd.f32 0.0, %v156
    %v158 = vpop.f32.mrb[0].mxu0
    %159 = vdwg.mxu0
    %vm160 = vcmask 162816
    %v162 = vsel %vm160, %v54, 0
    %v165 = vsel %vm160, %v55, 0
    %vm167 = vcmask 1043456
    %v169 = vsel %vm167, %v70, 0
    %171 = vmatprep.subr.mxu0 0.0
    %172 = vmatpush1.msra.mxu0 %v68
    %173 = vmatprep.subr.mxu0 0.0
    %174 = vmatpush1.msra.mxu0 %v69
    %175 = vmatprep.subr.mxu0 0.0
    %176 = vmatpush1.msra.mxu0 %v169
    %177 = vmatprep.subr.mxu0 0.0
    %178 = vmatpush1.msra.mxu0 0.0
    %179 = vmatprep.subr.mxu0 0.0
    %180 = vmatpush1.msra.mxu0 0.0
    %181 = vmatprep.subr.mxu0 0.0
    %182 = vmatpush1.msra.mxu0 0.0
    %183 = vmatprep.subr.mxu0 0.0
    %184 = vmatpush1.msra.mxu0 0.0
    %185 = vmatprep.subr.mxu0 0.0
    %186 = vmatpush1.msra.mxu0 0.0
    %187 = vmatprep.subr.mxu0 0.0
    %188 = vmatpush1.msra.mxu0 0.0
    %189 = vmatprep.subr.mxu0 0.0
    %190 = vmatpush1.msra.mxu0 0.0
    %191 = vmatprep.subr.mxu0 0.0
    %192 = vmatpush1.msra.mxu0 0.0
    %193 = vmatprep.subr.mxu0 0.0
    %194 = vmatpush1.msra.mxu0 0.0
    %195 = vmatprep.subr.mxu0 0.0
    %196 = vmatpush1.msra.mxu0 0.0
    %197 = vmatprep.subr.mxu0 0.0
    %198 = vmatpush1.msra.mxu0 0.0
    %199 = vmatprep.subr.mxu0 0.0
    %200 = vmatpush1.msra.mxu0 0.0
    %201 = vmatprep.subr.mxu0 0.0
    %202 = vmatpush1.msra.mxu0 0.0
    %203 = vmatprep.subr.mxu0 0.0
    %204 = vmatpush1.msra.mxu0 0.0
    %205 = vmatprep.subr.mxu0 0.0
    %206 = vmatpush1.msra.mxu0 0.0
    %207 = vmatprep.subr.mxu0 0.0
    %208 = vmatpush1.msra.mxu0 0.0
    %209 = vmatprep.subr.mxu0 0.0
    %210 = vmatpush1.msra.mxu0 0.0
    %211 = vmatprep.subr.mxu0 0.0
    %212 = vmatpush1.msra.mxu0 0.0
    %213 = vmatprep.subr.mxu0 0.0
    %214 = vmatpush1.msra.mxu0 0.0
    %215 = vmatprep.subr.mxu0 0.0
    %216 = vmatpush1.msra.mxu0 0.0
    %217 = vmatprep.subr.mxu0 0.0
    %218 = vmatpush1.msra.mxu0 0.0
    %219 = vmatprep.subr.mxu0 0.0
    %220 = vmatpush1.msra.mxu0 0.0
    %221 = vmatprep.subr.mxu0 0.0
    %222 = vmatpush1.msra.mxu0 0.0
    %223 = vmatprep.subr.mxu0 0.0
    %224 = vmatpush1.msra.mxu0 0.0
    %225 = vmatprep.subr.mxu0 0.0
    %226 = vmatpush1.msra.mxu0 0.0
    %227 = vmatprep.subr.mxu0 0.0
    %228 = vmatpush1.msra.mxu0 0.0
    %229 = vmatprep.subr.mxu0 0.0
    %230 = vmatpush1.msra.mxu0 0.0
    %231 = vmatprep.subr.mxu0 0.0
    %232 = vmatpush1.msra.mxu0 0.0
    %233 = vmatprep.subr.mxu0 0.0
    %234 = vmatpush1.msra.mxu0 0.0
    %235 = vmatprep.mubr.f32.mxu0 0.0
    %236 = vmatmul.mubr.f32.gmra.mrb[0].mxu0 %v162
    %v237 = vpop.f32.mrb[0].mxu0
    %v238 = vadd.f32 %v152, %v237
    %v239 = vpop.f32.mrb[0].mxu0
    %240 = vmatprep.mubr.f32.mxu0 0.0
    %241 = vmatmul.mubr.f32.gmra.mrb[0].mxu0 %v165
    %v242 = vpop.f32.mrb[0].mxu0
    %v243 = vadd.f32 %v157, %v242
    %v244 = vpop.f32.mrb[0].mxu0
    %245 = vdwg.mxu0
    %v246 = vlaneseq
    %v247 = vshrl.u32 %v246, 7
    %v248 = vadd.s32 %v247, 8
    %v249 = vand.u32 %v247, 7
    %v250 = vand.u32 %v248, 7
    %vm251 = vcmp.ne.s32.totalorder %v249, 0
    %vm252 = vcmp.ne.s32.totalorder %v250, 0
    %v253 = vsel %vm251, 1, 0
    %v254 = vsel %vm252, 1, 0
    %v255 = vcvt.s32.f32 %v253
    %v256 = vcvt.s32.f32 %v254
    %vm257 = vcmp.ne.s32.totalorder %v249, 7
    %vm258 = vcmp.ne.s32.totalorder %v250, 7
    %v259 = vsel %vm257, 1, 0
    %v260 = vsel %vm258, 1, 0
    %v261 = vcvt.s32.f32 %v259
    %v262 = vcvt.s32.f32 %v260
    %v263 = vld [vmem:[#allocation2 + $0x40] sm:$0xff]
    %v264 = vld [vmem:[#allocation2] sm:$0xff]
    %v265 = vld [vmem:[#allocation2 + $0x8] sm:$0xff]
    %v266 = vld [vmem:[#allocation2 + $0x10] sm:$0xff]
    %v267 = vld [vmem:[#allocation2 + $0x18] sm:$0xff]
    %v268 = vlaneseq
    %v269 = vshrl.u32 %v268, 7
    %v270 = vsub.s32 0, %v269
    %v271 = vrot.slane %v263, %v270
    %vm272 = vcmask 261120
    %v274 = vsel %vm272, %v238, 0
    %v277 = vsel %vm272, %v243, 0
    %279 = vmatprep.subr.mxu0 0.0
    %280 = vmatpush1.msra.mxu0 %v264
    %281 = vmatprep.subr.mxu0 0.0
    %282 = vmatpush1.msra.mxu0 %v265
    %283 = vmatprep.subr.mxu0 0.0
    %284 = vmatpush1.msra.mxu0 %v266
    %285 = vmatprep.subr.mxu0 0.0
    %286 = vmatpush1.msra.mxu0 %v267
    %287 = vmatprep.subr.mxu0 0.0
    %288 = vmatpush1.msra.mxu0 0.0
    %289 = vmatprep.subr.mxu0 0.0
    %290 = vmatpush1.msra.mxu0 0.0
    %291 = vmatprep.subr.mxu0 0.0
    %292 = vmatpush1.msra.mxu0 0.0
    %293 = vmatprep.subr.mxu0 0.0
    %294 = vmatpush1.msra.mxu0 0.0
    %295 = vmatprep.subr.mxu0 0.0
    %296 = vmatpush1.msra.mxu0 0.0
    %297 = vmatprep.subr.mxu0 0.0
    %298 = vmatpush1.msra.mxu0 0.0
    %299 = vmatprep.subr.mxu0 0.0
    %300 = vmatpush1.msra.mxu0 0.0
    %301 = vmatprep.subr.mxu0 0.0
    %302 = vmatpush1.msra.mxu0 0.0
    %303 = vmatprep.subr.mxu0 0.0
    %304 = vmatpush1.msra.mxu0 0.0
    %305 = vmatprep.subr.mxu0 0.0
    %306 = vmatpush1.msra.mxu0 0.0
    %307 = vmatprep.subr.mxu0 0.0
    %308 = vmatpush1.msra.mxu0 0.0
    %309 = vmatprep.subr.mxu0 0.0
    %310 = vmatpush1.msra.mxu0 0.0
    %311 = vmatprep.subr.mxu0 0.0
    %312 = vmatpush1.msra.mxu0 0.0
    %313 = vmatprep.subr.mxu0 0.0
    %314 = vmatpush1.msra.mxu0 0.0
    %315 = vmatprep.subr.mxu0 0.0
    %316 = vmatpush1.msra.mxu0 0.0
    %317 = vmatprep.subr.mxu0 0.0
    %318 = vmatpush1.msra.mxu0 0.0
    %319 = vmatprep.subr.mxu0 0.0
    %320 = vmatpush1.msra.mxu0 0.0
    %321 = vmatprep.subr.mxu0 0.0
    %322 = vmatpush1.msra.mxu0 0.0
    %323 = vmatprep.subr.mxu0 0.0
    %324 = vmatpush1.msra.mxu0 0.0
    %325 = vmatprep.subr.mxu0 0.0
    %326 = vmatpush1.msra.mxu0 0.0
    %327 = vmatprep.subr.mxu0 0.0
    %328 = vmatpush1.msra.mxu0 0.0
    %329 = vmatprep.subr.mxu0 0.0
    %330 = vmatpush1.msra.mxu0 0.0
    %331 = vmatprep.subr.mxu0 0.0
    %332 = vmatpush1.msra.mxu0 0.0
    %333 = vmatprep.subr.mxu0 0.0
    %334 = vmatpush1.msra.mxu0 0.0
    %335 = vmatprep.subr.mxu0 0.0
    %336 = vmatpush1.msra.mxu0 0.0
    %337 = vmatprep.subr.mxu0 0.0
    %338 = vmatpush1.msra.mxu0 0.0
    %339 = vmatprep.subr.mxu0 0.0
    %340 = vmatpush1.msra.mxu0 0.0
    %341 = vmatprep.subr.mxu0 0.0
    %342 = vmatpush1.msra.mxu0 0.0
    %343 = vmatprep.mubr.f32.mxu0 0.0
    %344 = vmatmul.mubr.f32.gmra.mrb[0].mxu0 %v274
    %v345 = vpop.f32.mrb[0].mxu0
    %v346 = vadd.f32 %v271, %v345
    %v347 = vpop.f32.mrb[0].mxu0
    %348 = vmatprep.mubr.f32.mxu0 0.0
    %349 = vmatmul.mubr.f32.gmra.mrb[0].mxu0 %v277
    %v350 = vpop.f32.mrb[0].mxu0
    %v351 = vadd.f32 %v271, %v350
    %v352 = vpop.f32.mrb[0].mxu0
    %353 = vdwg.mxu0
    %356 = vrot.lane.b32.xlu0 %v346, 96
    %v357 = vpop.permute.xlu0 %356
    %358 = vrot.lane.b32.xlu0 %v351, 96
    %v359 = vpop.permute.xlu0 %358
    %vm360 = vcmask 130048
    %v361 = vsel %vm360, %v346, 0
    %v363 = vsel %vm360, %v351, 0
    %v365 = vsel %vm360, %v357, 0
    %v367 = vsel %vm360, %v359, 0
    %369 = vmatprep.subr.mxu0 0.0
    %370 = vmatpush1.xpose.msra.mxu0 %v365
    %371 = vmatprep.subr.mxu0 0.0
    %372 = vmatpush1.xpose.msra.mxu0 %v367
    %373 = vmatprep.subr.mxu0 0.0
    %374 = vmatpush1.xpose.msra.mxu0 0.0
    %375 = vmatprep.subr.mxu0 0.0
    %376 = vmatpush1.xpose.msra.mxu0 0.0
    %377 = vmatprep.subr.mxu0 0.0
    %378 = vmatpush1.xpose.msra.mxu0 0.0
    %379 = vmatprep.subr.mxu0 0.0
    %380 = vmatpush1.xpose.msra.mxu0 0.0
    %381 = vmatprep.subr.mxu0 0.0
    %382 = vmatpush1.xpose.msra.mxu0 0.0
    %383 = vmatprep.subr.mxu0 0.0
    %384 = vmatpush1.xpose.msra.mxu0 0.0
    %385 = vmatprep.subr.mxu0 0.0
    %386 = vmatpush1.xpose.msra.mxu0 0.0
    %387 = vmatprep.subr.mxu0 0.0
    %388 = vmatpush1.xpose.msra.mxu0 0.0
    %389 = vmatprep.subr.mxu0 0.0
    %390 = vmatpush1.xpose.msra.mxu0 0.0
    %391 = vmatprep.subr.mxu0 0.0
    %392 = vmatpush1.xpose.msra.mxu0 0.0
    %393 = vmatprep.subr.mxu0 0.0
    %394 = vmatpush1.xpose.msra.mxu0 0.0
    %395 = vmatprep.subr.mxu0 0.0
    %396 = vmatpush1.xpose.msra.mxu0 0.0
    %397 = vmatprep.subr.mxu0 0.0
    %398 = vmatpush1.xpose.msra.mxu0 0.0
    %399 = vmatprep.subr.mxu0 0.0
    %400 = vmatpush1.xpose.msra.mxu0 0.0
    %401 = vmatprep.subr.mxu0 0.0
    %402 = vmatpush1.xpose.msra.mxu0 0.0
    %403 = vmatprep.subr.mxu0 0.0
    %404 = vmatpush1.xpose.msra.mxu0 0.0
    %405 = vmatprep.subr.mxu0 0.0
    %406 = vmatpush1.xpose.msra.mxu0 0.0
    %407 = vmatprep.subr.mxu0 0.0
    %408 = vmatpush1.xpose.msra.mxu0 0.0
    %409 = vmatprep.subr.mxu0 0.0
    %410 = vmatpush1.xpose.msra.mxu0 0.0
    %411 = vmatprep.subr.mxu0 0.0
    %412 = vmatpush1.xpose.msra.mxu0 0.0
    %413 = vmatprep.subr.mxu0 0.0
    %414 = vmatpush1.xpose.msra.mxu0 0.0
    %415 = vmatprep.subr.mxu0 0.0
    %416 = vmatpush1.xpose.msra.mxu0 0.0
    %417 = vmatprep.subr.mxu0 0.0
    %418 = vmatpush1.xpose.msra.mxu0 0.0
    %419 = vmatprep.subr.mxu0 0.0
    %420 = vmatpush1.xpose.msra.mxu0 0.0
    %421 = vmatprep.subr.mxu0 0.0
    %422 = vmatpush1.xpose.msra.mxu0 0.0
    %423 = vmatprep.subr.mxu0 0.0
    %424 = vmatpush1.xpose.msra.mxu0 0.0
    %425 = vmatprep.subr.mxu0 0.0
    %426 = vmatpush1.xpose.msra.mxu0 0.0
    %427 = vmatprep.subr.mxu0 0.0
    %428 = vmatpush1.xpose.msra.mxu0 0.0
    %429 = vmatprep.subr.mxu0 0.0
    %430 = vmatpush1.xpose.msra.mxu0 0.0
    %431 = vmatprep.subr.mxu0 0.0
    %432 = vmatpush1.xpose.msra.mxu0 0.0
    %433 = vmatprep.mubr.f32.mxu0 0.0
    %434 = vmatmul.mubr.f32.gmra.mrb[0].mxu0 %v361
    %v435 = vpop.f32.mrb[0].mxu0
    %v436 = vadd.f32 0.0, %v435
    %v437 = vpop.f32.mrb[0].mxu0
    %438 = vmatprep.mubr.f32.mxu0 0.0
    %439 = vmatmul.mubr.f32.gmra.mrb[0].mxu0 %v363
    %v440 = vpop.f32.mrb[0].mxu0
    %v441 = vadd.f32 0.0, %v440
    %v442 = vpop.f32.mrb[0].mxu0
    %443 = vdwg.mxu0
    %v444 = vmul.f32 %v436, 0.25
    %v445 = vmul.f32 %v441, 0.25
    %v446 = vadd.f32 %v444, %v34
    %v447 = vadd.f32 %v445, %v35
    %v448 = vsel %vm360, %v446, -inf
    %449 = vmax.xlane.f32.xlu0 %v448
    %v450 = vpop.xlane.xlu0 %449
    %v451 = vsel %vm360, %v447, -inf
    %452 = vmax.xlane.f32.xlu0 %v451
    %v453 = vpop.xlane.xlu0 %452
    %v454 = vsub.f32 %v446, %v450
    %v455 = vsub.f32 %v447, %v453
    %v456 = vmul.f32 %v454, 1.442695
    %v457 = vpow.pop %v456
    %v458 = vmul.f32 %v455, 1.442695
    %v459 = vpow.pop %v458
    %v460 = vsel %vm360, %v457, 0.0
    %461 = vadd.xlane.f32.xlu0 %v460
    %v462 = vpop.xlane.xlu0 %461
    %v463 = vsel %vm360, %v459, 0.0
    %464 = vadd.xlane.f32.xlu0 %v463
    %v465 = vpop.xlane.xlu0 %464
    %v466 = vadd.f32 %v462, 1e-08
    %v467 = vadd.f32 %v465, 1e-08
    %v468 = vrcp.pop %v466
    %v469 = vrcp.pop %v467
    %v470 = vmul.f32 %v457, %v468
    %v471 = vmul.f32 %v459, %v469
    %472 = vrot.lane.b32.xlu0 %v346, 64
    %v473 = vpop.permute.xlu0 %472
    %474 = vrot.lane.b32.xlu0 %v351, 64
    %v475 = vpop.permute.xlu0 %474
    %v479 = vsel %vm360, %v470, 0
    %v482 = vsel %vm360, %v471, 0
    %484 = vmatprep.subr.mxu0 0.0
    %485 = vmatpush1.msra.mxu0 %v473
    %486 = vmatprep.subr.mxu0 0.0
    %487 = vmatpush1.msra.mxu0 %v475
    %488 = vmatprep.subr.mxu0 0.0
    %489 = vmatpush1.msra.mxu0 0.0
    %490 = vmatprep.subr.mxu0 0.0
    %491 = vmatpush1.msra.mxu0 0.0
    %492 = vmatprep.subr.mxu0 0.0
    %493 = vmatpush1.msra.mxu0 0.0
    %494 = vmatprep.subr.mxu0 0.0
    %495 = vmatpush1.msra.mxu0 0.0
    %496 = vmatprep.subr.mxu0 0.0
    %497 = vmatpush1.msra.mxu0 0.0
    %498 = vmatprep.subr.mxu0 0.0
    %499 = vmatpush1.msra.mxu0 0.0
    %500 = vmatprep.subr.mxu0 0.0
    %501 = vmatpush1.msra.mxu0 0.0
    %502 = vmatprep.subr.mxu0 0.0
    %503 = vmatpush1.msra.mxu0 0.0
    %504 = vmatprep.subr.mxu0 0.0
    %505 = vmatpush1.msra.mxu0 0.0
    %506 = vmatprep.subr.mxu0 0.0
    %507 = vmatpush1.msra.mxu0 0.0
    %508 = vmatprep.subr.mxu0 0.0
    %509 = vmatpush1.msra.mxu0 0.0
    %510 = vmatprep.subr.mxu0 0.0
    %511 = vmatpush1.msra.mxu0 0.0
    %512 = vmatprep.subr.mxu0 0.0
    %513 = vmatpush1.msra.mxu0 0.0
    %514 = vmatprep.subr.mxu0 0.0
    %515 = vmatpush1.msra.mxu0 0.0
    %516 = vmatprep.subr.mxu0 0.0
    %517 = vmatpush1.msra.mxu0 0.0
    %518 = vmatprep.subr.mxu0 0.0
    %519 = vmatpush1.msra.mxu0 0.0
    %520 = vmatprep.subr.mxu0 0.0
    %521 = vmatpush1.msra.mxu0 0.0
    %522 = vmatprep.subr.mxu0 0.0
    %523 = vmatpush1.msra.mxu0 0.0
    %524 = vmatprep.subr.mxu0 0.0
    %525 = vmatpush1.msra.mxu0 0.0
    %526 = vmatprep.subr.mxu0 0.0
    %527 = vmatpush1.msra.mxu0 0.0
    %528 = vmatprep.subr.mxu0 0.0
    %529 = vmatpush1.msra.mxu0 0.0
    %530 = vmatprep.subr.mxu0 0.0
    %531 = vmatpush1.msra.mxu0 0.0
    %532 = vmatprep.subr.mxu0 0.0
    %533 = vmatpush1.msra.mxu0 0.0
    %534 = vmatprep.subr.mxu0 0.0
    %535 = vmatpush1.msra.mxu0 0.0
    %536 = vmatprep.subr.mxu0 0.0
    %537 = vmatpush1.msra.mxu0 0.0
    %538 = vmatprep.subr.mxu0 0.0
    %539 = vmatpush1.msra.mxu0 0.0
    %540 = vmatprep.subr.mxu0 0.0
    %541 = vmatpush1.msra.mxu0 0.0
    %542 = vmatprep.subr.mxu0 0.0
    %543 = vmatpush1.msra.mxu0 0.0
    %544 = vmatprep.subr.mxu0 0.0
    %545 = vmatpush1.msra.mxu0 0.0
    %546 = vmatprep.subr.mxu0 0.0
    %547 = vmatpush1.msra.mxu0 0.0
    %548 = vmatprep.mubr.f32.mxu0 0.0
    %549 = vmatmul.mubr.f32.gmra.mrb[0].mxu0 %v479
    %v550 = vpop.f32.mrb[0].mxu0
    %v551 = vadd.f32 0.0, %v550
    %v552 = vpop.f32.mrb[0].mxu0
    %553 = vmatprep.mubr.f32.mxu0 0.0
    %554 = vmatmul.mubr.f32.gmra.mrb[0].mxu0 %v482
    %v555 = vpop.f32.mrb[0].mxu0
    %v556 = vadd.f32 0.0, %v555
    %v557 = vpop.f32.mrb[0].mxu0
    %558 = vdwg.mxu0
    %v559 = vld [vmem:[#allocation2 + $0x20] sm:$0xff]
    %v560 = vld [vmem:[#allocation2 + $0x28] sm:$0xff]
    %561 = vrot.lane.b32.xlu0 %v346, 112
    %v562 = vpop.permute.xlu0 %561
    %563 = vrot.lane.b32.xlu0 %v351, 112
    %v564 = vpop.permute.xlu0 %563
    %565 = vrot.lane.b32.xlu0 %v346, 80
    %v566 = vpop.permute.xlu0 %565
    %567 = vrot.lane.b32.xlu0 %v351, 80
    %v568 = vpop.permute.xlu0 %567
    %v569 = vsel %vm360, %v562, 0
    %v571 = vsel %vm360, %v564, 0
    %v573 = vsel %vm360, %v566, 0
    %v575 = vsel %vm360, %v568, 0
    %577 = vmatprep.subr.mxu0 0.0
    %578 = vmatpush1.xpose.msra.mxu0 %v573
    %579 = vmatprep.subr.mxu0 0.0
    %580 = vmatpush1.xpose.msra.mxu0 %v575
    %581 = vmatprep.subr.mxu0 0.0
    %582 = vmatpush1.xpose.msra.mxu0 0.0
    %583 = vmatprep.subr.mxu0 0.0
    %584 = vmatpush1.xpose.msra.mxu0 0.0
    %585 = vmatprep.subr.mxu0 0.0
    %586 = vmatpush1.xpose.msra.mxu0 0.0
    %587 = vmatprep.subr.mxu0 0.0
    %588 = vmatpush1.xpose.msra.mxu0 0.0
    %589 = vmatprep.subr.mxu0 0.0
    %590 = vmatpush1.xpose.msra.mxu0 0.0
    %591 = vmatprep.subr.mxu0 0.0
    %592 = vmatpush1.xpose.msra.mxu0 0.0
    %593 = vmatprep.subr.mxu0 0.0
    %594 = vmatpush1.xpose.msra.mxu0 0.0
    %595 = vmatprep.subr.mxu0 0.0
    %596 = vmatpush1.xpose.msra.mxu0 0.0
    %597 = vmatprep.subr.mxu0 0.0
    %598 = vmatpush1.xpose.msra.mxu0 0.0
    %599 = vmatprep.subr.mxu0 0.0
    %600 = vmatpush1.xpose.msra.mxu0 0.0
    %601 = vmatprep.subr.mxu0 0.0
    %602 = vmatpush1.xpose.msra.mxu0 0.0
    %603 = vmatprep.subr.mxu0 0.0
    %604 = vmatpush1.xpose.msra.mxu0 0.0
    %605 = vmatprep.subr.mxu0 0.0
    %606 = vmatpush1.xpose.msra.mxu0 0.0
    %607 = vmatprep.subr.mxu0 0.0
    %608 = vmatpush1.xpose.msra.mxu0 0.0
    %609 = vmatprep.subr.mxu0 0.0
    %610 = vmatpush1.xpose.msra.mxu0 0.0
    %611 = vmatprep.subr.mxu0 0.0
    %612 = vmatpush1.xpose.msra.mxu0 0.0
    %613 = vmatprep.subr.mxu0 0.0
    %614 = vmatpush1.xpose.msra.mxu0 0.0
    %615 = vmatprep.subr.mxu0 0.0
    %616 = vmatpush1.xpose.msra.mxu0 0.0
    %617 = vmatprep.subr.mxu0 0.0
    %618 = vmatpush1.xpose.msra.mxu0 0.0
    %619 = vmatprep.subr.mxu0 0.0
    %620 = vmatpush1.xpose.msra.mxu0 0.0
    %621 = vmatprep.subr.mxu0 0.0
    %622 = vmatpush1.xpose.msra.mxu0 0.0
    %623 = vmatprep.subr.mxu0 0.0
    %624 = vmatpush1.xpose.msra.mxu0 0.0
    %625 = vmatprep.subr.mxu0 0.0
    %626 = vmatpush1.xpose.msra.mxu0 0.0
    %627 = vmatprep.subr.mxu0 0.0
    %628 = vmatpush1.xpose.msra.mxu0 0.0
    %629 = vmatprep.subr.mxu0 0.0
    %630 = vmatpush1.xpose.msra.mxu0 0.0
    %631 = vmatprep.subr.mxu0 0.0
    %632 = vmatpush1.xpose.msra.mxu0 0.0
    %633 = vmatprep.subr.mxu0 0.0
    %634 = vmatpush1.xpose.msra.mxu0 0.0
    %635 = vmatprep.subr.mxu0 0.0
    %636 = vmatpush1.xpose.msra.mxu0 0.0
    %637 = vmatprep.subr.mxu0 0.0
    %638 = vmatpush1.xpose.msra.mxu0 0.0
    %639 = vmatprep.subr.mxu0 0.0
    %640 = vmatpush1.xpose.msra.mxu0 0.0
    %641 = vmatprep.mubr.f32.mxu0 0.0
    %642 = vmatmul.mubr.f32.gmra.mrb[0].mxu0 %v569
    %v643 = vpop.f32.mrb[0].mxu0
    %v644 = vadd.f32 0.0, %v643
    %v645 = vpop.f32.mrb[0].mxu0
    %646 = vmatprep.mubr.f32.mxu0 0.0
    %647 = vmatmul.mubr.f32.gmra.mrb[0].mxu0 %v571
    %v648 = vpop.f32.mrb[0].mxu0
    %v649 = vadd.f32 0.0, %v648
    %v650 = vpop.f32.mrb[0].mxu0
    %651 = vdwg.mxu0
    %v652 = vmul.f32 %v644, 0.25
    %v653 = vmul.f32 %v649, 0.25
    %v654 = vadd.f32 %v652, %v34
    %v655 = vadd.f32 %v653, %v35
    %v656 = vsel %vm360, %v654, -inf
    %657 = vmax.xlane.f32.xlu0 %v656
    %v658 = vpop.xlane.xlu0 %657
    %v659 = vsel %vm360, %v655, -inf
    %660 = vmax.xlane.f32.xlu0 %v659
    %v661 = vpop.xlane.xlu0 %660
    %v662 = vsub.f32 %v654, %v658
    %v663 = vsub.f32 %v655, %v661
    %v664 = vmul.f32 %v662, 1.442695
    %v665 = vpow.pop %v664
    %v666 = vmul.f32 %v663, 1.442695
    %v667 = vpow.pop %v666
    %v668 = vsel %vm360, %v665, 0.0
    %669 = vadd.xlane.f32.xlu0 %v668
    %v670 = vpop.xlane.xlu0 %669
    %v671 = vsel %vm360, %v667, 0.0
    %672 = vadd.xlane.f32.xlu0 %v671
    %v673 = vpop.xlane.xlu0 %672
    %v674 = vadd.f32 %v670, 1e-08
    %v675 = vadd.f32 %v673, 1e-08
    %v676 = vrcp.pop %v674
    %v677 = vrcp.pop %v675
    %v678 = vmul.f32 %v665, %v676
    %v679 = vmul.f32 %v667, %v677
    %680 = vrot.lane.b32.xlu0 %v346, 48
    %v681 = vpop.permute.xlu0 %680
    %682 = vrot.lane.b32.xlu0 %v351, 48
    %v683 = vpop.permute.xlu0 %682
    %v687 = vsel %vm360, %v678, 0
    %v690 = vsel %vm360, %v679, 0
    %692 = vmatprep.subr.mxu0 0.0
    %693 = vmatpush1.msra.mxu0 %v681
    %694 = vmatprep.subr.mxu0 0.0
    %695 = vmatpush1.msra.mxu0 %v683
    %696 = vmatprep.subr.mxu0 0.0
    %697 = vmatpush1.msra.mxu0 0.0
    %698 = vmatprep.subr.mxu0 0.0
    %699 = vmatpush1.msra.mxu0 0.0
    %700 = vmatprep.subr.mxu0 0.0
    %701 = vmatpush1.msra.mxu0 0.0
    %702 = vmatprep.subr.mxu0 0.0
    %703 = vmatpush1.msra.mxu0 0.0
    %704 = vmatprep.subr.mxu0 0.0
    %705 = vmatpush1.msra.mxu0 0.0
    %706 = vmatprep.subr.mxu0 0.0
    %707 = vmatpush1.msra.mxu0 0.0
    %708 = vmatprep.subr.mxu0 0.0
    %709 = vmatpush1.msra.mxu0 0.0
    %710 = vmatprep.subr.mxu0 0.0
    %711 = vmatpush1.msra.mxu0 0.0
    %712 = vmatprep.subr.mxu0 0.0
    %713 = vmatpush1.msra.mxu0 0.0
    %714 = vmatprep.subr.mxu0 0.0
    %715 = vmatpush1.msra.mxu0 0.0
    %716 = vmatprep.subr.mxu0 0.0
    %717 = vmatpush1.msra.mxu0 0.0
    %718 = vmatprep.subr.mxu0 0.0
    %719 = vmatpush1.msra.mxu0 0.0
    %720 = vmatprep.subr.mxu0 0.0
    %721 = vmatpush1.msra.mxu0 0.0
    %722 = vmatprep.subr.mxu0 0.0
    %723 = vmatpush1.msra.mxu0 0.0
    %724 = vmatprep.subr.mxu0 0.0
    %725 = vmatpush1.msra.mxu0 0.0
    %726 = vmatprep.subr.mxu0 0.0
    %727 = vmatpush1.msra.mxu0 0.0
    %728 = vmatprep.subr.mxu0 0.0
    %729 = vmatpush1.msra.mxu0 0.0
    %730 = vmatprep.subr.mxu0 0.0
    %731 = vmatpush1.msra.mxu0 0.0
    %732 = vmatprep.subr.mxu0 0.0
    %733 = vmatpush1.msra.mxu0 0.0
    %734 = vmatprep.subr.mxu0 0.0
    %735 = vmatpush1.msra.mxu0 0.0
    %736 = vmatprep.subr.mxu0 0.0
    %737 = vmatpush1.msra.mxu0 0.0
    %738 = vmatprep.subr.mxu0 0.0
    %739 = vmatpush1.msra.mxu0 0.0
    %740 = vmatprep.subr.mxu0 0.0
    %741 = vmatpush1.msra.mxu0 0.0
    %742 = vmatprep.subr.mxu0 0.0
    %743 = vmatpush1.msra.mxu0 0.0
    %744 = vmatprep.subr.mxu0 0.0
    %745 = vmatpush1.msra.mxu0 0.0
    %746 = vmatprep.subr.mxu0 0.0
    %747 = vmatpush1.msra.mxu0 0.0
    %748 = vmatprep.subr.mxu0 0.0
    %749 = vmatpush1.msra.mxu0 0.0
    %750 = vmatprep.subr.mxu0 0.0
    %751 = vmatpush1.msra.mxu0 0.0
    %752 = vmatprep.subr.mxu0 0.0
    %753 = vmatpush1.msra.mxu0 0.0
    %754 = vmatprep.subr.mxu0 0.0
    %755 = vmatpush1.msra.mxu0 0.0
    %756 = vmatprep.mubr.f32.mxu0 0.0
    %757 = vmatmul.mubr.f32.gmra.mrb[0].mxu0 %v687
    %v758 = vpop.f32.mrb[0].mxu0
    %v759 = vadd.f32 0.0, %v758
    %v760 = vpop.f32.mrb[0].mxu0
    %761 = vmatprep.mubr.f32.mxu0 0.0
    %762 = vmatmul.mubr.f32.gmra.mrb[0].mxu0 %v690
    %v763 = vpop.f32.mrb[0].mxu0
    %v764 = vadd.f32 0.0, %v763
    %v765 = vpop.f32.mrb[0].mxu0
    %766 = vdwg.mxu0
    %v767 = vld [vmem:[#allocation2 + $0x30] sm:$0xff]
    %v768 = vld [vmem:[#allocation2 + $0x38] sm:$0xff]
    %v770 = vsel %vm360, %v759, 0
    %v773 = vsel %vm360, %v764, 0
    %775 = vmatprep.subr.mxu0 0.0
    %776 = vmatpush1.msra.mxu0 %v767
    %777 = vmatprep.subr.mxu0 0.0
    %778 = vmatpush1.msra.mxu0 %v768
    %779 = vmatprep.subr.mxu0 0.0
    %780 = vmatpush1.msra.mxu0 0.0
    %781 = vmatprep.subr.mxu0 0.0
    %782 = vmatpush1.msra.mxu0 0.0
    %783 = vmatprep.subr.mxu0 0.0
    %784 = vmatpush1.msra.mxu0 0.0
    %785 = vmatprep.subr.mxu0 0.0
    %786 = vmatpush1.msra.mxu0 0.0
    %787 = vmatprep.subr.mxu0 0.0
    %788 = vmatpush1.msra.mxu0 0.0
    %789 = vmatprep.subr.mxu0 0.0
    %790 = vmatpush1.msra.mxu0 0.0
    %791 = vmatprep.subr.mxu0 0.0
    %792 = vmatpush1.msra.mxu0 0.0
    %793 = vmatprep.subr.mxu0 0.0
    %794 = vmatpush1.msra.mxu0 0.0
    %795 = vmatprep.subr.mxu0 0.0
    %796 = vmatpush1.msra.mxu0 0.0
    %797 = vmatprep.subr.mxu0 0.0
    %798 = vmatpush1.msra.mxu0 0.0
    %799 = vmatprep.subr.mxu0 0.0
    %800 = vmatpush1.msra.mxu0 0.0
    %801 = vmatprep.subr.mxu0 0.0
    %802 = vmatpush1.msra.mxu0 0.0
    %803 = vmatprep.subr.mxu0 0.0
    %804 = vmatpush1.msra.mxu0 0.0
    %805 = vmatprep.subr.mxu0 0.0
    %806 = vmatpush1.msra.mxu0 0.0
    %807 = vmatprep.subr.mxu0 0.0
    %808 = vmatpush1.msra.mxu0 0.0
    %809 = vmatprep.subr.mxu0 0.0
    %810 = vmatpush1.msra.mxu0 0.0
    %811 = vmatprep.subr.mxu0 0.0
    %812 = vmatpush1.msra.mxu0 0.0
    %813 = vmatprep.subr.mxu0 0.0
    %814 = vmatpush1.msra.mxu0 0.0
    %815 = vmatprep.subr.mxu0 0.0
    %816 = vmatpush1.msra.mxu0 0.0
    %817 = vmatprep.subr.mxu0 0.0
    %818 = vmatpush1.msra.mxu0 0.0
    %819 = vmatprep.subr.mxu0 0.0
    %820 = vmatpush1.msra.mxu0 0.0
    %821 = vmatprep.subr.mxu0 0.0
    %822 = vmatpush1.msra.mxu0 0.0
    %823 = vmatprep.subr.mxu0 0.0
    %824 = vmatpush1.msra.mxu0 0.0
    %825 = vmatprep.subr.mxu0 0.0
    %826 = vmatpush1.msra.mxu0 0.0
    %827 = vmatprep.subr.mxu0 0.0
    %828 = vmatpush1.msra.mxu0 0.0
    %829 = vmatprep.subr.mxu0 0.0
    %830 = vmatpush1.msra.mxu0 0.0
    %831 = vmatprep.subr.mxu0 0.0
    %832 = vmatpush1.msra.mxu0 0.0
    %833 = vmatprep.subr.mxu0 0.0
    %834 = vmatpush1.msra.mxu0 0.0
    %835 = vmatprep.subr.mxu0 0.0
    %836 = vmatpush1.msra.mxu0 0.0
    %837 = vmatprep.subr.mxu0 0.0
    %838 = vmatpush1.msra.mxu0 0.0
    %839 = vmatprep.mubr.f32.mxu0 0.0
    %840 = vmatmul.mubr.f32.gmra.mrb[0].mxu0 %v770
    %v841 = vpop.f32.mrb[0].mxu0
    %v842 = vadd.f32 0.0, %v841
    %v843 = vpop.f32.mrb[0].mxu0
    %844 = vmatprep.mubr.f32.mxu0 0.0
    %845 = vmatmul.mubr.f32.gmra.mrb[0].mxu0 %v773
    %v846 = vpop.f32.mrb[0].mxu0
    %v847 = vadd.f32 0.0, %v846
    %v848 = vpop.f32.mrb[0].mxu0
    %849 = vdwg.mxu0
    %v851 = vsel %vm360, %v551, 0
    %v854 = vsel %vm360, %v556, 0
    %856 = vmatprep.subr.mxu0 0.0
    %857 = vmatpush1.msra.mxu0 %v559
    %858 = vmatprep.subr.mxu0 0.0
    %859 = vmatpush1.msra.mxu0 %v560
    %860 = vmatprep.subr.mxu0 0.0
    %861 = vmatpush1.msra.mxu0 0.0
    %862 = vmatprep.subr.mxu0 0.0
    %863 = vmatpush1.msra.mxu0 0.0
    %864 = vmatprep.subr.mxu0 0.0
    %865 = vmatpush1.msra.mxu0 0.0
    %866 = vmatprep.subr.mxu0 0.0
    %867 = vmatpush1.msra.mxu0 0.0
    %868 = vmatprep.subr.mxu0 0.0
    %869 = vmatpush1.msra.mxu0 0.0
    %870 = vmatprep.subr.mxu0 0.0
    %871 = vmatpush1.msra.mxu0 0.0
    %872 = vmatprep.subr.mxu0 0.0
    %873 = vmatpush1.msra.mxu0 0.0
    %874 = vmatprep.subr.mxu0 0.0
    %875 = vmatpush1.msra.mxu0 0.0
    %876 = vmatprep.subr.mxu0 0.0
    %877 = vmatpush1.msra.mxu0 0.0
    %878 = vmatprep.subr.mxu0 0.0
    %879 = vmatpush1.msra.mxu0 0.0
    %880 = vmatprep.subr.mxu0 0.0
    %881 = vmatpush1.msra.mxu0 0.0
    %882 = vmatprep.subr.mxu0 0.0
    %883 = vmatpush1.msra.mxu0 0.0
    %884 = vmatprep.subr.mxu0 0.0
    %885 = vmatpush1.msra.mxu0 0.0
    %886 = vmatprep.subr.mxu0 0.0
    %887 = vmatpush1.msra.mxu0 0.0
    %888 = vmatprep.subr.mxu0 0.0
    %889 = vmatpush1.msra.mxu0 0.0
    %890 = vmatprep.subr.mxu0 0.0
    %891 = vmatpush1.msra.mxu0 0.0
    %892 = vmatprep.subr.mxu0 0.0
    %893 = vmatpush1.msra.mxu0 0.0
    %894 = vmatprep.subr.mxu0 0.0
    %895 = vmatpush1.msra.mxu0 0.0
    %896 = vmatprep.subr.mxu0 0.0
    %897 = vmatpush1.msra.mxu0 0.0
    %898 = vmatprep.subr.mxu0 0.0
    %899 = vmatpush1.msra.mxu0 0.0
    %900 = vmatprep.subr.mxu0 0.0
    %901 = vmatpush1.msra.mxu0 0.0
    %902 = vmatprep.subr.mxu0 0.0
    %903 = vmatpush1.msra.mxu0 0.0
    %904 = vmatprep.subr.mxu0 0.0
    %905 = vmatpush1.msra.mxu0 0.0
    %906 = vmatprep.subr.mxu0 0.0
    %907 = vmatpush1.msra.mxu0 0.0
    %908 = vmatprep.subr.mxu0 0.0
    %909 = vmatpush1.msra.mxu0 0.0
    %910 = vmatprep.subr.mxu0 0.0
    %911 = vmatpush1.msra.mxu0 0.0
    %912 = vmatprep.subr.mxu0 0.0
    %913 = vmatpush1.msra.mxu0 0.0
    %914 = vmatprep.subr.mxu0 0.0
    %915 = vmatpush1.msra.mxu0 0.0
    %916 = vmatprep.subr.mxu0 0.0
    %917 = vmatpush1.msra.mxu0 0.0
    %918 = vmatprep.subr.mxu0 0.0
    %919 = vmatpush1.msra.mxu0 0.0
    %920 = vmatprep.mubr.f32.mxu0 0.0
    %921 = vmatmul.mubr.f32.gmra.mrb[0].mxu0 %v851
    %v922 = vpop.f32.mrb[0].mxu0
    %v923 = vadd.f32 %v842, %v922
    %v924 = vpop.f32.mrb[0].mxu0
    %925 = vmatprep.mubr.f32.mxu0 0.0
    %926 = vmatmul.mubr.f32.gmra.mrb[0].mxu0 %v854
    %v927 = vpop.f32.mrb[0].mxu0
    %v928 = vadd.f32 %v847, %v927
    %v929 = vpop.f32.mrb[0].mxu0
    %930 = vdwg.mxu0
    %v931 = vlaneseq
    %v932 = vshrl.u32 %v931, 7
    %v933 = vsub.s32 1, %v932
    %v934 = vrot.slane %v263, %v933
    %v935 = vadd.f32 %v923, %v934
    %v936 = vadd.f32 %v928, %v934
    %v937 = vadd.f32 %v935, %v238
    %v938 = vadd.f32 %v936, %v243
    %v939 = vsel %vm272, %v937, 0.0
    %940 = vadd.xlane.f32.xlu0 %v939
    %v941 = vpop.xlane.xlu0 %940
    %v942 = vsel %vm272, %v938, 0.0
    %943 = vadd.xlane.f32.xlu0 %v942
    %v944 = vpop.xlane.xlu0 %943
    %v945 = vrcp.pop 32.0
    %v946 = vmul.f32 %v941, %v945
    %v947 = vmul.f32 %v944, %v945
    %v948 = vmul.f32 %v937, %v937
    %v949 = vmul.f32 %v938, %v938
    %v950 = vsel %vm272, %v948, 0.0
    %951 = vadd.xlane.f32.xlu0 %v950
    %v952 = vpop.xlane.xlu0 %951
    %v953 = vsel %vm272, %v949, 0.0
    %954 = vadd.xlane.f32.xlu0 %v953
    %v955 = vpop.xlane.xlu0 %954
    %v956 = vmul.f32 %v952, %v945
    %v957 = vmul.f32 %v955, %v945
    %v958 = vmul.f32 %v946, %v946
    %v959 = vmul.f32 %v947, %v947
    %v960 = vsub.f32 %v956, %v958
    %v961 = vsub.f32 %v957, %v959
    %v962 = vsub.f32 %v937, %v946
    %v963 = vsub.f32 %v938, %v947
    %v964 = vadd.f32 %v960, 1e-05
    %v965 = vadd.f32 %v961, 1e-05
    %v966 = vrsqrt.pop %v964
    %v967 = vrsqrt.pop %v965
    %v968 = vmul.f32 %v962, %v966
    %v969 = vmul.f32 %v963, %v967
    %v970 = vlaneseq
    %v971 = vshrl.u32 %v970, 7
    %v972 = vsub.s32 4, %v971
    %v973 = vrot.slane %v263, %v972
    %v974 = vmul.f32 %v968, %v973
    %v975 = vmul.f32 %v969, %v973
    %v976 = vlaneseq
    %v977 = vshrl.u32 %v976, 7
    %v978 = vsub.s32 5, %v977
    %v979 = vrot.slane %v263, %v978
    %v980 = vadd.f32 %v974, %v979
    %v981 = vadd.f32 %v975, %v979
    %983 = vset.pattern.permute.xlu0 0
    %984 = vperm.xlu0 %983, %v40
    %v985 = vpop.permute.xlu0 %984
    %988 = vset.pattern.permute.xlu0 0
    %989 = vperm.xlu0 %988, %v41
    %v990 = vpop.permute.xlu0 %989
    %v992 = vmul.f32 %v980, %v985
    %v993 = vmul.f32 %v981, %v990
    %v994 = vrot.slane %v992, 7
    %v995 = vrot.slane %v993, 7
    %vm996 = vcmp.lt.s32.totalorder %v247, 1
    %v997 = vsel %vm996, %v994, %v995
    %v998 = vsel %vm996, %v995, %v994
    %v999 = vmul.f32 %v998, %v255
    %v1000 = vmul.f32 %v997, %v256
    %v1001 = vrot.slane %v992, 1
    %v1002 = vrot.slane %v993, 1
    %vm1003 = vcmp.lt.s32.totalorder %v247, 7
    %v1004 = vsel %vm1003, %v1001, %v1002
    %v1005 = vsel %vm1003, %v1002, %v1001
    %v1006 = vmul.f32 %v1004, %v261
    %v1007 = vmul.f32 %v1005, %v262
    %v1008 = vld [vmem:[#allocation2 + $0x48] sm:$0xff]
    %v1009 = vld [vmem:[#allocation2 + $0x50] sm:$0xff]
    %v1010 = vld [vmem:[#allocation2 + $0x58] sm:$0xff]
    %v1011 = vld [vmem:[#allocation2 + $0x60] sm:$0xff]
    %v1012 = vld [vmem:[#allocation2 + $0x68] sm:$0xff]
    %v1013 = vld [vmem:[#allocation2 + $0x70] sm:$0xff]
    %v1014 = vld [vmem:[#allocation2 + $0x78] sm:$0xff]
    %v1015 = vld [vmem:[#allocation2 + $0x80] sm:$0xff]
    %v1017 = vsel %vm272, %v992, 0
    %v1020 = vsel %vm272, %v993, 0
    %1022 = vmatprep.subr.mxu0 0.0
    %1023 = vmatpush1.msra.mxu0 %v1012
    %1024 = vmatprep.subr.mxu0 0.0
    %1025 = vmatpush1.msra.mxu0 %v1013
    %1026 = vmatprep.subr.mxu0 0.0
    %1027 = vmatpush1.msra.mxu0 %v1014
    %1028 = vmatprep.subr.mxu0 0.0
    %1029 = vmatpush1.msra.mxu0 %v1015
    %1030 = vmatprep.subr.mxu0 0.0
    %1031 = vmatpush1.msra.mxu0 0.0
    %1032 = vmatprep.subr.mxu0 0.0
    %1033 = vmatpush1.msra.mxu0 0.0
    %1034 = vmatprep.subr.mxu0 0.0
    %1035 = vmatpush1.msra.mxu0 0.0
    %1036 = vmatprep.subr.mxu0 0.0
    %1037 = vmatpush1.msra.mxu0 0.0
    %1038 = vmatprep.subr.mxu0 0.0
    %1039 = vmatpush1.msra.mxu0 0.0
    %1040 = vmatprep.subr.mxu0 0.0
    %1041 = vmatpush1.msra.mxu0 0.0
    %1042 = vmatprep.subr.mxu0 0.0
    %1043 = vmatpush1.msra.mxu0 0.0
    %1044 = vmatprep.subr.mxu0 0.0
    %1045 = vmatpush1.msra.mxu0 0.0
    %1046 = vmatprep.subr.mxu0 0.0
    %1047 = vmatpush1.msra.mxu0 0.0
    %1048 = vmatprep.subr.mxu0 0.0
    %1049 = vmatpush1.msra.mxu0 0.0
    %1050 = vmatprep.subr.mxu0 0.0
    %1051 = vmatpush1.msra.mxu0 0.0
    %1052 = vmatprep.subr.mxu0 0.0
    %1053 = vmatpush1.msra.mxu0 0.0
    %1054 = vmatprep.subr.mxu0 0.0
    %1055 = vmatpush1.msra.mxu0 0.0
    %1056 = vmatprep.subr.mxu0 0.0
    %1057 = vmatpush1.msra.mxu0 0.0
    %1058 = vmatprep.subr.mxu0 0.0
    %1059 = vmatpush1.msra.mxu0 0.0
    %1060 = vmatprep.subr.mxu0 0.0
    %1061 = vmatpush1.msra.mxu0 0.0
    %1062 = vmatprep.subr.mxu0 0.0
    %1063 = vmatpush1.msra.mxu0 0.0
    %1064 = vmatprep.subr.mxu0 0.0
    %1065 = vmatpush1.msra.mxu0 0.0
    %1066 = vmatprep.subr.mxu0 0.0
    %1067 = vmatpush1.msra.mxu0 0.0
    %1068 = vmatprep.subr.mxu0 0.0
    %1069 = vmatpush1.msra.mxu0 0.0
    %1070 = vmatprep.subr.mxu0 0.0
    %1071 = vmatpush1.msra.mxu0 0.0
    %1072 = vmatprep.subr.mxu0 0.0
    %1073 = vmatpush1.msra.mxu0 0.0
    %1074 = vmatprep.subr.mxu0 0.0
    %1075 = vmatpush1.msra.mxu0 0.0
    %1076 = vmatprep.subr.mxu0 0.0
    %1077 = vmatpush1.msra.mxu0 0.0
    %1078 = vmatprep.subr.mxu0 0.0
    %1079 = vmatpush1.msra.mxu0 0.0
    %1080 = vmatprep.subr.mxu0 0.0
    %1081 = vmatpush1.msra.mxu0 0.0
    %1082 = vmatprep.subr.mxu0 0.0
    %1083 = vmatpush1.msra.mxu0 0.0
    %1084 = vmatprep.subr.mxu0 0.0
    %1085 = vmatpush1.msra.mxu0 0.0
    %1086 = vmatprep.mubr.f32.mxu0 0.0
    %1087 = vmatmul.mubr.f32.gmra.mrb[0].mxu0 %v1017
    %v1088 = vpop.f32.mrb[0].mxu0
    %v1089 = vadd.f32 0.0, %v1088
    %v1090 = vpop.f32.mrb[0].mxu0
    %1091 = vmatprep.mubr.f32.mxu0 0.0
    %1092 = vmatmul.mubr.f32.gmra.mrb[0].mxu0 %v1020
    %v1093 = vpop.f32.mrb[0].mxu0
    %v1094 = vadd.f32 0.0, %v1093
    %v1095 = vpop.f32.mrb[0].mxu0
    %1096 = vdwg.mxu0
    %v1098 = vsel %vm272, %v999, 0
    %v1101 = vsel %vm272, %v1000, 0
    %1103 = vmatprep.subr.mxu0 0.0
    %1104 = vmatpush1.msra.mxu0 %v1008
    %1105 = vmatprep.subr.mxu0 0.0
    %1106 = vmatpush1.msra.mxu0 %v1009
    %1107 = vmatprep.subr.mxu0 0.0
    %1108 = vmatpush1.msra.mxu0 %v1010
    %1109 = vmatprep.subr.mxu0 0.0
    %1110 = vmatpush1.msra.mxu0 %v1011
    %1111 = vmatprep.subr.mxu0 0.0
    %1112 = vmatpush1.msra.mxu0 0.0
    %1113 = vmatprep.subr.mxu0 0.0
    %1114 = vmatpush1.msra.mxu0 0.0
    %1115 = vmatprep.subr.mxu0 0.0
    %1116 = vmatpush1.msra.mxu0 0.0
    %1117 = vmatprep.subr.mxu0 0.0
    %1118 = vmatpush1.msra.mxu0 0.0
    %1119 = vmatprep.subr.mxu0 0.0
    %1120 = vmatpush1.msra.mxu0 0.0
    %1121 = vmatprep.subr.mxu0 0.0
    %1122 = vmatpush1.msra.mxu0 0.0
    %1123 = vmatprep.subr.mxu0 0.0
    %1124 = vmatpush1.msra.mxu0 0.0
    %1125 = vmatprep.subr.mxu0 0.0
    %1126 = vmatpush1.msra.mxu0 0.0
    %1127 = vmatprep.subr.mxu0 0.0
    %1128 = vmatpush1.msra.mxu0 0.0
    %1129 = vmatprep.subr.mxu0 0.0
    %1130 = vmatpush1.msra.mxu0 0.0
    %1131 = vmatprep.subr.mxu0 0.0
    %1132 = vmatpush1.msra.mxu0 0.0
    %1133 = vmatprep.subr.mxu0 0.0
    %1134 = vmatpush1.msra.mxu0 0.0
    %1135 = vmatprep.subr.mxu0 0.0
    %1136 = vmatpush1.msra.mxu0 0.0
    %1137 = vmatprep.subr.mxu0 0.0
    %1138 = vmatpush1.msra.mxu0 0.0
    %1139 = vmatprep.subr.mxu0 0.0
    %1140 = vmatpush1.msra.mxu0 0.0
    %1141 = vmatprep.subr.mxu0 0.0
    %1142 = vmatpush1.msra.mxu0 0.0
    %1143 = vmatprep.subr.mxu0 0.0
    %1144 = vmatpush1.msra.mxu0 0.0
    %1145 = vmatprep.subr.mxu0 0.0
    %1146 = vmatpush1.msra.mxu0 0.0
    %1147 = vmatprep.subr.mxu0 0.0
    %1148 = vmatpush1.msra.mxu0 0.0
    %1149 = vmatprep.subr.mxu0 0.0
    %1150 = vmatpush1.msra.mxu0 0.0
    %1151 = vmatprep.subr.mxu0 0.0
    %1152 = vmatpush1.msra.mxu0 0.0
    %1153 = vmatprep.subr.mxu0 0.0
    %1154 = vmatpush1.msra.mxu0 0.0
    %1155 = vmatprep.subr.mxu0 0.0
    %1156 = vmatpush1.msra.mxu0 0.0
    %1157 = vmatprep.subr.mxu0 0.0
    %1158 = vmatpush1.msra.mxu0 0.0
    %1159 = vmatprep.subr.mxu0 0.0
    %1160 = vmatpush1.msra.mxu0 0.0
    %1161 = vmatprep.subr.mxu0 0.0
    %1162 = vmatpush1.msra.mxu0 0.0
    %1163 = vmatprep.subr.mxu0 0.0
    %1164 = vmatpush1.msra.mxu0 0.0
    %1165 = vmatprep.subr.mxu0 0.0
    %1166 = vmatpush1.msra.mxu0 0.0
    %1167 = vmatprep.mubr.f32.mxu0 0.0
    %1168 = vmatmul.mubr.f32.gmra.mrb[0].mxu0 %v1098
    %v1169 = vpop.f32.mrb[0].mxu0
    %v1170 = vadd.f32 %v1089, %v1169
    %v1171 = vpop.f32.mrb[0].mxu0
    %1172 = vmatprep.mubr.f32.mxu0 0.0
    %1173 = vmatmul.mubr.f32.gmra.mrb[0].mxu0 %v1101
    %v1174 = vpop.f32.mrb[0].mxu0
    %v1175 = vadd.f32 %v1094, %v1174
    %v1176 = vpop.f32.mrb[0].mxu0
    %1177 = vdwg.mxu0
    %v1178 = vld [vmem:[#allocation2 + $0x88] sm:$0xff]
    %v1179 = vld [vmem:[#allocation2 + $0x90] sm:$0xff]
    %v1180 = vld [vmem:[#allocation2 + $0x98] sm:$0xff]
    %v1181 = vld [vmem:[#allocation2 + $0xa0] sm:$0xff]
    %v1183 = vsel %vm272, %v1006, 0
    %v1186 = vsel %vm272, %v1007, 0
    %1188 = vmatprep.subr.mxu0 0.0
    %1189 = vmatpush1.msra.mxu0 %v1178
    %1190 = vmatprep.subr.mxu0 0.0
    %1191 = vmatpush1.msra.mxu0 %v1179
    %1192 = vmatprep.subr.mxu0 0.0
    %1193 = vmatpush1.msra.mxu0 %v1180
    %1194 = vmatprep.subr.mxu0 0.0
    %1195 = vmatpush1.msra.mxu0 %v1181
    %1196 = vmatprep.subr.mxu0 0.0
    %1197 = vmatpush1.msra.mxu0 0.0
    %1198 = vmatprep.subr.mxu0 0.0
    %1199 = vmatpush1.msra.mxu0 0.0
    %1200 = vmatprep.subr.mxu0 0.0
    %1201 = vmatpush1.msra.mxu0 0.0
    %1202 = vmatprep.subr.mxu0 0.0
    %1203 = vmatpush1.msra.mxu0 0.0
    %1204 = vmatprep.subr.mxu0 0.0
    %1205 = vmatpush1.msra.mxu0 0.0
    %1206 = vmatprep.subr.mxu0 0.0
    %1207 = vmatpush1.msra.mxu0 0.0
    %1208 = vmatprep.subr.mxu0 0.0
    %1209 = vmatpush1.msra.mxu0 0.0
    %1210 = vmatprep.subr.mxu0 0.0
    %1211 = vmatpush1.msra.mxu0 0.0
    %1212 = vmatprep.subr.mxu0 0.0
    %1213 = vmatpush1.msra.mxu0 0.0
    %1214 = vmatprep.subr.mxu0 0.0
    %1215 = vmatpush1.msra.mxu0 0.0
    %1216 = vmatprep.subr.mxu0 0.0
    %1217 = vmatpush1.msra.mxu0 0.0
    %1218 = vmatprep.subr.mxu0 0.0
    %1219 = vmatpush1.msra.mxu0 0.0
    %1220 = vmatprep.subr.mxu0 0.0
    %1221 = vmatpush1.msra.mxu0 0.0
    %1222 = vmatprep.subr.mxu0 0.0
    %1223 = vmatpush1.msra.mxu0 0.0
    %1224 = vmatprep.subr.mxu0 0.0
    %1225 = vmatpush1.msra.mxu0 0.0
    %1226 = vmatprep.subr.mxu0 0.0
    %1227 = vmatpush1.msra.mxu0 0.0
    %1228 = vmatprep.subr.mxu0 0.0
    %1229 = vmatpush1.msra.mxu0 0.0
    %1230 = vmatprep.subr.mxu0 0.0
    %1231 = vmatpush1.msra.mxu0 0.0
    %1232 = vmatprep.subr.mxu0 0.0
    %1233 = vmatpush1.msra.mxu0 0.0
    %1234 = vmatprep.subr.mxu0 0.0
    %1235 = vmatpush1.msra.mxu0 0.0
    %1236 = vmatprep.subr.mxu0 0.0
    %1237 = vmatpush1.msra.mxu0 0.0
    %1238 = vmatprep.subr.mxu0 0.0
    %1239 = vmatpush1.msra.mxu0 0.0
    %1240 = vmatprep.subr.mxu0 0.0
    %1241 = vmatpush1.msra.mxu0 0.0
    %1242 = vmatprep.subr.mxu0 0.0
    %1243 = vmatpush1.msra.mxu0 0.0
    %1244 = vmatprep.subr.mxu0 0.0
    %1245 = vmatpush1.msra.mxu0 0.0
    %1246 = vmatprep.subr.mxu0 0.0
    %1247 = vmatpush1.msra.mxu0 0.0
    %1248 = vmatprep.subr.mxu0 0.0
    %1249 = vmatpush1.msra.mxu0 0.0
    %1250 = vmatprep.subr.mxu0 0.0
    %1251 = vmatpush1.msra.mxu0 0.0
    %1252 = vmatprep.mubr.f32.mxu0 0.0
    %1253 = vmatmul.mubr.f32.gmra.mrb[0].mxu0 %v1183
    %v1254 = vpop.f32.mrb[0].mxu0
    %v1255 = vadd.f32 0.0, %v1254
    %v1256 = vpop.f32.mrb[0].mxu0
    %1257 = vmatprep.mubr.f32.mxu0 0.0
    %1258 = vmatmul.mubr.f32.gmra.mrb[0].mxu0 %v1186
    %v1259 = vpop.f32.mrb[0].mxu0
    %v1260 = vadd.f32 0.0, %v1259
    %v1261 = vpop.f32.mrb[0].mxu0
    %1262 = vdwg.mxu0
    %v1263 = vadd.f32 %v1170, %v1255
    %v1264 = vadd.f32 %v1175, %v1260
    %v1265 = vlaneseq
    %v1266 = vshrl.u32 %v1265, 7
    %v1267 = vsub.s32 2, %v1266
    %v1268 = vrot.slane %v263, %v1267
    %v1269 = vadd.f32 %v1263, %v1268
    %v1270 = vadd.f32 %v1264, %v1268
    %v1271 = vmax.f32 %v1269, 0.0
    %v1272 = vmax.f32 %v1270, 0.0
    %v1273 = vrot.slane %v1271, 7
    %v1274 = vrot.slane %v1272, 7
    %v1275 = vsel %vm996, %v1273, %v1274
    %v1276 = vsel %vm996, %v1274, %v1273
    %v1277 = vmul.f32 %v1276, %v255
    %v1278 = vmul.f32 %v1275, %v256
    %v1279 = vrot.slane %v1271, 1
    %v1280 = vrot.slane %v1272, 1
    %v1281 = vsel %vm1003, %v1279, %v1280
    %v1282 = vsel %vm1003, %v1280, %v1279
    %v1283 = vmul.f32 %v1281, %v261
    %v1284 = vmul.f32 %v1282, %v262
    %v1285 = vld [vmem:[#allocation2 + $0xa8] sm:$0xff]
    %v1286 = vld [vmem:[#allocation2 + $0xb0] sm:$0xff]
    %v1287 = vld [vmem:[#allocation2 + $0xb8] sm:$0xff]
    %v1288 = vld [vmem:[#allocation2 + $0xc0] sm:$0xff]
    %v1289 = vld [vmem:[#allocation2 + $0xc8] sm:$0xff]
    %v1290 = vld [vmem:[#allocation2 + $0xd0] sm:$0xff]
    %v1291 = vld [vmem:[#allocation2 + $0xd8] sm:$0xff]
    %v1292 = vld [vmem:[#allocation2 + $0xe0] sm:$0xff]
    %v1293 = vld [vmem:[#allocation2 + $0xe8] sm:$0xff]
    %v1294 = vld [vmem:[#allocation2 + $0xf0] sm:$0xff]
    %v1295 = vld [vmem:[#allocation2 + $0xf8] sm:$0xff]
    %v1296 = vld [vmem:[#allocation2 + $0x100] sm:$0xff]
    %v1297 = vld [vmem:[#allocation2 + $0x108] sm:$0xff]
    %v1298 = vld [vmem:[#allocation2 + $0x110] sm:$0xff]
    %v1299 = vld [vmem:[#allocation2 + $0x118] sm:$0xff]
    %v1300 = vld [vmem:[#allocation2 + $0x120] sm:$0xff]
    %vm1301 = vcmask 523264
    %v1303 = vsel %vm1301, %v1271, 0
    %v1306 = vsel %vm1301, %v1272, 0
    %1308 = vmatprep.subr.mxu0 0.0
    %1309 = vmatpush1.msra.mxu0 %v1293
    %1310 = vmatprep.subr.mxu0 0.0
    %1311 = vmatpush1.msra.mxu0 %v1294
    %1312 = vmatprep.subr.mxu0 0.0
    %1313 = vmatpush1.msra.mxu0 %v1295
    %1314 = vmatprep.subr.mxu0 0.0
    %1315 = vmatpush1.msra.mxu0 %v1296
    %1316 = vmatprep.subr.mxu0 0.0
    %1317 = vmatpush1.msra.mxu0 %v1297
    %1318 = vmatprep.subr.mxu0 0.0
    %1319 = vmatpush1.msra.mxu0 %v1298
    %1320 = vmatprep.subr.mxu0 0.0
    %1321 = vmatpush1.msra.mxu0 %v1299
    %1322 = vmatprep.subr.mxu0 0.0
    %1323 = vmatpush1.msra.mxu0 %v1300
    %1324 = vmatprep.subr.mxu0 0.0
    %1325 = vmatpush1.msra.mxu0 0.0
    %1326 = vmatprep.subr.mxu0 0.0
    %1327 = vmatpush1.msra.mxu0 0.0
    %1328 = vmatprep.subr.mxu0 0.0
    %1329 = vmatpush1.msra.mxu0 0.0
    %1330 = vmatprep.subr.mxu0 0.0
    %1331 = vmatpush1.msra.mxu0 0.0
    %1332 = vmatprep.subr.mxu0 0.0
    %1333 = vmatpush1.msra.mxu0 0.0
    %1334 = vmatprep.subr.mxu0 0.0
    %1335 = vmatpush1.msra.mxu0 0.0
    %1336 = vmatprep.subr.mxu0 0.0
    %1337 = vmatpush1.msra.mxu0 0.0
    %1338 = vmatprep.subr.mxu0 0.0
    %1339 = vmatpush1.msra.mxu0 0.0
    %1340 = vmatprep.subr.mxu0 0.0
    %1341 = vmatpush1.msra.mxu0 0.0
    %1342 = vmatprep.subr.mxu0 0.0
    %1343 = vmatpush1.msra.mxu0 0.0
    %1344 = vmatprep.subr.mxu0 0.0
    %1345 = vmatpush1.msra.mxu0 0.0
    %1346 = vmatprep.subr.mxu0 0.0
    %1347 = vmatpush1.msra.mxu0 0.0
    %1348 = vmatprep.subr.mxu0 0.0
    %1349 = vmatpush1.msra.mxu0 0.0
    %1350 = vmatprep.subr.mxu0 0.0
    %1351 = vmatpush1.msra.mxu0 0.0
    %1352 = vmatprep.subr.mxu0 0.0
    %1353 = vmatpush1.msra.mxu0 0.0
    %1354 = vmatprep.subr.mxu0 0.0
    %1355 = vmatpush1.msra.mxu0 0.0
    %1356 = vmatprep.subr.mxu0 0.0
    %1357 = vmatpush1.msra.mxu0 0.0
    %1358 = vmatprep.subr.mxu0 0.0
    %1359 = vmatpush1.msra.mxu0 0.0
    %1360 = vmatprep.subr.mxu0 0.0
    %1361 = vmatpush1.msra.mxu0 0.0
    %1362 = vmatprep.subr.mxu0 0.0
    %1363 = vmatpush1.msra.mxu0 0.0
    %1364 = vmatprep.subr.mxu0 0.0
    %1365 = vmatpush1.msra.mxu0 0.0
    %1366 = vmatprep.subr.mxu0 0.0
    %1367 = vmatpush1.msra.mxu0 0.0
    %1368 = vmatprep.subr.mxu0 0.0
    %1369 = vmatpush1.msra.mxu0 0.0
    %1370 = vmatprep.subr.mxu0 0.0
    %1371 = vmatpush1.msra.mxu0 0.0
    %1372 = vmatprep.mubr.f32.mxu0 0.0
    %1373 = vmatmul.mubr.f32.gmra.mrb[0].mxu0 %v1303
    %v1374 = vpop.f32.mrb[0].mxu0
    %v1375 = vadd.f32 0.0, %v1374
    %v1376 = vpop.f32.mrb[0].mxu0
    %1377 = vmatprep.mubr.f32.mxu0 0.0
    %1378 = vmatmul.mubr.f32.gmra.mrb[0].mxu0 %v1306
    %v1379 = vpop.f32.mrb[0].mxu0
    %v1380 = vadd.f32 0.0, %v1379
    %v1381 = vpop.f32.mrb[0].mxu0
    %1382 = vdwg.mxu0
    %v1384 = vsel %vm1301, %v1277, 0
    %v1387 = vsel %vm1301, %v1278, 0
    %1389 = vmatprep.subr.mxu0 0.0
    %1390 = vmatpush1.msra.mxu0 %v1285
    %1391 = vmatprep.subr.mxu0 0.0
    %1392 = vmatpush1.msra.mxu0 %v1286
    %1393 = vmatprep.subr.mxu0 0.0
    %1394 = vmatpush1.msra.mxu0 %v1287
    %1395 = vmatprep.subr.mxu0 0.0
    %1396 = vmatpush1.msra.mxu0 %v1288
    %1397 = vmatprep.subr.mxu0 0.0
    %1398 = vmatpush1.msra.mxu0 %v1289
    %1399 = vmatprep.subr.mxu0 0.0
    %1400 = vmatpush1.msra.mxu0 %v1290
    %1401 = vmatprep.subr.mxu0 0.0
    %1402 = vmatpush1.msra.mxu0 %v1291
    %1403 = vmatprep.subr.mxu0 0.0
    %1404 = vmatpush1.msra.mxu0 %v1292
    %1405 = vmatprep.subr.mxu0 0.0
    %1406 = vmatpush1.msra.mxu0 0.0
    %1407 = vmatprep.subr.mxu0 0.0
    %1408 = vmatpush1.msra.mxu0 0.0
    %1409 = vmatprep.subr.mxu0 0.0
    %1410 = vmatpush1.msra.mxu0 0.0
    %1411 = vmatprep.subr.mxu0 0.0
    %1412 = vmatpush1.msra.mxu0 0.0
    %1413 = vmatprep.subr.mxu0 0.0
    %1414 = vmatpush1.msra.mxu0 0.0
    %1415 = vmatprep.subr.mxu0 0.0
    %1416 = vmatpush1.msra.mxu0 0.0
    %1417 = vmatprep.subr.mxu0 0.0
    %1418 = vmatpush1.msra.mxu0 0.0
    %1419 = vmatprep.subr.mxu0 0.0
    %1420 = vmatpush1.msra.mxu0 0.0
    %1421 = vmatprep.subr.mxu0 0.0
    %1422 = vmatpush1.msra.mxu0 0.0
    %1423 = vmatprep.subr.mxu0 0.0
    %1424 = vmatpush1.msra.mxu0 0.0
    %1425 = vmatprep.subr.mxu0 0.0
    %1426 = vmatpush1.msra.mxu0 0.0
    %1427 = vmatprep.subr.mxu0 0.0
    %1428 = vmatpush1.msra.mxu0 0.0
    %1429 = vmatprep.subr.mxu0 0.0
    %1430 = vmatpush1.msra.mxu0 0.0
    %1431 = vmatprep.subr.mxu0 0.0
    %1432 = vmatpush1.msra.mxu0 0.0
    %1433 = vmatprep.subr.mxu0 0.0
    %1434 = vmatpush1.msra.mxu0 0.0
    %1435 = vmatprep.subr.mxu0 0.0
    %1436 = vmatpush1.msra.mxu0 0.0
    %1437 = vmatprep.subr.mxu0 0.0
    %1438 = vmatpush1.msra.mxu0 0.0
    %1439 = vmatprep.subr.mxu0 0.0
    %1440 = vmatpush1.msra.mxu0 0.0
    %1441 = vmatprep.subr.mxu0 0.0
    %1442 = vmatpush1.msra.mxu0 0.0
    %1443 = vmatprep.subr.mxu0 0.0
    %1444 = vmatpush1.msra.mxu0 0.0
    %1445 = vmatprep.subr.mxu0 0.0
    %1446 = vmatpush1.msra.mxu0 0.0
    %1447 = vmatprep.subr.mxu0 0.0
    %1448 = vmatpush1.msra.mxu0 0.0
    %1449 = vmatprep.subr.mxu0 0.0
    %1450 = vmatpush1.msra.mxu0 0.0
    %1451 = vmatprep.subr.mxu0 0.0
    %1452 = vmatpush1.msra.mxu0 0.0
    %1453 = vmatprep.mubr.f32.mxu0 0.0
    %1454 = vmatmul.mubr.f32.gmra.mrb[0].mxu0 %v1384
    %v1455 = vpop.f32.mrb[0].mxu0
    %v1456 = vadd.f32 %v1375, %v1455
    %v1457 = vpop.f32.mrb[0].mxu0
    %1458 = vmatprep.mubr.f32.mxu0 0.0
    %1459 = vmatmul.mubr.f32.gmra.mrb[0].mxu0 %v1387
    %v1460 = vpop.f32.mrb[0].mxu0
    %v1461 = vadd.f32 %v1380, %v1460
    %v1462 = vpop.f32.mrb[0].mxu0
    %1463 = vdwg.mxu0
    %v1464 = vld [vmem:[#allocation2 + $0x128] sm:$0xff]
    %v1465 = vld [vmem:[#allocation2 + $0x130] sm:$0xff]
    %v1466 = vld [vmem:[#allocation2 + $0x138] sm:$0xff]
    %v1467 = vld [vmem:[#allocation2 + $0x140] sm:$0xff]
    %v1468 = vld [vmem:[#allocation2 + $0x148] sm:$0xff]
    %v1469 = vld [vmem:[#allocation2 + $0x150] sm:$0xff]
    %v1470 = vld [vmem:[#allocation2 + $0x158] sm:$0xff]
    %v1471 = vld [vmem:[#allocation2 + $0x160] sm:$0xff]
    %v1473 = vsel %vm1301, %v1283, 0
    %v1476 = vsel %vm1301, %v1284, 0
    %1478 = vmatprep.subr.mxu0 0.0
    %1479 = vmatpush1.msra.mxu0 %v1464
    %1480 = vmatprep.subr.mxu0 0.0
    %1481 = vmatpush1.msra.mxu0 %v1465
    %1482 = vmatprep.subr.mxu0 0.0
    %1483 = vmatpush1.msra.mxu0 %v1466
    %1484 = vmatprep.subr.mxu0 0.0
    %1485 = vmatpush1.msra.mxu0 %v1467
    %1486 = vmatprep.subr.mxu0 0.0
    %1487 = vmatpush1.msra.mxu0 %v1468
    %1488 = vmatprep.subr.mxu0 0.0
    %1489 = vmatpush1.msra.mxu0 %v1469
    %1490 = vmatprep.subr.mxu0 0.0
    %1491 = vmatpush1.msra.mxu0 %v1470
    %1492 = vmatprep.subr.mxu0 0.0
    %1493 = vmatpush1.msra.mxu0 %v1471
    %1494 = vmatprep.subr.mxu0 0.0
    %1495 = vmatpush1.msra.mxu0 0.0
    %1496 = vmatprep.subr.mxu0 0.0
    %1497 = vmatpush1.msra.mxu0 0.0
    %1498 = vmatprep.subr.mxu0 0.0
    %1499 = vmatpush1.msra.mxu0 0.0
    %1500 = vmatprep.subr.mxu0 0.0
    %1501 = vmatpush1.msra.mxu0 0.0
    %1502 = vmatprep.subr.mxu0 0.0
    %1503 = vmatpush1.msra.mxu0 0.0
    %1504 = vmatprep.subr.mxu0 0.0
    %1505 = vmatpush1.msra.mxu0 0.0
    %1506 = vmatprep.subr.mxu0 0.0
    %1507 = vmatpush1.msra.mxu0 0.0
    %1508 = vmatprep.subr.mxu0 0.0
    %1509 = vmatpush1.msra.mxu0 0.0
    %1510 = vmatprep.subr.mxu0 0.0
    %1511 = vmatpush1.msra.mxu0 0.0
    %1512 = vmatprep.subr.mxu0 0.0
    %1513 = vmatpush1.msra.mxu0 0.0
    %1514 = vmatprep.subr.mxu0 0.0
    %1515 = vmatpush1.msra.mxu0 0.0
    %1516 = vmatprep.subr.mxu0 0.0
    %1517 = vmatpush1.msra.mxu0 0.0
    %1518 = vmatprep.subr.mxu0 0.0
    %1519 = vmatpush1.msra.mxu0 0.0
    %1520 = vmatprep.subr.mxu0 0.0
    %1521 = vmatpush1.msra.mxu0 0.0
    %1522 = vmatprep.subr.mxu0 0.0
    %1523 = vmatpush1.msra.mxu0 0.0
    %1524 = vmatprep.subr.mxu0 0.0
    %1525 = vmatpush1.msra.mxu0 0.0
    %1526 = vmatprep.subr.mxu0 0.0
    %1527 = vmatpush1.msra.mxu0 0.0
    %1528 = vmatprep.subr.mxu0 0.0
    %1529 = vmatpush1.msra.mxu0 0.0
    %1530 = vmatprep.subr.mxu0 0.0
    %1531 = vmatpush1.msra.mxu0 0.0
    %1532 = vmatprep.subr.mxu0 0.0
    %1533 = vmatpush1.msra.mxu0 0.0
    %1534 = vmatprep.subr.mxu0 0.0
    %1535 = vmatpush1.msra.mxu0 0.0
    %1536 = vmatprep.subr.mxu0 0.0
    %1537 = vmatpush1.msra.mxu0 0.0
    %1538 = vmatprep.subr.mxu0 0.0
    %1539 = vmatpush1.msra.mxu0 0.0
    %1540 = vmatprep.subr.mxu0 0.0
    %1541 = vmatpush1.msra.mxu0 0.0
    %1542 = vmatprep.mubr.f32.mxu0 0.0
    %1543 = vmatmul.mubr.f32.gmra.mrb[0].mxu0 %v1473
    %v1544 = vpop.f32.mrb[0].mxu0
    %v1545 = vadd.f32 0.0, %v1544
    %v1546 = vpop.f32.mrb[0].mxu0
    %1547 = vmatprep.mubr.f32.mxu0 0.0
    %1548 = vmatmul.mubr.f32.gmra.mrb[0].mxu0 %v1476
    %v1549 = vpop.f32.mrb[0].mxu0
    %v1550 = vadd.f32 0.0, %v1549
    %v1551 = vpop.f32.mrb[0].mxu0
    %1552 = vdwg.mxu0
    %v1553 = vadd.f32 %v1456, %v1545
    %v1554 = vadd.f32 %v1461, %v1550
    %v1555 = vlaneseq
    %v1556 = vshrl.u32 %v1555, 7
    %v1557 = vsub.s32 3, %v1556
    %v1558 = vrot.slane %v263, %v1557
    %v1559 = vadd.f32 %v1553, %v1558
    %v1560 = vadd.f32 %v1554, %v1558
    %v1561 = vadd.f32 %v1559, %v992
    %v1562 = vadd.f32 %v1560, %v993
    %v1563 = vsel %vm272, %v1561, 0.0
    %1564 = vadd.xlane.f32.xlu0 %v1563
    %v1565 = vpop.xlane.xlu0 %1564
    %v1566 = vsel %vm272, %v1562, 0.0
    %1567 = vadd.xlane.f32.xlu0 %v1566
    %v1568 = vpop.xlane.xlu0 %1567
    %v1569 = vmul.f32 %v1565, %v945
    %v1570 = vmul.f32 %v1568, %v945
    %v1571 = vmul.f32 %v1561, %v1561
    %v1572 = vmul.f32 %v1562, %v1562
    %v1573 = vsel %vm272, %v1571, 0.0
    %1574 = vadd.xlane.f32.xlu0 %v1573
    %v1575 = vpop.xlane.xlu0 %1574
    %v1576 = vsel %vm272, %v1572, 0.0
    %1577 = vadd.xlane.f32.xlu0 %v1576
    %v1578 = vpop.xlane.xlu0 %1577
    %v1579 = vmul.f32 %v1575, %v945
    %v1580 = vmul.f32 %v1578, %v945
    %v1581 = vmul.f32 %v1569, %v1569
    %v1582 = vmul.f32 %v1570, %v1570
    %v1583 = vsub.f32 %v1579, %v1581
    %v1584 = vsub.f32 %v1580, %v1582
    %v1585 = vsub.f32 %v1561, %v1569
    %v1586 = vsub.f32 %v1562, %v1570
    %v1587 = vadd.f32 %v1583, 1e-05
    %v1588 = vadd.f32 %v1584, 1e-05
    %v1589 = vrsqrt.pop %v1587
    %v1590 = vrsqrt.pop %v1588
    %v1591 = vmul.f32 %v1585, %v1589
    %v1592 = vmul.f32 %v1586, %v1590
    %v1593 = vlaneseq
    %v1594 = vshrl.u32 %v1593, 7
    %v1595 = vsub.s32 6, %v1594
    %v1596 = vrot.slane %v263, %v1595
    %v1597 = vmul.f32 %v1591, %v1596
    %v1598 = vmul.f32 %v1592, %v1596
    %v1599 = vlaneseq
    %v1600 = vshrl.u32 %v1599, 7
    %v1601 = vsub.s32 7, %v1600
    %v1602 = vrot.slane %v263, %v1601
    %v1603 = vadd.f32 %v1597, %v1602
    %v1604 = vadd.f32 %v1598, %v1602
    %v1605 = vmul.f32 %v1603, %v985
    %v1606 = vmul.f32 %v1604, %v990
    %s1607 = scalar_lea.vmem [#allocation2], 360
    %v1608 = vld [vmem:[%s1607 + $0x40] sm:$0xff]
    %v1609 = vld [vmem:[%s1607] sm:$0xff]
    %v1610 = vld [vmem:[%s1607 + $0x8] sm:$0xff]
    %v1611 = vld [vmem:[%s1607 + $0x10] sm:$0xff]
    %v1612 = vld [vmem:[%s1607 + $0x18] sm:$0xff]
    %v1613 = vlaneseq
    %v1614 = vshrl.u32 %v1613, 7
    %v1615 = vsub.s32 0, %v1614
    %v1616 = vrot.slane %v1608, %v1615
    %v1618 = vsel %vm272, %v1605, 0
    %v1621 = vsel %vm272, %v1606, 0
    %1623 = vmatprep.subr.mxu0 0.0
    %1624 = vmatpush1.msra.mxu0 %v1609
    %1625 = vmatprep.subr.mxu0 0.0
    %1626 = vmatpush1.msra.mxu0 %v1610
    %1627 = vmatprep.subr.mxu0 0.0
    %1628 = vmatpush1.msra.mxu0 %v1611
    %1629 = vmatprep.subr.mxu0 0.0
    %1630 = vmatpush1.msra.mxu0 %v1612
    %1631 = vmatprep.subr.mxu0 0.0
    %1632 = vmatpush1.msra.mxu0 0.0
    %1633 = vmatprep.subr.mxu0 0.0
    %1634 = vmatpush1.msra.mxu0 0.0
    %1635 = vmatprep.subr.mxu0 0.0
    %1636 = vmatpush1.msra.mxu0 0.0
    %1637 = vmatprep.subr.mxu0 0.0
    %1638 = vmatpush1.msra.mxu0 0.0
    %1639 = vmatprep.subr.mxu0 0.0
    %1640 = vmatpush1.msra.mxu0 0.0
    %1641 = vmatprep.subr.mxu0 0.0
    %1642 = vmatpush1.msra.mxu0 0.0
    %1643 = vmatprep.subr.mxu0 0.0
    %1644 = vmatpush1.msra.mxu0 0.0
    %1645 = vmatprep.subr.mxu0 0.0
    %1646 = vmatpush1.msra.mxu0 0.0
    %1647 = vmatprep.subr.mxu0 0.0
    %1648 = vmatpush1.msra.mxu0 0.0
    %1649 = vmatprep.subr.mxu0 0.0
    %1650 = vmatpush1.msra.mxu0 0.0
    %1651 = vmatprep.subr.mxu0 0.0
    %1652 = vmatpush1.msra.mxu0 0.0
    %1653 = vmatprep.subr.mxu0 0.0
    %1654 = vmatpush1.msra.mxu0 0.0
    %1655 = vmatprep.subr.mxu0 0.0
    %1656 = vmatpush1.msra.mxu0 0.0
    %1657 = vmatprep.subr.mxu0 0.0
    %1658 = vmatpush1.msra.mxu0 0.0
    %1659 = vmatprep.subr.mxu0 0.0
    %1660 = vmatpush1.msra.mxu0 0.0
    %1661 = vmatprep.subr.mxu0 0.0
    %1662 = vmatpush1.msra.mxu0 0.0
    %1663 = vmatprep.subr.mxu0 0.0
    %1664 = vmatpush1.msra.mxu0 0.0
    %1665 = vmatprep.subr.mxu0 0.0
    %1666 = vmatpush1.msra.mxu0 0.0
    %1667 = vmatprep.subr.mxu0 0.0
    %1668 = vmatpush1.msra.mxu0 0.0
    %1669 = vmatprep.subr.mxu0 0.0
    %1670 = vmatpush1.msra.mxu0 0.0
    %1671 = vmatprep.subr.mxu0 0.0
    %1672 = vmatpush1.msra.mxu0 0.0
    %1673 = vmatprep.subr.mxu0 0.0
    %1674 = vmatpush1.msra.mxu0 0.0
    %1675 = vmatprep.subr.mxu0 0.0
    %1676 = vmatpush1.msra.mxu0 0.0
    %1677 = vmatprep.subr.mxu0 0.0
    %1678 = vmatpush1.msra.mxu0 0.0
    %1679 = vmatprep.subr.mxu0 0.0
    %1680 = vmatpush1.msra.mxu0 0.0
    %1681 = vmatprep.subr.mxu0 0.0
    %1682 = vmatpush1.msra.mxu0 0.0
    %1683 = vmatprep.subr.mxu0 0.0
    %1684 = vmatpush1.msra.mxu0 0.0
    %1685 = vmatprep.subr.mxu0 0.0
    %1686 = vmatpush1.msra.mxu0 0.0
    %1687 = vmatprep.mubr.f32.mxu0 0.0
    %1688 = vmatmul.mubr.f32.gmra.mrb[0].mxu0 %v1618
    %v1689 = vpop.f32.mrb[0].mxu0
    %v1690 = vadd.f32 %v1616, %v1689
    %v1691 = vpop.f32.mrb[0].mxu0
    %1692 = vmatprep.mubr.f32.mxu0 0.0
    %1693 = vmatmul.mubr.f32.gmra.mrb[0].mxu0 %v1621
    %v1694 = vpop.f32.mrb[0].mxu0
    %v1695 = vadd.f32 %v1616, %v1694
    %v1696 = vpop.f32.mrb[0].mxu0
    %1697 = vdwg.mxu0
    %1700 = vrot.lane.b32.xlu0 %v1690, 96
    %v1701 = vpop.permute.xlu0 %1700
    %1702 = vrot.lane.b32.xlu0 %v1695, 96
    %v1703 = vpop.permute.xlu0 %1702
    %v1704 = vsel %vm360, %v1690, 0
    %v1706 = vsel %vm360, %v1695, 0
    %v1708 = vsel %vm360, %v1701, 0
    %v1710 = vsel %vm360, %v1703, 0
    %1712 = vmatprep.subr.mxu0 0.0
    %1713 = vmatpush1.xpose.msra.mxu0 %v1708
    %1714 = vmatprep.subr.mxu0 0.0
    %1715 = vmatpush1.xpose.msra.mxu0 %v1710
    %1716 = vmatprep.subr.mxu0 0.0
    %1717 = vmatpush1.xpose.msra.mxu0 0.0
    %1718 = vmatprep.subr.mxu0 0.0
    %1719 = vmatpush1.xpose.msra.mxu0 0.0
    %1720 = vmatprep.subr.mxu0 0.0
    %1721 = vmatpush1.xpose.msra.mxu0 0.0
    %1722 = vmatprep.subr.mxu0 0.0
    %1723 = vmatpush1.xpose.msra.mxu0 0.0
    %1724 = vmatprep.subr.mxu0 0.0
    %1725 = vmatpush1.xpose.msra.mxu0 0.0
    %1726 = vmatprep.subr.mxu0 0.0
    %1727 = vmatpush1.xpose.msra.mxu0 0.0
    %1728 = vmatprep.subr.mxu0 0.0
    %1729 = vmatpush1.xpose.msra.mxu0 0.0
    %1730 = vmatprep.subr.mxu0 0.0
    %1731 = vmatpush1.xpose.msra.mxu0 0.0
    %1732 = vmatprep.subr.mxu0 0.0
    %1733 = vmatpush1.xpose.msra.mxu0 0.0
    %1734 = vmatprep.subr.mxu0 0.0
    %1735 = vmatpush1.xpose.msra.mxu0 0.0
    %1736 = vmatprep.subr.mxu0 0.0
    %1737 = vmatpush1.xpose.msra.mxu0 0.0
    %1738 = vmatprep.subr.mxu0 0.0
    %1739 = vmatpush1.xpose.msra.mxu0 0.0
    %1740 = vmatprep.subr.mxu0 0.0
    %1741 = vmatpush1.xpose.msra.mxu0 0.0
    %1742 = vmatprep.subr.mxu0 0.0
    %1743 = vmatpush1.xpose.msra.mxu0 0.0
    %1744 = vmatprep.subr.mxu0 0.0
    %1745 = vmatpush1.xpose.msra.mxu0 0.0
    %1746 = vmatprep.subr.mxu0 0.0
    %1747 = vmatpush1.xpose.msra.mxu0 0.0
    %1748 = vmatprep.subr.mxu0 0.0
    %1749 = vmatpush1.xpose.msra.mxu0 0.0
    %1750 = vmatprep.subr.mxu0 0.0
    %1751 = vmatpush1.xpose.msra.mxu0 0.0
    %1752 = vmatprep.subr.mxu0 0.0
    %1753 = vmatpush1.xpose.msra.mxu0 0.0
    %1754 = vmatprep.subr.mxu0 0.0
    %1755 = vmatpush1.xpose.msra.mxu0 0.0
    %1756 = vmatprep.subr.mxu0 0.0
    %1757 = vmatpush1.xpose.msra.mxu0 0.0
    %1758 = vmatprep.subr.mxu0 0.0
    %1759 = vmatpush1.xpose.msra.mxu0 0.0
    %1760 = vmatprep.subr.mxu0 0.0
    %1761 = vmatpush1.xpose.msra.mxu0 0.0
    %1762 = vmatprep.subr.mxu0 0.0
    %1763 = vmatpush1.xpose.msra.mxu0 0.0
    %1764 = vmatprep.subr.mxu0 0.0
    %1765 = vmatpush1.xpose.msra.mxu0 0.0
    %1766 = vmatprep.subr.mxu0 0.0
    %1767 = vmatpush1.xpose.msra.mxu0 0.0
    %1768 = vmatprep.subr.mxu0 0.0
    %1769 = vmatpush1.xpose.msra.mxu0 0.0
    %1770 = vmatprep.subr.mxu0 0.0
    %1771 = vmatpush1.xpose.msra.mxu0 0.0
    %1772 = vmatprep.subr.mxu0 0.0
    %1773 = vmatpush1.xpose.msra.mxu0 0.0
    %1774 = vmatprep.subr.mxu0 0.0
    %1775 = vmatpush1.xpose.msra.mxu0 0.0
    %1776 = vmatprep.mubr.f32.mxu0 0.0
    %1777 = vmatmul.mubr.f32.gmra.mrb[0].mxu0 %v1704
    %v1778 = vpop.f32.mrb[0].mxu0
    %v1779 = vadd.f32 0.0, %v1778
    %v1780 = vpop.f32.mrb[0].mxu0
    %1781 = vmatprep.mubr.f32.mxu0 0.0
    %1782 = vmatmul.mubr.f32.gmra.mrb[0].mxu0 %v1706
    %v1783 = vpop.f32.mrb[0].mxu0
    %v1784 = vadd.f32 0.0, %v1783
    %v1785 = vpop.f32.mrb[0].mxu0
    %1786 = vdwg.mxu0
    %v1787 = vmul.f32 %v1779, 0.25
    %v1788 = vmul.f32 %v1784, 0.25
    %v1789 = vadd.f32 %v1787, %v34
    %v1790 = vadd.f32 %v1788, %v35
    %v1791 = vsel %vm360, %v1789, -inf
    %1792 = vmax.xlane.f32.xlu0 %v1791
    %v1793 = vpop.xlane.xlu0 %1792
    %v1794 = vsel %vm360, %v1790, -inf
    %1795 = vmax.xlane.f32.xlu0 %v1794
    %v1796 = vpop.xlane.xlu0 %1795
    %v1797 = vsub.f32 %v1789, %v1793
    %v1798 = vsub.f32 %v1790, %v1796
    %v1799 = vmul.f32 %v1797, 1.442695
    %v1800 = vpow.pop %v1799
    %v1801 = vmul.f32 %v1798, 1.442695
    %v1802 = vpow.pop %v1801
    %v1803 = vsel %vm360, %v1800, 0.0
    %1804 = vadd.xlane.f32.xlu0 %v1803
    %v1805 = vpop.xlane.xlu0 %1804
    %v1806 = vsel %vm360, %v1802, 0.0
    %1807 = vadd.xlane.f32.xlu0 %v1806
    %v1808 = vpop.xlane.xlu0 %1807
    %v1809 = vadd.f32 %v1805, 1e-08
    %v1810 = vadd.f32 %v1808, 1e-08
    %v1811 = vrcp.pop %v1809
    %v1812 = vrcp.pop %v1810
    %v1813 = vmul.f32 %v1800, %v1811
    %v1814 = vmul.f32 %v1802, %v1812
    %1815 = vrot.lane.b32.xlu0 %v1690, 64
    %v1816 = vpop.permute.xlu0 %1815
    %1817 = vrot.lane.b32.xlu0 %v1695, 64
    %v1818 = vpop.permute.xlu0 %1817
    %v1822 = vsel %vm360, %v1813, 0
    %v1825 = vsel %vm360, %v1814, 0
    %1827 = vmatprep.subr.mxu0 0.0
    %1828 = vmatpush1.msra.mxu0 %v1816
    %1829 = vmatprep.subr.mxu0 0.0
    %1830 = vmatpush1.msra.mxu0 %v1818
    %1831 = vmatprep.subr.mxu0 0.0
    %1832 = vmatpush1.msra.mxu0 0.0
    %1833 = vmatprep.subr.mxu0 0.0
    %1834 = vmatpush1.msra.mxu0 0.0
    %1835 = vmatprep.subr.mxu0 0.0
    %1836 = vmatpush1.msra.mxu0 0.0
    %1837 = vmatprep.subr.mxu0 0.0
    %1838 = vmatpush1.msra.mxu0 0.0
    %1839 = vmatprep.subr.mxu0 0.0
    %1840 = vmatpush1.msra.mxu0 0.0
    %1841 = vmatprep.subr.mxu0 0.0
    %1842 = vmatpush1.msra.mxu0 0.0
    %1843 = vmatprep.subr.mxu0 0.0
    %1844 = vmatpush1.msra.mxu0 0.0
    %1845 = vmatprep.subr.mxu0 0.0
    %1846 = vmatpush1.msra.mxu0 0.0
    %1847 = vmatprep.subr.mxu0 0.0
    %1848 = vmatpush1.msra.mxu0 0.0
    %1849 = vmatprep.subr.mxu0 0.0
    %1850 = vmatpush1.msra.mxu0 0.0
    %1851 = vmatprep.subr.mxu0 0.0
    %1852 = vmatpush1.msra.mxu0 0.0
    %1853 = vmatprep.subr.mxu0 0.0
    %1854 = vmatpush1.msra.mxu0 0.0
    %1855 = vmatprep.subr.mxu0 0.0
    %1856 = vmatpush1.msra.mxu0 0.0
    %1857 = vmatprep.subr.mxu0 0.0
    %1858 = vmatpush1.msra.mxu0 0.0
    %1859 = vmatprep.subr.mxu0 0.0
    %1860 = vmatpush1.msra.mxu0 0.0
    %1861 = vmatprep.subr.mxu0 0.0
    %1862 = vmatpush1.msra.mxu0 0.0
    %1863 = vmatprep.subr.mxu0 0.0
    %1864 = vmatpush1.msra.mxu0 0.0
    %1865 = vmatprep.subr.mxu0 0.0
    %1866 = vmatpush1.msra.mxu0 0.0
    %1867 = vmatprep.subr.mxu0 0.0
    %1868 = vmatpush1.msra.mxu0 0.0
    %1869 = vmatprep.subr.mxu0 0.0
    %1870 = vmatpush1.msra.mxu0 0.0
    %1871 = vmatprep.subr.mxu0 0.0
    %1872 = vmatpush1.msra.mxu0 0.0
    %1873 = vmatprep.subr.mxu0 0.0
    %1874 = vmatpush1.msra.mxu0 0.0
    %1875 = vmatprep.subr.mxu0 0.0
    %1876 = vmatpush1.msra.mxu0 0.0
    %1877 = vmatprep.subr.mxu0 0.0
    %1878 = vmatpush1.msra.mxu0 0.0
    %1879 = vmatprep.subr.mxu0 0.0
    %1880 = vmatpush1.msra.mxu0 0.0
    %1881 = vmatprep.subr.mxu0 0.0
    %1882 = vmatpush1.msra.mxu0 0.0
    %1883 = vmatprep.subr.mxu0 0.0
    %1884 = vmatpush1.msra.mxu0 0.0
    %1885 = vmatprep.subr.mxu0 0.0
    %1886 = vmatpush1.msra.mxu0 0.0
    %1887 = vmatprep.subr.mxu0 0.0
    %1888 = vmatpush1.msra.mxu0 0.0
    %1889 = vmatprep.subr.mxu0 0.0
    %1890 = vmatpush1.msra.mxu0 0.0
    %1891 = vmatprep.mubr.f32.mxu0 0.0
    %1892 = vmatmul.mubr.f32.gmra.mrb[0].mxu0 %v1822
    %v1893 = vpop.f32.mrb[0].mxu0
    %v1894 = vadd.f32 0.0, %v1893
    %v1895 = vpop.f32.mrb[0].mxu0
    %1896 = vmatprep.mubr.f32.mxu0 0.0
    %1897 = vmatmul.mubr.f32.gmra.mrb[0].mxu0 %v1825
    %v1898 = vpop.f32.mrb[0].mxu0
    %v1899 = vadd.f32 0.0, %v1898
    %v1900 = vpop.f32.mrb[0].mxu0
    %1901 = vdwg.mxu0
    %v1902 = vld [vmem:[%s1607 + $0x20] sm:$0xff]
    %v1903 = vld [vmem:[%s1607 + $0x28] sm:$0xff]
    %1904 = vrot.lane.b32.xlu0 %v1690, 112
    %v1905 = vpop.permute.xlu0 %1904
    %1906 = vrot.lane.b32.xlu0 %v1695, 112
    %v1907 = vpop.permute.xlu0 %1906
    %1908 = vrot.lane.b32.xlu0 %v1690, 80
    %v1909 = vpop.permute.xlu0 %1908
    %1910 = vrot.lane.b32.xlu0 %v1695, 80
    %v1911 = vpop.permute.xlu0 %1910
    %v1912 = vsel %vm360, %v1905, 0
    %v1914 = vsel %vm360, %v1907, 0
    %v1916 = vsel %vm360, %v1909, 0
    %v1918 = vsel %vm360, %v1911, 0
    %1920 = vmatprep.subr.mxu0 0.0
    %1921 = vmatpush1.xpose.msra.mxu0 %v1916
    %1922 = vmatprep.subr.mxu0 0.0
    %1923 = vmatpush1.xpose.msra.mxu0 %v1918
    %1924 = vmatprep.subr.mxu0 0.0
    %1925 = vmatpush1.xpose.msra.mxu0 0.0
    %1926 = vmatprep.subr.mxu0 0.0
    %1927 = vmatpush1.xpose.msra.mxu0 0.0
    %1928 = vmatprep.subr.mxu0 0.0
    %1929 = vmatpush1.xpose.msra.mxu0 0.0
    %1930 = vmatprep.subr.mxu0 0.0
    %1931 = vmatpush1.xpose.msra.mxu0 0.0
    %1932 = vmatprep.subr.mxu0 0.0
    %1933 = vmatpush1.xpose.msra.mxu0 0.0
    %1934 = vmatprep.subr.mxu0 0.0
    %1935 = vmatpush1.xpose.msra.mxu0 0.0
    %1936 = vmatprep.subr.mxu0 0.0
    %1937 = vmatpush1.xpose.msra.mxu0 0.0
    %1938 = vmatprep.subr.mxu0 0.0
    %1939 = vmatpush1.xpose.msra.mxu0 0.0
    %1940 = vmatprep.subr.mxu0 0.0
    %1941 = vmatpush1.xpose.msra.mxu0 0.0
    %1942 = vmatprep.subr.mxu0 0.0
    %1943 = vmatpush1.xpose.msra.mxu0 0.0
    %1944 = vmatprep.subr.mxu0 0.0
    %1945 = vmatpush1.xpose.msra.mxu0 0.0
    %1946 = vmatprep.subr.mxu0 0.0
    %1947 = vmatpush1.xpose.msra.mxu0 0.0
    %1948 = vmatprep.subr.mxu0 0.0
    %1949 = vmatpush1.xpose.msra.mxu0 0.0
    %1950 = vmatprep.subr.mxu0 0.0
    %1951 = vmatpush1.xpose.msra.mxu0 0.0
    %1952 = vmatprep.subr.mxu0 0.0
    %1953 = vmatpush1.xpose.msra.mxu0 0.0
    %1954 = vmatprep.subr.mxu0 0.0
    %1955 = vmatpush1.xpose.msra.mxu0 0.0
    %1956 = vmatprep.subr.mxu0 0.0
    %1957 = vmatpush1.xpose.msra.mxu0 0.0
    %1958 = vmatprep.subr.mxu0 0.0
    %1959 = vmatpush1.xpose.msra.mxu0 0.0
    %1960 = vmatprep.subr.mxu0 0.0
    %1961 = vmatpush1.xpose.msra.mxu0 0.0
    %1962 = vmatprep.subr.mxu0 0.0
    %1963 = vmatpush1.xpose.msra.mxu0 0.0
    %1964 = vmatprep.subr.mxu0 0.0
    %1965 = vmatpush1.xpose.msra.mxu0 0.0
    %1966 = vmatprep.subr.mxu0 0.0
    %1967 = vmatpush1.xpose.msra.mxu0 0.0
    %1968 = vmatprep.subr.mxu0 0.0
    %1969 = vmatpush1.xpose.msra.mxu0 0.0
    %1970 = vmatprep.subr.mxu0 0.0
    %1971 = vmatpush1.xpose.msra.mxu0 0.0
    %1972 = vmatprep.subr.mxu0 0.0
    %1973 = vmatpush1.xpose.msra.mxu0 0.0
    %1974 = vmatprep.subr.mxu0 0.0
    %1975 = vmatpush1.xpose.msra.mxu0 0.0
    %1976 = vmatprep.subr.mxu0 0.0
    %1977 = vmatpush1.xpose.msra.mxu0 0.0
    %1978 = vmatprep.subr.mxu0 0.0
    %1979 = vmatpush1.xpose.msra.mxu0 0.0
    %1980 = vmatprep.subr.mxu0 0.0
    %1981 = vmatpush1.xpose.msra.mxu0 0.0
    %1982 = vmatprep.subr.mxu0 0.0
    %1983 = vmatpush1.xpose.msra.mxu0 0.0
    %1984 = vmatprep.mubr.f32.mxu0 0.0
    %1985 = vmatmul.mubr.f32.gmra.mrb[0].mxu0 %v1912
    %v1986 = vpop.f32.mrb[0].mxu0
    %v1987 = vadd.f32 0.0, %v1986
    %v1988 = vpop.f32.mrb[0].mxu0
    %1989 = vmatprep.mubr.f32.mxu0 0.0
    %1990 = vmatmul.mubr.f32.gmra.mrb[0].mxu0 %v1914
    %v1991 = vpop.f32.mrb[0].mxu0
    %v1992 = vadd.f32 0.0, %v1991
    %v1993 = vpop.f32.mrb[0].mxu0
    %1994 = vdwg.mxu0
    %v1995 = vmul.f32 %v1987, 0.25
    %v1996 = vmul.f32 %v1992, 0.25
    %v1997 = vadd.f32 %v1995, %v34
    %v1998 = vadd.f32 %v1996, %v35
    %v1999 = vsel %vm360, %v1997, -inf
    %2000 = vmax.xlane.f32.xlu0 %v1999
    %v2001 = vpop.xlane.xlu0 %2000
    %v2002 = vsel %vm360, %v1998, -inf
    %2003 = vmax.xlane.f32.xlu0 %v2002
    %v2004 = vpop.xlane.xlu0 %2003
    %v2005 = vsub.f32 %v1997, %v2001
    %v2006 = vsub.f32 %v1998, %v2004
    %v2007 = vmul.f32 %v2005, 1.442695
    %v2008 = vpow.pop %v2007
    %v2009 = vmul.f32 %v2006, 1.442695
    %v2010 = vpow.pop %v2009
    %v2011 = vsel %vm360, %v2008, 0.0
    %2012 = vadd.xlane.f32.xlu0 %v2011
    %v2013 = vpop.xlane.xlu0 %2012
    %v2014 = vsel %vm360, %v2010, 0.0
    %2015 = vadd.xlane.f32.xlu0 %v2014
    %v2016 = vpop.xlane.xlu0 %2015
    %v2017 = vadd.f32 %v2013, 1e-08
    %v2018 = vadd.f32 %v2016, 1e-08
    %v2019 = vrcp.pop %v2017
    %v2020 = vrcp.pop %v2018
    %v2021 = vmul.f32 %v2008, %v2019
    %v2022 = vmul.f32 %v2010, %v2020
    %2023 = vrot.lane.b32.xlu0 %v1690, 48
    %v2024 = vpop.permute.xlu0 %2023
    %2025 = vrot.lane.b32.xlu0 %v1695, 48
    %v2026 = vpop.permute.xlu0 %2025
    %v2030 = vsel %vm360, %v2021, 0
    %v2033 = vsel %vm360, %v2022, 0
    %2035 = vmatprep.subr.mxu0 0.0
    %2036 = vmatpush1.msra.mxu0 %v2024
    %2037 = vmatprep.subr.mxu0 0.0
    %2038 = vmatpush1.msra.mxu0 %v2026
    %2039 = vmatprep.subr.mxu0 0.0
    %2040 = vmatpush1.msra.mxu0 0.0
    %2041 = vmatprep.subr.mxu0 0.0
    %2042 = vmatpush1.msra.mxu0 0.0
    %2043 = vmatprep.subr.mxu0 0.0
    %2044 = vmatpush1.msra.mxu0 0.0
    %2045 = vmatprep.subr.mxu0 0.0
    %2046 = vmatpush1.msra.mxu0 0.0
    %2047 = vmatprep.subr.mxu0 0.0
    %2048 = vmatpush1.msra.mxu0 0.0
    %2049 = vmatprep.subr.mxu0 0.0
    %2050 = vmatpush1.msra.mxu0 0.0
    %2051 = vmatprep.subr.mxu0 0.0
    %2052 = vmatpush1.msra.mxu0 0.0
    %2053 = vmatprep.subr.mxu0 0.0
    %2054 = vmatpush1.msra.mxu0 0.0
    %2055 = vmatprep.subr.mxu0 0.0
    %2056 = vmatpush1.msra.mxu0 0.0
    %2057 = vmatprep.subr.mxu0 0.0
    %2058 = vmatpush1.msra.mxu0 0.0
    %2059 = vmatprep.subr.mxu0 0.0
    %2060 = vmatpush1.msra.mxu0 0.0
    %2061 = vmatprep.subr.mxu0 0.0
    %2062 = vmatpush1.msra.mxu0 0.0
    %2063 = vmatprep.subr.mxu0 0.0
    %2064 = vmatpush1.msra.mxu0 0.0
    %2065 = vmatprep.subr.mxu0 0.0
    %2066 = vmatpush1.msra.mxu0 0.0
    %2067 = vmatprep.subr.mxu0 0.0
    %2068 = vmatpush1.msra.mxu0 0.0
    %2069 = vmatprep.subr.mxu0 0.0
    %2070 = vmatpush1.msra.mxu0 0.0
    %2071 = vmatprep.subr.mxu0 0.0
    %2072 = vmatpush1.msra.mxu0 0.0
    %2073 = vmatprep.subr.mxu0 0.0
    %2074 = vmatpush1.msra.mxu0 0.0
    %2075 = vmatprep.subr.mxu0 0.0
    %2076 = vmatpush1.msra.mxu0 0.0
    %2077 = vmatprep.subr.mxu0 0.0
    %2078 = vmatpush1.msra.mxu0 0.0
    %2079 = vmatprep.subr.mxu0 0.0
    %2080 = vmatpush1.msra.mxu0 0.0
    %2081 = vmatprep.subr.mxu0 0.0
    %2082 = vmatpush1.msra.mxu0 0.0
    %2083 = vmatprep.subr.mxu0 0.0
    %2084 = vmatpush1.msra.mxu0 0.0
    %2085 = vmatprep.subr.mxu0 0.0
    %2086 = vmatpush1.msra.mxu0 0.0
    %2087 = vmatprep.subr.mxu0 0.0
    %2088 = vmatpush1.msra.mxu0 0.0
    %2089 = vmatprep.subr.mxu0 0.0
    %2090 = vmatpush1.msra.mxu0 0.0
    %2091 = vmatprep.subr.mxu0 0.0
    %2092 = vmatpush1.msra.mxu0 0.0
    %2093 = vmatprep.subr.mxu0 0.0
    %2094 = vmatpush1.msra.mxu0 0.0
    %2095 = vmatprep.subr.mxu0 0.0
    %2096 = vmatpush1.msra.mxu0 0.0
    %2097 = vmatprep.subr.mxu0 0.0
    %2098 = vmatpush1.msra.mxu0 0.0
    %2099 = vmatprep.mubr.f32.mxu0 0.0
    %2100 = vmatmul.mubr.f32.gmra.mrb[0].mxu0 %v2030
    %v2101 = vpop.f32.mrb[0].mxu0
    %v2102 = vadd.f32 0.0, %v2101
    %v2103 = vpop.f32.mrb[0].mxu0
    %2104 = vmatprep.mubr.f32.mxu0 0.0
    %2105 = vmatmul.mubr.f32.gmra.mrb[0].mxu0 %v2033
    %v2106 = vpop.f32.mrb[0].mxu0
    %v2107 = vadd.f32 0.0, %v2106
    %v2108 = vpop.f32.mrb[0].mxu0
    %2109 = vdwg.mxu0
    %v2110 = vld [vmem:[%s1607 + $0x30] sm:$0xff]
    %v2111 = vld [vmem:[%s1607 + $0x38] sm:$0xff]
    %v2113 = vsel %vm360, %v2102, 0
    %v2116 = vsel %vm360, %v2107, 0
    %2118 = vmatprep.subr.mxu0 0.0
    %2119 = vmatpush1.msra.mxu0 %v2110
    %2120 = vmatprep.subr.mxu0 0.0
    %2121 = vmatpush1.msra.mxu0 %v2111
    %2122 = vmatprep.subr.mxu0 0.0
    %2123 = vmatpush1.msra.mxu0 0.0
    %2124 = vmatprep.subr.mxu0 0.0
    %2125 = vmatpush1.msra.mxu0 0.0
    %2126 = vmatprep.subr.mxu0 0.0
    %2127 = vmatpush1.msra.mxu0 0.0
    %2128 = vmatprep.subr.mxu0 0.0
    %2129 = vmatpush1.msra.mxu0 0.0
    %2130 = vmatprep.subr.mxu0 0.0
    %2131 = vmatpush1.msra.mxu0 0.0
    %2132 = vmatprep.subr.mxu0 0.0
    %2133 = vmatpush1.msra.mxu0 0.0
    %2134 = vmatprep.subr.mxu0 0.0
    %2135 = vmatpush1.msra.mxu0 0.0
    %2136 = vmatprep.subr.mxu0 0.0
    %2137 = vmatpush1.msra.mxu0 0.0
    %2138 = vmatprep.subr.mxu0 0.0
    %2139 = vmatpush1.msra.mxu0 0.0
    %2140 = vmatprep.subr.mxu0 0.0
    %2141 = vmatpush1.msra.mxu0 0.0
    %2142 = vmatprep.subr.mxu0 0.0
    %2143 = vmatpush1.msra.mxu0 0.0
    %2144 = vmatprep.subr.mxu0 0.0
    %2145 = vmatpush1.msra.mxu0 0.0
    %2146 = vmatprep.subr.mxu0 0.0
    %2147 = vmatpush1.msra.mxu0 0.0
    %2148 = vmatprep.subr.mxu0 0.0
    %2149 = vmatpush1.msra.mxu0 0.0
    %2150 = vmatprep.subr.mxu0 0.0
    %2151 = vmatpush1.msra.mxu0 0.0
    %2152 = vmatprep.subr.mxu0 0.0
    %2153 = vmatpush1.msra.mxu0 0.0
    %2154 = vmatprep.subr.mxu0 0.0
    %2155 = vmatpush1.msra.mxu0 0.0
    %2156 = vmatprep.subr.mxu0 0.0
    %2157 = vmatpush1.msra.mxu0 0.0
    %2158 = vmatprep.subr.mxu0 0.0
    %2159 = vmatpush1.msra.mxu0 0.0
    %2160 = vmatprep.subr.mxu0 0.0
    %2161 = vmatpush1.msra.mxu0 0.0
    %2162 = vmatprep.subr.mxu0 0.0
    %2163 = vmatpush1.msra.mxu0 0.0
    %2164 = vmatprep.subr.mxu0 0.0
    %2165 = vmatpush1.msra.mxu0 0.0
    %2166 = vmatprep.subr.mxu0 0.0
    %2167 = vmatpush1.msra.mxu0 0.0
    %2168 = vmatprep.subr.mxu0 0.0
    %2169 = vmatpush1.msra.mxu0 0.0
    %2170 = vmatprep.subr.mxu0 0.0
    %2171 = vmatpush1.msra.mxu0 0.0
    %2172 = vmatprep.subr.mxu0 0.0
    %2173 = vmatpush1.msra.mxu0 0.0
    %2174 = vmatprep.subr.mxu0 0.0
    %2175 = vmatpush1.msra.mxu0 0.0
    %2176 = vmatprep.subr.mxu0 0.0
    %2177 = vmatpush1.msra.mxu0 0.0
    %2178 = vmatprep.subr.mxu0 0.0
    %2179 = vmatpush1.msra.mxu0 0.0
    %2180 = vmatprep.subr.mxu0 0.0
    %2181 = vmatpush1.msra.mxu0 0.0
    %2182 = vmatprep.mubr.f32.mxu0 0.0
    %2183 = vmatmul.mubr.f32.gmra.mrb[0].mxu0 %v2113
    %v2184 = vpop.f32.mrb[0].mxu0
    %v2185 = vadd.f32 0.0, %v2184
    %v2186 = vpop.f32.mrb[0].mxu0
    %2187 = vmatprep.mubr.f32.mxu0 0.0
    %2188 = vmatmul.mubr.f32.gmra.mrb[0].mxu0 %v2116
    %v2189 = vpop.f32.mrb[0].mxu0
    %v2190 = vadd.f32 0.0, %v2189
    %v2191 = vpop.f32.mrb[0].mxu0
    %2192 = vdwg.mxu0
    %v2194 = vsel %vm360, %v1894, 0
    %v2197 = vsel %vm360, %v1899, 0
    %2199 = vmatprep.subr.mxu0 0.0
    %2200 = vmatpush1.msra.mxu0 %v1902
    %2201 = vmatprep.subr.mxu0 0.0
    %2202 = vmatpush1.msra.mxu0 %v1903
    %2203 = vmatprep.subr.mxu0 0.0
    %2204 = vmatpush1.msra.mxu0 0.0
    %2205 = vmatprep.subr.mxu0 0.0
    %2206 = vmatpush1.msra.mxu0 0.0
    %2207 = vmatprep.subr.mxu0 0.0
    %2208 = vmatpush1.msra.mxu0 0.0
    %2209 = vmatprep.subr.mxu0 0.0
    %2210 = vmatpush1.msra.mxu0 0.0
    %2211 = vmatprep.subr.mxu0 0.0
    %2212 = vmatpush1.msra.mxu0 0.0
    %2213 = vmatprep.subr.mxu0 0.0
    %2214 = vmatpush1.msra.mxu0 0.0
    %2215 = vmatprep.subr.mxu0 0.0
    %2216 = vmatpush1.msra.mxu0 0.0
    %2217 = vmatprep.subr.mxu0 0.0
    %2218 = vmatpush1.msra.mxu0 0.0
    %2219 = vmatprep.subr.mxu0 0.0
    %2220 = vmatpush1.msra.mxu0 0.0
    %2221 = vmatprep.subr.mxu0 0.0
    %2222 = vmatpush1.msra.mxu0 0.0
    %2223 = vmatprep.subr.mxu0 0.0
    %2224 = vmatpush1.msra.mxu0 0.0
    %2225 = vmatprep.subr.mxu0 0.0
    %2226 = vmatpush1.msra.mxu0 0.0
    %2227 = vmatprep.subr.mxu0 0.0
    %2228 = vmatpush1.msra.mxu0 0.0
    %2229 = vmatprep.subr.mxu0 0.0
    %2230 = vmatpush1.msra.mxu0 0.0
    %2231 = vmatprep.subr.mxu0 0.0
    %2232 = vmatpush1.msra.mxu0 0.0
    %2233 = vmatprep.subr.mxu0 0.0
    %2234 = vmatpush1.msra.mxu0 0.0
    %2235 = vmatprep.subr.mxu0 0.0
    %2236 = vmatpush1.msra.mxu0 0.0
    %2237 = vmatprep.subr.mxu0 0.0
    %2238 = vmatpush1.msra.mxu0 0.0
    %2239 = vmatprep.subr.mxu0 0.0
    %2240 = vmatpush1.msra.mxu0 0.0
    %2241 = vmatprep.subr.mxu0 0.0
    %2242 = vmatpush1.msra.mxu0 0.0
    %2243 = vmatprep.subr.mxu0 0.0
    %2244 = vmatpush1.msra.mxu0 0.0
    %2245 = vmatprep.subr.mxu0 0.0
    %2246 = vmatpush1.msra.mxu0 0.0
    %2247 = vmatprep.subr.mxu0 0.0
    %2248 = vmatpush1.msra.mxu0 0.0
    %2249 = vmatprep.subr.mxu0 0.0
    %2250 = vmatpush1.msra.mxu0 0.0
    %2251 = vmatprep.subr.mxu0 0.0
    %2252 = vmatpush1.msra.mxu0 0.0
    %2253 = vmatprep.subr.mxu0 0.0
    %2254 = vmatpush1.msra.mxu0 0.0
    %2255 = vmatprep.subr.mxu0 0.0
    %2256 = vmatpush1.msra.mxu0 0.0
    %2257 = vmatprep.subr.mxu0 0.0
    %2258 = vmatpush1.msra.mxu0 0.0
    %2259 = vmatprep.subr.mxu0 0.0
    %2260 = vmatpush1.msra.mxu0 0.0
    %2261 = vmatprep.subr.mxu0 0.0
    %2262 = vmatpush1.msra.mxu0 0.0
    %2263 = vmatprep.mubr.f32.mxu0 0.0
    %2264 = vmatmul.mubr.f32.gmra.mrb[0].mxu0 %v2194
    %v2265 = vpop.f32.mrb[0].mxu0
    %v2266 = vadd.f32 %v2185, %v2265
    %v2267 = vpop.f32.mrb[0].mxu0
    %2268 = vmatprep.mubr.f32.mxu0 0.0
    %2269 = vmatmul.mubr.f32.gmra.mrb[0].mxu0 %v2197
    %v2270 = vpop.f32.mrb[0].mxu0
    %v2271 = vadd.f32 %v2190, %v2270
    %v2272 = vpop.f32.mrb[0].mxu0
    %2273 = vdwg.mxu0
    %v2274 = vlaneseq
    %v2275 = vshrl.u32 %v2274, 7
    %v2276 = vsub.s32 1, %v2275
    %v2277 = vrot.slane %v1608, %v2276
    %v2278 = vadd.f32 %v2266, %v2277
    %v2279 = vadd.f32 %v2271, %v2277
    %v2280 = vadd.f32 %v2278, %v1605
    %v2281 = vadd.f32 %v2279, %v1606
    %v2282 = vsel %vm272, %v2280, 0.0
    %2283 = vadd.xlane.f32.xlu0 %v2282
    %v2284 = vpop.xlane.xlu0 %2283
    %v2285 = vsel %vm272, %v2281, 0.0
    %2286 = vadd.xlane.f32.xlu0 %v2285
    %v2287 = vpop.xlane.xlu0 %2286
    %v2288 = vmul.f32 %v2284, %v945
    %v2289 = vmul.f32 %v2287, %v945
    %v2290 = vmul.f32 %v2280, %v2280
    %v2291 = vmul.f32 %v2281, %v2281
    %v2292 = vsel %vm272, %v2290, 0.0
    %2293 = vadd.xlane.f32.xlu0 %v2292
    %v2294 = vpop.xlane.xlu0 %2293
    %v2295 = vsel %vm272, %v2291, 0.0
    %2296 = vadd.xlane.f32.xlu0 %v2295
    %v2297 = vpop.xlane.xlu0 %2296
    %v2298 = vmul.f32 %v2294, %v945
    %v2299 = vmul.f32 %v2297, %v945
    %v2300 = vmul.f32 %v2288, %v2288
    %v2301 = vmul.f32 %v2289, %v2289
    %v2302 = vsub.f32 %v2298, %v2300
    %v2303 = vsub.f32 %v2299, %v2301
    %v2304 = vsub.f32 %v2280, %v2288
    %v2305 = vsub.f32 %v2281, %v2289
    %v2306 = vadd.f32 %v2302, 1e-05
    %v2307 = vadd.f32 %v2303, 1e-05
    %v2308 = vrsqrt.pop %v2306
    %v2309 = vrsqrt.pop %v2307
    %v2310 = vmul.f32 %v2304, %v2308
    %v2311 = vmul.f32 %v2305, %v2309
    %v2312 = vlaneseq
    %v2313 = vshrl.u32 %v2312, 7
    %v2314 = vsub.s32 4, %v2313
    %v2315 = vrot.slane %v1608, %v2314
    %v2316 = vmul.f32 %v2310, %v2315
    %v2317 = vmul.f32 %v2311, %v2315
    %v2318 = vlaneseq
    %v2319 = vshrl.u32 %v2318, 7
    %v2320 = vsub.s32 5, %v2319
    %v2321 = vrot.slane %v1608, %v2320
    %v2322 = vadd.f32 %v2316, %v2321
    %v2323 = vadd.f32 %v2317, %v2321
    %v2324 = vmul.f32 %v2322, %v985
    %v2325 = vmul.f32 %v2323, %v990
    %v2326 = vrot.slane %v2324, 7
    %v2327 = vrot.slane %v2325, 7
    %v2328 = vsel %vm996, %v2326, %v2327
    %v2329 = vsel %vm996, %v2327, %v2326
    %v2330 = vmul.f32 %v2329, %v255
    %v2331 = vmul.f32 %v2328, %v256
    %v2332 = vrot.slane %v2324, 1
    %v2333 = vrot.slane %v2325, 1
    %v2334 = vsel %vm1003, %v2332, %v2333
    %v2335 = vsel %vm1003, %v2333, %v2332
    %v2336 = vmul.f32 %v2334, %v261
    %v2337 = vmul.f32 %v2335, %v262
    %v2338 = vld [vmem:[%s1607 + $0x48] sm:$0xff]
    %v2339 = vld [vmem:[%s1607 + $0x50] sm:$0xff]
    %v2340 = vld [vmem:[%s1607 + $0x58] sm:$0xff]
    %v2341 = vld [vmem:[%s1607 + $0x60] sm:$0xff]
    %v2342 = vld [vmem:[%s1607 + $0x68] sm:$0xff]
    %v2343 = vld [vmem:[%s1607 + $0x70] sm:$0xff]
    %v2344 = vld [vmem:[%s1607 + $0x78] sm:$0xff]
    %v2345 = vld [vmem:[%s1607 + $0x80] sm:$0xff]
    %v2347 = vsel %vm272, %v2324, 0
    %v2350 = vsel %vm272, %v2325, 0
    %2352 = vmatprep.subr.mxu0 0.0
    %2353 = vmatpush1.msra.mxu0 %v2342
    %2354 = vmatprep.subr.mxu0 0.0
    %2355 = vmatpush1.msra.mxu0 %v2343
    %2356 = vmatprep.subr.mxu0 0.0
    %2357 = vmatpush1.msra.mxu0 %v2344
    %2358 = vmatprep.subr.mxu0 0.0
    %2359 = vmatpush1.msra.mxu0 %v2345
    %2360 = vmatprep.subr.mxu0 0.0
    %2361 = vmatpush1.msra.mxu0 0.0
    %2362 = vmatprep.subr.mxu0 0.0
    %2363 = vmatpush1.msra.mxu0 0.0
    %2364 = vmatprep.subr.mxu0 0.0
    %2365 = vmatpush1.msra.mxu0 0.0
    %2366 = vmatprep.subr.mxu0 0.0
    %2367 = vmatpush1.msra.mxu0 0.0
    %2368 = vmatprep.subr.mxu0 0.0
    %2369 = vmatpush1.msra.mxu0 0.0
    %2370 = vmatprep.subr.mxu0 0.0
    %2371 = vmatpush1.msra.mxu0 0.0
    %2372 = vmatprep.subr.mxu0 0.0
    %2373 = vmatpush1.msra.mxu0 0.0
    %2374 = vmatprep.subr.mxu0 0.0
    %2375 = vmatpush1.msra.mxu0 0.0
    %2376 = vmatprep.subr.mxu0 0.0
    %2377 = vmatpush1.msra.mxu0 0.0
    %2378 = vmatprep.subr.mxu0 0.0
    %2379 = vmatpush1.msra.mxu0 0.0
    %2380 = vmatprep.subr.mxu0 0.0
    %2381 = vmatpush1.msra.mxu0 0.0
    %2382 = vmatprep.subr.mxu0 0.0
    %2383 = vmatpush1.msra.mxu0 0.0
    %2384 = vmatprep.subr.mxu0 0.0
    %2385 = vmatpush1.msra.mxu0 0.0
    %2386 = vmatprep.subr.mxu0 0.0
    %2387 = vmatpush1.msra.mxu0 0.0
    %2388 = vmatprep.subr.mxu0 0.0
    %2389 = vmatpush1.msra.mxu0 0.0
    %2390 = vmatprep.subr.mxu0 0.0
    %2391 = vmatpush1.msra.mxu0 0.0
    %2392 = vmatprep.subr.mxu0 0.0
    %2393 = vmatpush1.msra.mxu0 0.0
    %2394 = vmatprep.subr.mxu0 0.0
    %2395 = vmatpush1.msra.mxu0 0.0
    %2396 = vmatprep.subr.mxu0 0.0
    %2397 = vmatpush1.msra.mxu0 0.0
    %2398 = vmatprep.subr.mxu0 0.0
    %2399 = vmatpush1.msra.mxu0 0.0
    %2400 = vmatprep.subr.mxu0 0.0
    %2401 = vmatpush1.msra.mxu0 0.0
    %2402 = vmatprep.subr.mxu0 0.0
    %2403 = vmatpush1.msra.mxu0 0.0
    %2404 = vmatprep.subr.mxu0 0.0
    %2405 = vmatpush1.msra.mxu0 0.0
    %2406 = vmatprep.subr.mxu0 0.0
    %2407 = vmatpush1.msra.mxu0 0.0
    %2408 = vmatprep.subr.mxu0 0.0
    %2409 = vmatpush1.msra.mxu0 0.0
    %2410 = vmatprep.subr.mxu0 0.0
    %2411 = vmatpush1.msra.mxu0 0.0
    %2412 = vmatprep.subr.mxu0 0.0
    %2413 = vmatpush1.msra.mxu0 0.0
    %2414 = vmatprep.subr.mxu0 0.0
    %2415 = vmatpush1.msra.mxu0 0.0
    %2416 = vmatprep.mubr.f32.mxu0 0.0
    %2417 = vmatmul.mubr.f32.gmra.mrb[0].mxu0 %v2347
    %v2418 = vpop.f32.mrb[0].mxu0
    %v2419 = vadd.f32 0.0, %v2418
    %v2420 = vpop.f32.mrb[0].mxu0
    %2421 = vmatprep.mubr.f32.mxu0 0.0
    %2422 = vmatmul.mubr.f32.gmra.mrb[0].mxu0 %v2350
    %v2423 = vpop.f32.mrb[0].mxu0
    %v2424 = vadd.f32 0.0, %v2423
    %v2425 = vpop.f32.mrb[0].mxu0
    %2426 = vdwg.mxu0
    %v2428 = vsel %vm272, %v2330, 0
    %v2431 = vsel %vm272, %v2331, 0
    %2433 = vmatprep.subr.mxu0 0.0
    %2434 = vmatpush1.msra.mxu0 %v2338
    %2435 = vmatprep.subr.mxu0 0.0
    %2436 = vmatpush1.msra.mxu0 %v2339
    %2437 = vmatprep.subr.mxu0 0.0
    %2438 = vmatpush1.msra.mxu0 %v2340
    %2439 = vmatprep.subr.mxu0 0.0
    %2440 = vmatpush1.msra.mxu0 %v2341
    %2441 = vmatprep.subr.mxu0 0.0
    %2442 = vmatpush1.msra.mxu0 0.0
    %2443 = vmatprep.subr.mxu0 0.0
    %2444 = vmatpush1.msra.mxu0 0.0
    %2445 = vmatprep.subr.mxu0 0.0
    %2446 = vmatpush1.msra.mxu0 0.0
    %2447 = vmatprep.subr.mxu0 0.0
    %2448 = vmatpush1.msra.mxu0 0.0
    %2449 = vmatprep.subr.mxu0 0.0
    %2450 = vmatpush1.msra.mxu0 0.0
    %2451 = vmatprep.subr.mxu0 0.0
    %2452 = vmatpush1.msra.mxu0 0.0
    %2453 = vmatprep.subr.mxu0 0.0
    %2454 = vmatpush1.msra.mxu0 0.0
    %2455 = vmatprep.subr.mxu0 0.0
    %2456 = vmatpush1.msra.mxu0 0.0
    %2457 = vmatprep.subr.mxu0 0.0
    %2458 = vmatpush1.msra.mxu0 0.0
    %2459 = vmatprep.subr.mxu0 0.0
    %2460 = vmatpush1.msra.mxu0 0.0
    %2461 = vmatprep.subr.mxu0 0.0
    %2462 = vmatpush1.msra.mxu0 0.0
    %2463 = vmatprep.subr.mxu0 0.0
    %2464 = vmatpush1.msra.mxu0 0.0
    %2465 = vmatprep.subr.mxu0 0.0
    %2466 = vmatpush1.msra.mxu0 0.0
    %2467 = vmatprep.subr.mxu0 0.0
    %2468 = vmatpush1.msra.mxu0 0.0
    %2469 = vmatprep.subr.mxu0 0.0
    %2470 = vmatpush1.msra.mxu0 0.0
    %2471 = vmatprep.subr.mxu0 0.0
    %2472 = vmatpush1.msra.mxu0 0.0
    %2473 = vmatprep.subr.mxu0 0.0
    %2474 = vmatpush1.msra.mxu0 0.0
    %2475 = vmatprep.subr.mxu0 0.0
    %2476 = vmatpush1.msra.mxu0 0.0
    %2477 = vmatprep.subr.mxu0 0.0
    %2478 = vmatpush1.msra.mxu0 0.0
    %2479 = vmatprep.subr.mxu0 0.0
    %2480 = vmatpush1.msra.mxu0 0.0
    %2481 = vmatprep.subr.mxu0 0.0
    %2482 = vmatpush1.msra.mxu0 0.0
    %2483 = vmatprep.subr.mxu0 0.0
    %2484 = vmatpush1.msra.mxu0 0.0
    %2485 = vmatprep.subr.mxu0 0.0
    %2486 = vmatpush1.msra.mxu0 0.0
    %2487 = vmatprep.subr.mxu0 0.0
    %2488 = vmatpush1.msra.mxu0 0.0
    %2489 = vmatprep.subr.mxu0 0.0
    %2490 = vmatpush1.msra.mxu0 0.0
    %2491 = vmatprep.subr.mxu0 0.0
    %2492 = vmatpush1.msra.mxu0 0.0
    %2493 = vmatprep.subr.mxu0 0.0
    %2494 = vmatpush1.msra.mxu0 0.0
    %2495 = vmatprep.subr.mxu0 0.0
    %2496 = vmatpush1.msra.mxu0 0.0
    %2497 = vmatprep.mubr.f32.mxu0 0.0
    %2498 = vmatmul.mubr.f32.gmra.mrb[0].mxu0 %v2428
    %v2499 = vpop.f32.mrb[0].mxu0
    %v2500 = vadd.f32 %v2419, %v2499
    %v2501 = vpop.f32.mrb[0].mxu0
    %2502 = vmatprep.mubr.f32.mxu0 0.0
    %2503 = vmatmul.mubr.f32.gmra.mrb[0].mxu0 %v2431
    %v2504 = vpop.f32.mrb[0].mxu0
    %v2505 = vadd.f32 %v2424, %v2504
    %v2506 = vpop.f32.mrb[0].mxu0
    %2507 = vdwg.mxu0
    %v2508 = vld [vmem:[%s1607 + $0x88] sm:$0xff]
    %v2509 = vld [vmem:[%s1607 + $0x90] sm:$0xff]
    %v2510 = vld [vmem:[%s1607 + $0x98] sm:$0xff]
    %v2511 = vld [vmem:[%s1607 + $0xa0] sm:$0xff]
    %v2513 = vsel %vm272, %v2336, 0
    %v2516 = vsel %vm272, %v2337, 0
    %2518 = vmatprep.subr.mxu0 0.0
    %2519 = vmatpush1.msra.mxu0 %v2508
    %2520 = vmatprep.subr.mxu0 0.0
    %2521 = vmatpush1.msra.mxu0 %v2509
    %2522 = vmatprep.subr.mxu0 0.0
    %2523 = vmatpush1.msra.mxu0 %v2510
    %2524 = vmatprep.subr.mxu0 0.0
    %2525 = vmatpush1.msra.mxu0 %v2511
    %2526 = vmatprep.subr.mxu0 0.0
    %2527 = vmatpush1.msra.mxu0 0.0
    %2528 = vmatprep.subr.mxu0 0.0
    %2529 = vmatpush1.msra.mxu0 0.0
    %2530 = vmatprep.subr.mxu0 0.0
    %2531 = vmatpush1.msra.mxu0 0.0
    %2532 = vmatprep.subr.mxu0 0.0
    %2533 = vmatpush1.msra.mxu0 0.0
    %2534 = vmatprep.subr.mxu0 0.0
    %2535 = vmatpush1.msra.mxu0 0.0
    %2536 = vmatprep.subr.mxu0 0.0
    %2537 = vmatpush1.msra.mxu0 0.0
    %2538 = vmatprep.subr.mxu0 0.0
    %2539 = vmatpush1.msra.mxu0 0.0
    %2540 = vmatprep.subr.mxu0 0.0
    %2541 = vmatpush1.msra.mxu0 0.0
    %2542 = vmatprep.subr.mxu0 0.0
    %2543 = vmatpush1.msra.mxu0 0.0
    %2544 = vmatprep.subr.mxu0 0.0
    %2545 = vmatpush1.msra.mxu0 0.0
    %2546 = vmatprep.subr.mxu0 0.0
    %2547 = vmatpush1.msra.mxu0 0.0
    %2548 = vmatprep.subr.mxu0 0.0
    %2549 = vmatpush1.msra.mxu0 0.0
    %2550 = vmatprep.subr.mxu0 0.0
    %2551 = vmatpush1.msra.mxu0 0.0
    %2552 = vmatprep.subr.mxu0 0.0
    %2553 = vmatpush1.msra.mxu0 0.0
    %2554 = vmatprep.subr.mxu0 0.0
    %2555 = vmatpush1.msra.mxu0 0.0
    %2556 = vmatprep.subr.mxu0 0.0
    %2557 = vmatpush1.msra.mxu0 0.0
    %2558 = vmatprep.subr.mxu0 0.0
    %2559 = vmatpush1.msra.mxu0 0.0
    %2560 = vmatprep.subr.mxu0 0.0
    %2561 = vmatpush1.msra.mxu0 0.0
    %2562 = vmatprep.subr.mxu0 0.0
    %2563 = vmatpush1.msra.mxu0 0.0
    %2564 = vmatprep.subr.mxu0 0.0
    %2565 = vmatpush1.msra.mxu0 0.0
    %2566 = vmatprep.subr.mxu0 0.0
    %2567 = vmatpush1.msra.mxu0 0.0
    %2568 = vmatprep.subr.mxu0 0.0
    %2569 = vmatpush1.msra.mxu0 0.0
    %2570 = vmatprep.subr.mxu0 0.0
    %2571 = vmatpush1.msra.mxu0 0.0
    %2572 = vmatprep.subr.mxu0 0.0
    %2573 = vmatpush1.msra.mxu0 0.0
    %2574 = vmatprep.subr.mxu0 0.0
    %2575 = vmatpush1.msra.mxu0 0.0
    %2576 = vmatprep.subr.mxu0 0.0
    %2577 = vmatpush1.msra.mxu0 0.0
    %2578 = vmatprep.subr.mxu0 0.0
    %2579 = vmatpush1.msra.mxu0 0.0
    %2580 = vmatprep.subr.mxu0 0.0
    %2581 = vmatpush1.msra.mxu0 0.0
    %2582 = vmatprep.mubr.f32.mxu0 0.0
    %2583 = vmatmul.mubr.f32.gmra.mrb[0].mxu0 %v2513
    %v2584 = vpop.f32.mrb[0].mxu0
    %v2585 = vadd.f32 0.0, %v2584
    %v2586 = vpop.f32.mrb[0].mxu0
    %2587 = vmatprep.mubr.f32.mxu0 0.0
    %2588 = vmatmul.mubr.f32.gmra.mrb[0].mxu0 %v2516
    %v2589 = vpop.f32.mrb[0].mxu0
    %v2590 = vadd.f32 0.0, %v2589
    %v2591 = vpop.f32.mrb[0].mxu0
    %2592 = vdwg.mxu0
    %v2593 = vadd.f32 %v2500, %v2585
    %v2594 = vadd.f32 %v2505, %v2590
    %v2595 = vlaneseq
    %v2596 = vshrl.u32 %v2595, 7
    %v2597 = vsub.s32 2, %v2596
    %v2598 = vrot.slane %v1608, %v2597
    %v2599 = vadd.f32 %v2593, %v2598
    %v2600 = vadd.f32 %v2594, %v2598
    %v2601 = vmax.f32 %v2599, 0.0
    %v2602 = vmax.f32 %v2600, 0.0
    %v2603 = vrot.slane %v2601, 7
    %v2604 = vrot.slane %v2602, 7
    %v2605 = vsel %vm996, %v2603, %v2604
    %v2606 = vsel %vm996, %v2604, %v2603
    %v2607 = vmul.f32 %v2606, %v255
    %v2608 = vmul.f32 %v2605, %v256
    %v2609 = vrot.slane %v2601, 1
    %v2610 = vrot.slane %v2602, 1
    %v2611 = vsel %vm1003, %v2609, %v2610
    %v2612 = vsel %vm1003, %v2610, %v2609
    %v2613 = vmul.f32 %v2611, %v261
    %v2614 = vmul.f32 %v2612, %v262
    %v2615 = vld [vmem:[%s1607 + $0xa8] sm:$0xff]
    %v2616 = vld [vmem:[%s1607 + $0xb0] sm:$0xff]
    %v2617 = vld [vmem:[%s1607 + $0xb8] sm:$0xff]
    %v2618 = vld [vmem:[%s1607 + $0xc0] sm:$0xff]
    %v2619 = vld [vmem:[%s1607 + $0xc8] sm:$0xff]
    %v2620 = vld [vmem:[%s1607 + $0xd0] sm:$0xff]
    %v2621 = vld [vmem:[%s1607 + $0xd8] sm:$0xff]
    %v2622 = vld [vmem:[%s1607 + $0xe0] sm:$0xff]
    %v2623 = vld [vmem:[%s1607 + $0xe8] sm:$0xff]
    %v2624 = vld [vmem:[%s1607 + $0xf0] sm:$0xff]
    %v2625 = vld [vmem:[%s1607 + $0xf8] sm:$0xff]
    %v2626 = vld [vmem:[%s1607 + $0x100] sm:$0xff]
    %v2627 = vld [vmem:[%s1607 + $0x108] sm:$0xff]
    %v2628 = vld [vmem:[%s1607 + $0x110] sm:$0xff]
    %v2629 = vld [vmem:[%s1607 + $0x118] sm:$0xff]
    %v2630 = vld [vmem:[%s1607 + $0x120] sm:$0xff]
    %v2632 = vsel %vm1301, %v2601, 0
    %v2635 = vsel %vm1301, %v2602, 0
    %2637 = vmatprep.subr.mxu0 0.0
    %2638 = vmatpush1.msra.mxu0 %v2623
    %2639 = vmatprep.subr.mxu0 0.0
    %2640 = vmatpush1.msra.mxu0 %v2624
    %2641 = vmatprep.subr.mxu0 0.0
    %2642 = vmatpush1.msra.mxu0 %v2625
    %2643 = vmatprep.subr.mxu0 0.0
    %2644 = vmatpush1.msra.mxu0 %v2626
    %2645 = vmatprep.subr.mxu0 0.0
    %2646 = vmatpush1.msra.mxu0 %v2627
    %2647 = vmatprep.subr.mxu0 0.0
    %2648 = vmatpush1.msra.mxu0 %v2628
    %2649 = vmatprep.subr.mxu0 0.0
    %2650 = vmatpush1.msra.mxu0 %v2629
    %2651 = vmatprep.subr.mxu0 0.0
    %2652 = vmatpush1.msra.mxu0 %v2630
    %2653 = vmatprep.subr.mxu0 0.0
    %2654 = vmatpush1.msra.mxu0 0.0
    %2655 = vmatprep.subr.mxu0 0.0
    %2656 = vmatpush1.msra.mxu0 0.0
    %2657 = vmatprep.subr.mxu0 0.0
    %2658 = vmatpush1.msra.mxu0 0.0
    %2659 = vmatprep.subr.mxu0 0.0
    %2660 = vmatpush1.msra.mxu0 0.0
    %2661 = vmatprep.subr.mxu0 0.0
    %2662 = vmatpush1.msra.mxu0 0.0
    %2663 = vmatprep.subr.mxu0 0.0
    %2664 = vmatpush1.msra.mxu0 0.0
    %2665 = vmatprep.subr.mxu0 0.0
    %2666 = vmatpush1.msra.mxu0 0.0
    %2667 = vmatprep.subr.mxu0 0.0
    %2668 = vmatpush1.msra.mxu0 0.0
    %2669 = vmatprep.subr.mxu0 0.0
    %2670 = vmatpush1.msra.mxu0 0.0
    %2671 = vmatprep.subr.mxu0 0.0
    %2672 = vmatpush1.msra.mxu0 0.0
    %2673 = vmatprep.subr.mxu0 0.0
    %2674 = vmatpush1.msra.mxu0 0.0
    %2675 = vmatprep.subr.mxu0 0.0
    %2676 = vmatpush1.msra.mxu0 0.0
    %2677 = vmatprep.subr.mxu0 0.0
    %2678 = vmatpush1.msra.mxu0 0.0
    %2679 = vmatprep.subr.mxu0 0.0
    %2680 = vmatpush1.msra.mxu0 0.0
    %2681 = vmatprep.subr.mxu0 0.0
    %2682 = vmatpush1.msra.mxu0 0.0
    %2683 = vmatprep.subr.mxu0 0.0
    %2684 = vmatpush1.msra.mxu0 0.0
    %2685 = vmatprep.subr.mxu0 0.0
    %2686 = vmatpush1.msra.mxu0 0.0
    %2687 = vmatprep.subr.mxu0 0.0
    %2688 = vmatpush1.msra.mxu0 0.0
    %2689 = vmatprep.subr.mxu0 0.0
    %2690 = vmatpush1.msra.mxu0 0.0
    %2691 = vmatprep.subr.mxu0 0.0
    %2692 = vmatpush1.msra.mxu0 0.0
    %2693 = vmatprep.subr.mxu0 0.0
    %2694 = vmatpush1.msra.mxu0 0.0
    %2695 = vmatprep.subr.mxu0 0.0
    %2696 = vmatpush1.msra.mxu0 0.0
    %2697 = vmatprep.subr.mxu0 0.0
    %2698 = vmatpush1.msra.mxu0 0.0
    %2699 = vmatprep.subr.mxu0 0.0
    %2700 = vmatpush1.msra.mxu0 0.0
    %2701 = vmatprep.mubr.f32.mxu0 0.0
    %2702 = vmatmul.mubr.f32.gmra.mrb[0].mxu0 %v2632
    %v2703 = vpop.f32.mrb[0].mxu0
    %v2704 = vadd.f32 0.0, %v2703
    %v2705 = vpop.f32.mrb[0].mxu0
    %2706 = vmatprep.mubr.f32.mxu0 0.0
    %2707 = vmatmul.mubr.f32.gmra.mrb[0].mxu0 %v2635
    %v2708 = vpop.f32.mrb[0].mxu0
    %v2709 = vadd.f32 0.0, %v2708
    %v2710 = vpop.f32.mrb[0].mxu0
    %2711 = vdwg.mxu0
    %v2713 = vsel %vm1301, %v2607, 0
    %v2716 = vsel %vm1301, %v2608, 0
    %2718 = vmatprep.subr.mxu0 0.0
    %2719 = vmatpush1.msra.mxu0 %v2615
    %2720 = vmatprep.subr.mxu0 0.0
    %2721 = vmatpush1.msra.mxu0 %v2616
    %2722 = vmatprep.subr.mxu0 0.0
    %2723 = vmatpush1.msra.mxu0 %v2617
    %2724 = vmatprep.subr.mxu0 0.0
    %2725 = vmatpush1.msra.mxu0 %v2618
    %2726 = vmatprep.subr.mxu0 0.0
    %2727 = vmatpush1.msra.mxu0 %v2619
    %2728 = vmatprep.subr.mxu0 0.0
    %2729 = vmatpush1.msra.mxu0 %v2620
    %2730 = vmatprep.subr.mxu0 0.0
    %2731 = vmatpush1.msra.mxu0 %v2621
    %2732 = vmatprep.subr.mxu0 0.0
    %2733 = vmatpush1.msra.mxu0 %v2622
    %2734 = vmatprep.subr.mxu0 0.0
    %2735 = vmatpush1.msra.mxu0 0.0
    %2736 = vmatprep.subr.mxu0 0.0
    %2737 = vmatpush1.msra.mxu0 0.0
    %2738 = vmatprep.subr.mxu0 0.0
    %2739 = vmatpush1.msra.mxu0 0.0
    %2740 = vmatprep.subr.mxu0 0.0
    %2741 = vmatpush1.msra.mxu0 0.0
    %2742 = vmatprep.subr.mxu0 0.0
    %2743 = vmatpush1.msra.mxu0 0.0
    %2744 = vmatprep.subr.mxu0 0.0
    %2745 = vmatpush1.msra.mxu0 0.0
    %2746 = vmatprep.subr.mxu0 0.0
    %2747 = vmatpush1.msra.mxu0 0.0
    %2748 = vmatprep.subr.mxu0 0.0
    %2749 = vmatpush1.msra.mxu0 0.0
    %2750 = vmatprep.subr.mxu0 0.0
    %2751 = vmatpush1.msra.mxu0 0.0
    %2752 = vmatprep.subr.mxu0 0.0
    %2753 = vmatpush1.msra.mxu0 0.0
    %2754 = vmatprep.subr.mxu0 0.0
    %2755 = vmatpush1.msra.mxu0 0.0
    %2756 = vmatprep.subr.mxu0 0.0
    %2757 = vmatpush1.msra.mxu0 0.0
    %2758 = vmatprep.subr.mxu0 0.0
    %2759 = vmatpush1.msra.mxu0 0.0
    %2760 = vmatprep.subr.mxu0 0.0
    %2761 = vmatpush1.msra.mxu0 0.0
    %2762 = vmatprep.subr.mxu0 0.0
    %2763 = vmatpush1.msra.mxu0 0.0
    %2764 = vmatprep.subr.mxu0 0.0
    %2765 = vmatpush1.msra.mxu0 0.0
    %2766 = vmatprep.subr.mxu0 0.0
    %2767 = vmatpush1.msra.mxu0 0.0
    %2768 = vmatprep.subr.mxu0 0.0
    %2769 = vmatpush1.msra.mxu0 0.0
    %2770 = vmatprep.subr.mxu0 0.0
    %2771 = vmatpush1.msra.mxu0 0.0
    %2772 = vmatprep.subr.mxu0 0.0
    %2773 = vmatpush1.msra.mxu0 0.0
    %2774 = vmatprep.subr.mxu0 0.0
    %2775 = vmatpush1.msra.mxu0 0.0
    %2776 = vmatprep.subr.mxu0 0.0
    %2777 = vmatpush1.msra.mxu0 0.0
    %2778 = vmatprep.subr.mxu0 0.0
    %2779 = vmatpush1.msra.mxu0 0.0
    %2780 = vmatprep.subr.mxu0 0.0
    %2781 = vmatpush1.msra.mxu0 0.0
    %2782 = vmatprep.mubr.f32.mxu0 0.0
    %2783 = vmatmul.mubr.f32.gmra.mrb[0].mxu0 %v2713
    %v2784 = vpop.f32.mrb[0].mxu0
    %v2785 = vadd.f32 %v2704, %v2784
    %v2786 = vpop.f32.mrb[0].mxu0
    %2787 = vmatprep.mubr.f32.mxu0 0.0
    %2788 = vmatmul.mubr.f32.gmra.mrb[0].mxu0 %v2716
    %v2789 = vpop.f32.mrb[0].mxu0
    %v2790 = vadd.f32 %v2709, %v2789
    %v2791 = vpop.f32.mrb[0].mxu0
    %2792 = vdwg.mxu0
    %v2793 = vld [vmem:[%s1607 + $0x128] sm:$0xff]
    %v2794 = vld [vmem:[%s1607 + $0x130] sm:$0xff]
    %v2795 = vld [vmem:[%s1607 + $0x138] sm:$0xff]
    %v2796 = vld [vmem:[%s1607 + $0x140] sm:$0xff]
    %v2797 = vld [vmem:[%s1607 + $0x148] sm:$0xff]
    %v2798 = vld [vmem:[%s1607 + $0x150] sm:$0xff]
    %v2799 = vld [vmem:[%s1607 + $0x158] sm:$0xff]
    %v2800 = vld [vmem:[%s1607 + $0x160] sm:$0xff]
    %v2802 = vsel %vm1301, %v2613, 0
    %v2805 = vsel %vm1301, %v2614, 0
    %2807 = vmatprep.subr.mxu0 0.0
    %2808 = vmatpush1.msra.mxu0 %v2793
    %2809 = vmatprep.subr.mxu0 0.0
    %2810 = vmatpush1.msra.mxu0 %v2794
    %2811 = vmatprep.subr.mxu0 0.0
    %2812 = vmatpush1.msra.mxu0 %v2795
    %2813 = vmatprep.subr.mxu0 0.0
    %2814 = vmatpush1.msra.mxu0 %v2796
    %2815 = vmatprep.subr.mxu0 0.0
    %2816 = vmatpush1.msra.mxu0 %v2797
    %2817 = vmatprep.subr.mxu0 0.0
    %2818 = vmatpush1.msra.mxu0 %v2798
    %2819 = vmatprep.subr.mxu0 0.0
    %2820 = vmatpush1.msra.mxu0 %v2799
    %2821 = vmatprep.subr.mxu0 0.0
    %2822 = vmatpush1.msra.mxu0 %v2800
    %2823 = vmatprep.subr.mxu0 0.0
    %2824 = vmatpush1.msra.mxu0 0.0
    %2825 = vmatprep.subr.mxu0 0.0
    %2826 = vmatpush1.msra.mxu0 0.0
    %2827 = vmatprep.subr.mxu0 0.0
    %2828 = vmatpush1.msra.mxu0 0.0
    %2829 = vmatprep.subr.mxu0 0.0
    %2830 = vmatpush1.msra.mxu0 0.0
    %2831 = vmatprep.subr.mxu0 0.0
    %2832 = vmatpush1.msra.mxu0 0.0
    %2833 = vmatprep.subr.mxu0 0.0
    %2834 = vmatpush1.msra.mxu0 0.0
    %2835 = vmatprep.subr.mxu0 0.0
    %2836 = vmatpush1.msra.mxu0 0.0
    %2837 = vmatprep.subr.mxu0 0.0
    %2838 = vmatpush1.msra.mxu0 0.0
    %2839 = vmatprep.subr.mxu0 0.0
    %2840 = vmatpush1.msra.mxu0 0.0
    %2841 = vmatprep.subr.mxu0 0.0
    %2842 = vmatpush1.msra.mxu0 0.0
    %2843 = vmatprep.subr.mxu0 0.0
    %2844 = vmatpush1.msra.mxu0 0.0
    %2845 = vmatprep.subr.mxu0 0.0
    %2846 = vmatpush1.msra.mxu0 0.0
    %2847 = vmatprep.subr.mxu0 0.0
    %2848 = vmatpush1.msra.mxu0 0.0
    %2849 = vmatprep.subr.mxu0 0.0
    %2850 = vmatpush1.msra.mxu0 0.0
    %2851 = vmatprep.subr.mxu0 0.0
    %2852 = vmatpush1.msra.mxu0 0.0
    %2853 = vmatprep.subr.mxu0 0.0
    %2854 = vmatpush1.msra.mxu0 0.0
    %2855 = vmatprep.subr.mxu0 0.0
    %2856 = vmatpush1.msra.mxu0 0.0
    %2857 = vmatprep.subr.mxu0 0.0
    %2858 = vmatpush1.msra.mxu0 0.0
    %2859 = vmatprep.subr.mxu0 0.0
    %2860 = vmatpush1.msra.mxu0 0.0
    %2861 = vmatprep.subr.mxu0 0.0
    %2862 = vmatpush1.msra.mxu0 0.0
    %2863 = vmatprep.subr.mxu0 0.0
    %2864 = vmatpush1.msra.mxu0 0.0
    %2865 = vmatprep.subr.mxu0 0.0
    %2866 = vmatpush1.msra.mxu0 0.0
    %2867 = vmatprep.subr.mxu0 0.0
    %2868 = vmatpush1.msra.mxu0 0.0
    %2869 = vmatprep.subr.mxu0 0.0
    %2870 = vmatpush1.msra.mxu0 0.0
    %2871 = vmatprep.mubr.f32.mxu0 0.0
    %2872 = vmatmul.mubr.f32.gmra.mrb[0].mxu0 %v2802
    %v2873 = vpop.f32.mrb[0].mxu0
    %v2874 = vadd.f32 0.0, %v2873
    %v2875 = vpop.f32.mrb[0].mxu0
    %2876 = vmatprep.mubr.f32.mxu0 0.0
    %2877 = vmatmul.mubr.f32.gmra.mrb[0].mxu0 %v2805
    %v2878 = vpop.f32.mrb[0].mxu0
    %v2879 = vadd.f32 0.0, %v2878
    %v2880 = vpop.f32.mrb[0].mxu0
    %2881 = vdwg.mxu0
    %v2882 = vadd.f32 %v2785, %v2874
    %v2883 = vadd.f32 %v2790, %v2879
    %v2884 = vlaneseq
    %v2885 = vshrl.u32 %v2884, 7
    %v2886 = vsub.s32 3, %v2885
    %v2887 = vrot.slane %v1608, %v2886
    %v2888 = vadd.f32 %v2882, %v2887
    %v2889 = vadd.f32 %v2883, %v2887
    %v2890 = vadd.f32 %v2888, %v2324
    %v2891 = vadd.f32 %v2889, %v2325
    %v2892 = vsel %vm272, %v2890, 0.0
    %2893 = vadd.xlane.f32.xlu0 %v2892
    %v2894 = vpop.xlane.xlu0 %2893
    %v2895 = vsel %vm272, %v2891, 0.0
    %2896 = vadd.xlane.f32.xlu0 %v2895
    %v2897 = vpop.xlane.xlu0 %2896
    %v2898 = vmul.f32 %v2894, %v945
    %v2899 = vmul.f32 %v2897, %v945
    %v2900 = vmul.f32 %v2890, %v2890
    %v2901 = vmul.f32 %v2891, %v2891
    %v2902 = vsel %vm272, %v2900, 0.0
    %2903 = vadd.xlane.f32.xlu0 %v2902
    %v2904 = vpop.xlane.xlu0 %2903
    %v2905 = vsel %vm272, %v2901, 0.0
    %2906 = vadd.xlane.f32.xlu0 %v2905
    %v2907 = vpop.xlane.xlu0 %2906
    %v2908 = vmul.f32 %v2904, %v945
    %v2909 = vmul.f32 %v2907, %v945
    %v2910 = vmul.f32 %v2898, %v2898
    %v2911 = vmul.f32 %v2899, %v2899
    %v2912 = vsub.f32 %v2908, %v2910
    %v2913 = vsub.f32 %v2909, %v2911
    %v2914 = vsub.f32 %v2890, %v2898
    %v2915 = vsub.f32 %v2891, %v2899
    %v2916 = vadd.f32 %v2912, 1e-05
    %v2917 = vadd.f32 %v2913, 1e-05
    %v2918 = vrsqrt.pop %v2916
    %v2919 = vrsqrt.pop %v2917
    %v2920 = vmul.f32 %v2914, %v2918
    %v2921 = vmul.f32 %v2915, %v2919
    %v2922 = vlaneseq
    %v2923 = vshrl.u32 %v2922, 7
    %v2924 = vsub.s32 6, %v2923
    %v2925 = vrot.slane %v1608, %v2924
    %v2926 = vmul.f32 %v2920, %v2925
    %v2927 = vmul.f32 %v2921, %v2925
    %v2928 = vlaneseq
    %v2929 = vshrl.u32 %v2928, 7
    %v2930 = vsub.s32 7, %v2929
    %v2931 = vrot.slane %v1608, %v2930
    %v2932 = vadd.f32 %v2926, %v2931
    %v2933 = vadd.f32 %v2927, %v2931
    %v2934 = vmul.f32 %v2932, %v985
    %v2935 = vmul.f32 %v2933, %v990
    %2936 = vst.msk [vmem:[#allocation5] sm:$0xff] %vm272, %v2934
    %2937 = vst.msk [vmem:[#allocation5 + $0x8] sm:$0xff] %vm272, %v2935
    // Predicated region
    $region22: #{encoder_forward.1} parent=1 // pred_check
      _
    $region23: #{encoder_forward.1} parent=1 // pred_check_branch
      %2939 = sbr.rel (0) target = $region25
    $region24: #{encoder_forward.1} parent=1 // pred_region
      %s2941 = ssub.s32 256, 256
      %2942 = vsyncadd [#allocation4], %s2941
      %s2943 = sshll.u32 [#allocation5], 4
      %s2944 = int_to_ptr.vmem [resolvable:$true] %s2943
      %2949 = dma.vmem_to_hbm [thread:$0]  %s2944, 256, %s4, [#allocation4], 128, 128, 8
    $region25: #{encoder_forward.1} parent=1 // pred_fallthru
      _
    // Predicated region
    $region26: #{encoder_forward.1} parent=1 // pred_check
      _
    $region27: #{encoder_forward.1} parent=1 // pred_check_branch
      %2951 = sbr.rel (0) target = $region29
    $region28: #{encoder_forward.1} parent=1 // pred_region
      %2952 = dma.done [#allocation4], 256
    $region29: #{encoder_forward.1} parent=1 // pred_fallthru
      _
    %2953 = vsyncpa [#allocation3], 1
    %2954 = vsyncpa [#allocation4], 1

</llo_original>
